<compile_context>
chip_gen: v7x
topology: tpu7x:2x2x1
jax: 0.10.0
libtpu: 0.0.40
codegen_flags: <defaults>
</compile_context>

<pallas_src>
import functools

import jax
import jax.numpy as jnp
from jax.experimental import pallas as pl
from jax.experimental.pallas import tpu as pltpu


def _vmem_limit_bytes():
    """Scoped-VMEM limit ~= 3/4 of the chip's physical VMEM (capped at 100 MiB)."""
    try:
        cap = int(pltpu.get_tpu_info().vmem_capacity_bytes)
    except Exception:                      # conservative fallback (v7x-sized)
        cap = 64 * 1024 * 1024
    return max(32 * 1024 * 1024, min(cap * 3 // 4, 100 * 1024 * 1024))


def _pick_row_tile(rows, per_row_bytes, vmem_budget):
    """Largest row tile dividing `rows`, satisfying the (8,·) rule and budget."""
    valid = [t for t in range(rows, 0, -1)
             if rows % t == 0 and (t % 8 == 0 or t == rows)]
    for t in valid:
        if 2 * t * per_row_bytes <= vmem_budget:   # x2 for double buffering
            return t
    return valid[-1]                               # smallest legal tile


# ----------------------------- pass 1: conv + partial BN stats ---------------

def _conv_stats_kernel(x_ref, w_ref, z_ref, psum_ref, psq_ref, *,
                       oh, ow, kh, kw, dil, cin, cout):
    """Per-sample Conv2d(stride=1) + per-channel partial sums for BN.

    x_ref    : (Hp, Wp, Cin)        padded input rows for this sample, bf16
    w_ref    : (KH*KW, Cin, Cout)   per-tap weight matrices, bf16
    z_ref    : (OH, OW, Cout)       conv output, bf16 (no bias - cancels in BN)
    psum_ref : (1, Cout)            partial sum over this sample (f32)
    psq_ref  : (1, Cout)            partial sum of squares over this sample (f32)
    """
    m = oh * ow
    w_all = w_ref[...]                                   # hoisted single load

    def tap(t):
        ih, iw = divmod(t, kw)
        return x_ref[pl.ds(ih * dil, oh), pl.ds(iw * dil, ow), :].reshape(m, cin)

    if cin % 128 == 0:
        # Lane-aligned Cin: fold all taps into one K = KH*KW*Cin contraction
        # (single MXU stream; exploits v7x MRB in-place accumulation).
        patches = jnp.concatenate([tap(t) for t in range(kh * kw)], axis=-1)
        acc = jnp.dot(patches, w_all.reshape(kh * kw * cin, cout),
                      preferred_element_type=jnp.float32)
    else:
        # Small Cin (demo): conv as a sum of per-tap matmuls, f32 accumulation.
        acc = jnp.zeros((m, cout), dtype=jnp.float32)
        for t in range(kh * kw):
            acc = acc + jnp.dot(tap(t), w_all[t],
                                preferred_element_type=jnp.float32)

    # BN statistics come from the f32 accumulator (before the bf16 round-trip).
    psum_ref[...] = jnp.sum(acc, axis=0, keepdims=True)
    psq_ref[...] = jnp.sum(acc * acc, axis=0, keepdims=True)
    z_ref[...] = acc.reshape(oh, ow, cout).astype(z_ref.dtype)


# ----------------------------- pass 2: affine + ReLU (+ maxpool) -------------

def _bn_relu_pool_kernel(z_ref, scale_ref, shift_ref, o_ref, *, ow, cout):
    """Folded BN affine + ReLU + MaxPool2d(2,2) (floor mode).

    z_ref     : (2*TP, OW, Cout) bf16 conv rows
    scale_ref : (1, Cout)        gamma * rsqrt(var + eps)      (f32)
    shift_ref : (1, Cout)        beta - mean * scale           (f32)
    o_ref     : (TP, OW2, Cout)  f32
    """
    y = jnp.maximum(z_ref[...] * scale_ref[...] + shift_ref[...], 0.0)
    ow2 = ow // 2
    r = y.shape[0]
    y = y[:, :2 * ow2, :]                      # drop trailing odd column (floor)
    y4 = y.reshape(r, ow2, 2, cout)            # C stays on lanes -> layout no-op
    pw = jnp.maximum(y4[:, :, 0, :], y4[:, :, 1, :])          # W pooling
    ph = pw.reshape(r // 2, 2, ow2, cout)
    o_ref[...] = jnp.maximum(ph[:, 0], ph[:, 1])              # H pooling


def _bn_relu_rows_kernel(z_ref, scale_ref, shift_ref, o_ref):
    """Folded BN affine + ReLU on lane-dense merged (rows, OW*Cout) tiles."""
    o_ref[...] = jnp.maximum(z_ref[...] * scale_ref[...] + shift_ref[...], 0.0)


# ----------------------------- wrapper ---------------------------------------

def cnn2d_block_v2(x_nchw, weight_oihw, bias, gamma, beta, *,
                   kernel_size=3, dilation=1, stride=1, padding=0,
                   maxpool=True, eps=1e-5):
    """JAX wrapper mirroring CNN2DBlockv2.forward; NCHW in/out like PyTorch."""
    assert stride == 1  # TODO(synk): stride > 1 needs strided window loads in pass 1
    n, cin, h, w = x_nchw.shape
    cout, cin_w, kh, kw = weight_oihw.shape
    assert cin_w == cin and kh == kernel_size and kw == kernel_size

    vmem_limit = _vmem_limit_bytes()

    # Layout change + zero padding in plain JAX; the slab is bf16 so pass-1 DMA
    # and per-block VMEM are halved (the MXU operands were bf16 already).
    # TODO(synk): handle border taps in-kernel (clamped/predicated windows) to
    # avoid this full-array pad copy; likewise the final NCHW transpose could be
    # skipped for an NHWC consumer.
    x = jnp.transpose(x_nchw, (0, 2, 3, 1)).astype(jnp.bfloat16)        # NHWC
    if padding:
        x = jnp.pad(x, ((0, 0), (padding, padding), (padding, padding), (0, 0)))
    hp, wp = x.shape[1], x.shape[2]
    oh = hp - dilation * (kh - 1)
    ow = wp - dilation * (kw - 1)

    # Conv bias cancels exactly under train-mode BN (mean subtraction).
    del bias

    # Weights -> (KH*KW, Cin, Cout) bf16 tap matrices in HBM.
    w_taps = jnp.transpose(weight_oihw, (2, 3, 1, 0)).reshape(kh * kw, cin, cout)
    w_taps = w_taps.astype(jnp.bfloat16)

    # ---- pass 1: per-sample conv + partial BN stats (grid over batch) ----
    # TODO(synk): for large H*W*C (v7x, 64 MiB VMEM) add a second grid axis over
    # output-row tiles with pl.Element halo windows on the input rows, so blocks
    # stay bounded and both TensorCores get work at small batch.
    kern1 = functools.partial(_conv_stats_kernel, oh=oh, ow=ow, kh=kh, kw=kw,
                              dil=dilation, cin=cin, cout=cout)
    flops = 2 * n * oh * ow * kh * kw * cin * cout
    bytes_acc = (x.size * 2 + w_taps.size * 2
                 + n * oh * ow * cout * 2 + 2 * n * cout * 4)
    conv_out, psum, psq = pl.pallas_call(
        kern1,
        out_shape=(jax.ShapeDtypeStruct((n, oh, ow, cout), jnp.bfloat16),
                   jax.ShapeDtypeStruct((n, 1, cout), jnp.float32),
                   jax.ShapeDtypeStruct((n, 1, cout), jnp.float32)),
        grid=(n,),
        in_specs=[
            pl.BlockSpec((None, hp, wp, cin), lambda b: (b, 0, 0, 0)),
            pl.BlockSpec((kh * kw, cin, cout), lambda b: (0, 0, 0)),
        ],
        out_specs=(
            pl.BlockSpec((None, oh, ow, cout), lambda b: (b, 0, 0, 0)),
            pl.BlockSpec((None, 1, cout), lambda b: (b, 0, 0)),
            pl.BlockSpec((None, 1, cout), lambda b: (b, 0, 0)),
        ),
        compiler_params=pltpu.CompilerParams(
            dimension_semantics=("parallel",),
            vmem_limit_bytes=vmem_limit),
        cost_estimate=pl.CostEstimate(flops=flops, transcendentals=0,
                                      bytes_accessed=bytes_acc),
    )(x, w_taps)

    # ---- tiny per-channel reduction + folded BN affine (plain JAX) ----
    # NOTE: E[x^2]-E[x]^2 in f32 from f32 partials; adequate for typical
    # activation scales (a shifted formula would be needed for huge N*OH*OW
    # with large means).
    count = jnp.float32(n * oh * ow)
    ch_sum = jnp.sum(psum[:, 0, :], axis=0)
    ch_sq = jnp.sum(psq[:, 0, :], axis=0)
    mean = ch_sum / count
    var = jnp.maximum(ch_sq / count - mean * mean, 0.0)      # biased variance
    scale = (gamma.astype(jnp.float32) * jax.lax.rsqrt(var + eps)).reshape(1, cout)
    shift = beta.astype(jnp.float32).reshape(1, cout) - mean.reshape(1, cout) * scale

    # ---- pass 2: affine + ReLU (+ 2x2 maxpool), tiled over (batch, rows) ----
    if maxpool:
        oh2, ow2 = oh // 2, ow // 2
        z = conv_out if 2 * oh2 == oh else conv_out[:, :2 * oh2]
        per_row = 2 * ow * cout * 2 + ow2 * cout * 4   # bf16 in rows + f32 out row
        tp = _pick_row_tile(oh2, per_row, vmem_limit // 3)
        kern2 = functools.partial(_bn_relu_pool_kernel, ow=ow, cout=cout)
        # TODO(synk): for Cout < 128 a lane-dense (OW2*Cout) pooled output would
        # avoid masked vst's but needs an in-kernel lane-merge relayout; skipped
        # (real channel counts are >= 128, where stores are already lane-dense).
        out_nhwc = pl.pallas_call(
            kern2,
            out_shape=jax.ShapeDtypeStruct((n, oh2, ow2, cout), jnp.float32),
            grid=(n, oh2 // tp),
            in_specs=[
                pl.BlockSpec((None, 2 * tp, ow, cout), lambda b, r: (b, r, 0, 0)),
                pl.BlockSpec((1, cout), lambda b, r: (0, 0)),
                pl.BlockSpec((1, cout), lambda b, r: (0, 0)),
            ],
            out_specs=pl.BlockSpec((None, tp, ow2, cout),
                                   lambda b, r: (b, r, 0, 0)),
            compiler_params=pltpu.CompilerParams(
                dimension_semantics=("parallel", "parallel"),
                vmem_limit_bytes=vmem_limit),
        )(z, scale, shift)
    else:
        # No pooling: pure elementwise pass -> run in a lane-dense merged
        # (OW*Cout) layout so stores are wide even for small Cout.  The wrapper
        # reshapes are free (row-major trailing-dim merges/splits).
        z2 = conv_out.reshape(n, oh, ow * cout)
        scale_row = jnp.tile(scale, (1, ow))           # (1, OW*Cout)
        shift_row = jnp.tile(shift, (1, ow))
        per_row = ow * cout * 2 + ow * cout * 4        # bf16 in + f32 out per row
        tr = _pick_row_tile(oh, per_row, vmem_limit // 3)
        out_flat = pl.pallas_call(
            _bn_relu_rows_kernel,
            out_shape=jax.ShapeDtypeStruct((n, oh, ow * cout), jnp.float32),
            grid=(n, oh // tr),
            in_specs=[
                pl.BlockSpec((None, tr, ow * cout), lambda b, r: (b, r, 0)),
                pl.BlockSpec((1, ow * cout), lambda b, r: (0, 0)),
                pl.BlockSpec((1, ow * cout), lambda b, r: (0, 0)),
            ],
            out_specs=pl.BlockSpec((None, tr, ow * cout),
                                   lambda b, r: (b, r, 0)),
            compiler_params=pltpu.CompilerParams(
                dimension_semantics=("parallel", "parallel"),
                vmem_limit_bytes=vmem_limit),
        )(z2, scale_row, shift_row)
        out_nhwc = out_flat.reshape(n, oh, ow, cout)

    return jnp.transpose(out_nhwc, (0, 3, 1, 2))             # back to NCHW


# ----------------------------- reference + test -------------------------------

def _reference(x, w, b, gamma, beta, *, padding, dilation, maxpool, eps=1e-5):
    """Pure-JAX reference matching the PyTorch forward (train-mode BN)."""
    y = jax.lax.conv_general_dilated(
        x, w, window_strides=(1, 1),
        padding=[(padding, padding), (padding, padding)],
        rhs_dilation=(dilation, dilation),
        dimension_numbers=("NCHW", "OIHW", "NCHW"),
        precision=jax.lax.Precision.HIGHEST)
    y = y + b.reshape(1, -1, 1, 1)
    mean = jnp.mean(y, axis=(0, 2, 3), keepdims=True)
    var = jnp.mean((y - mean) ** 2, axis=(0, 2, 3), keepdims=True)
    y = (y - mean) / jnp.sqrt(var + eps)
    y = y * gamma.reshape(1, -1, 1, 1) + beta.reshape(1, -1, 1, 1)
    y = jnp.maximum(y, 0.0)
    if maxpool:
        y = jax.lax.reduce_window(y, -jnp.inf, jax.lax.max,
                                  (1, 1, 2, 2), (1, 1, 2, 2), "VALID")
    return y


if __name__ == "__main__":
    key = jax.random.PRNGKey(0)
    k1, k2, k3, k4, k5 = jax.random.split(key, 5)

    N, CIN, H, W = 2, 4, 16, 16
    COUT, K = 8, 3
    PADDING, DILATION = 1, 1

    x = jax.random.normal(k1, (N, CIN, H, W), jnp.float32)
    conv_w = 0.1 * jax.random.normal(k2, (COUT, CIN, K, K), jnp.float32)
    conv_b = 0.1 * jax.random.normal(k3, (COUT,), jnp.float32)
    bn_gamma = 1.0 + 0.1 * jax.random.normal(k4, (COUT,), jnp.float32)
    bn_beta = 0.1 * jax.random.normal(k5, (COUT,), jnp.float32)

    for use_pool in (True, False):
        out = cnn2d_block_v2(x, conv_w, conv_b, bn_gamma, bn_beta,
                             kernel_size=K, dilation=DILATION, stride=1,
                             padding=PADDING, maxpool=use_pool)
        out = jax.block_until_ready(out)
        ref = jax.block_until_ready(
            _reference(x, conv_w, conv_b, bn_gamma, bn_beta,
                       padding=PADDING, dilation=DILATION, maxpool=use_pool))
        assert out.shape == ref.shape, (out.shape, ref.shape)
        err = float(jnp.max(jnp.abs(out - ref)))
        # bf16 matmul operands + bf16 inter-pass conv buffer -> loose tolerance.
        assert err < 5e-2, f"maxpool={use_pool}: max abs err = {err}"

    print("KERNEL_OK")
</pallas_src>

<mosaic_0001>
module attributes {stable_mosaic.version = 11 : i64} {
  func.func @_conv_stats_kernel(%arg0: i32, %arg1: memref<1x18x18x4xbf16, #tpu.memory_space<vmem>>, %arg2: memref<9x4x8xbf16, #tpu.memory_space<vmem>>, %arg3: memref<1x16x16x8xbf16, #tpu.memory_space<vmem>>, %arg4: memref<1x1x8xf32, #tpu.memory_space<vmem>>, %arg5: memref<1x1x8xf32, #tpu.memory_space<vmem>>) attributes {dimension_semantics = [#tpu.dimension_semantics<parallel>], iteration_bounds = array<i64: 2>, scalar_prefetch = 0 : i64, scratch_operands = 0 : i64, tpu.core_type = #tpu.core_type<tc>, window_params = [{transform_indices = @transform_0, window_bounds = array<i64: 1, 18, 18, 4>}, {pipeline_mode = #tpu.pipeline_mode<synchronous>, transform_indices = @transform_1, window_bounds = array<i64: 9, 4, 8>}, {transform_indices = @transform_2, window_bounds = array<i64: 1, 16, 16, 8>}, {transform_indices = @transform_3, window_bounds = array<i64: 1, 1, 8>}, {transform_indices = @transform_4, window_bounds = array<i64: 1, 1, 8>}]} {
    %c0 = arith.constant 0 : index
    %c0_0 = arith.constant 0 : index
    %c0_1 = arith.constant 0 : index
    %0 = vector.load %arg2[%c0, %c0_0, %c0_1] : memref<9x4x8xbf16, #tpu.memory_space<vmem>>, vector<9x4x8xbf16>
    %cst = arith.constant 0.000000e+00 : f32
    %1 = vector.broadcast %cst : f32 to vector<256x8xf32>
    %c0_2 = arith.constant 0 : index
    %c0_3 = arith.constant 0 : index
    %c0_4 = arith.constant 0 : index
    %c0_5 = arith.constant 0 : index
    %2 = vector.load %arg1[%c0_2, %c0_3, %c0_4, %c0_5] : memref<1x18x18x4xbf16, #tpu.memory_space<vmem>>, vector<1x16x16x4xbf16>
    %3 = vector.shape_cast %2 : vector<1x16x16x4xbf16> to vector<16x16x4xbf16>
    %4 = vector.shape_cast %3 : vector<16x16x4xbf16> to vector<256x4xbf16>
    %5 = vector.extract_strided_slice %0 {offsets = [0, 0, 0], sizes = [1, 4, 8], strides = [1, 1, 1]} : vector<9x4x8xbf16> to vector<1x4x8xbf16>
    %6 = vector.shape_cast %5 : vector<1x4x8xbf16> to vector<4x8xbf16>
    %cst_6 = arith.constant dense<0.000000e+00> : vector<256x8xf32>
    %7 = tpu.matmul %4, %6, %cst_6 {dimension_numbers = #tpu.dot_dimension_numbers<[1], [0], [0], [1], [0, 0, 1, 1], [], []>} : vector<256x4xbf16>, vector<4x8xbf16>, vector<256x8xf32> -> vector<256x8xf32>
    %8 = arith.addf %1, %7 : vector<256x8xf32>
    %c0_7 = arith.constant 0 : index
    %c0_8 = arith.constant 0 : index
    %c1 = arith.constant 1 : index
    %c0_9 = arith.constant 0 : index
    %9 = vector.load %arg1[%c0_7, %c0_8, %c1, %c0_9] : memref<1x18x18x4xbf16, #tpu.memory_space<vmem>>, vector<1x16x16x4xbf16>
    %10 = vector.shape_cast %9 : vector<1x16x16x4xbf16> to vector<16x16x4xbf16>
    %11 = vector.shape_cast %10 : vector<16x16x4xbf16> to vector<256x4xbf16>
    %12 = vector.extract_strided_slice %0 {offsets = [1, 0, 0], sizes = [1, 4, 8], strides = [1, 1, 1]} : vector<9x4x8xbf16> to vector<1x4x8xbf16>
    %13 = vector.shape_cast %12 : vector<1x4x8xbf16> to vector<4x8xbf16>
    %cst_10 = arith.constant dense<0.000000e+00> : vector<256x8xf32>
    %14 = tpu.matmul %11, %13, %cst_10 {dimension_numbers = #tpu.dot_dimension_numbers<[1], [0], [0], [1], [0, 0, 1, 1], [], []>} : vector<256x4xbf16>, vector<4x8xbf16>, vector<256x8xf32> -> vector<256x8xf32>
    %15 = arith.addf %8, %14 : vector<256x8xf32>
    %c0_11 = arith.constant 0 : index
    %c0_12 = arith.constant 0 : index
    %c2 = arith.constant 2 : index
    %c0_13 = arith.constant 0 : index
    %16 = vector.load %arg1[%c0_11, %c0_12, %c2, %c0_13] : memref<1x18x18x4xbf16, #tpu.memory_space<vmem>>, vector<1x16x16x4xbf16>
    %17 = vector.shape_cast %16 : vector<1x16x16x4xbf16> to vector<16x16x4xbf16>
    %18 = vector.shape_cast %17 : vector<16x16x4xbf16> to vector<256x4xbf16>
    %19 = vector.extract_strided_slice %0 {offsets = [2, 0, 0], sizes = [1, 4, 8], strides = [1, 1, 1]} : vector<9x4x8xbf16> to vector<1x4x8xbf16>
    %20 = vector.shape_cast %19 : vector<1x4x8xbf16> to vector<4x8xbf16>
    %cst_14 = arith.constant dense<0.000000e+00> : vector<256x8xf32>
    %21 = tpu.matmul %18, %20, %cst_14 {dimension_numbers = #tpu.dot_dimension_numbers<[1], [0], [0], [1], [0, 0, 1, 1], [], []>} : vector<256x4xbf16>, vector<4x8xbf16>, vector<256x8xf32> -> vector<256x8xf32>
    %22 = arith.addf %15, %21 : vector<256x8xf32>
    %c0_15 = arith.constant 0 : index
    %c1_16 = arith.constant 1 : index
    %c0_17 = arith.constant 0 : index
    %c0_18 = arith.constant 0 : index
    %23 = vector.load %arg1[%c0_15, %c1_16, %c0_17, %c0_18] : memref<1x18x18x4xbf16, #tpu.memory_space<vmem>>, vector<1x16x16x4xbf16>
    %24 = vector.shape_cast %23 : vector<1x16x16x4xbf16> to vector<16x16x4xbf16>
    %25 = vector.shape_cast %24 : vector<16x16x4xbf16> to vector<256x4xbf16>
    %26 = vector.extract_strided_slice %0 {offsets = [3, 0, 0], sizes = [1, 4, 8], strides = [1, 1, 1]} : vector<9x4x8xbf16> to vector<1x4x8xbf16>
    %27 = vector.shape_cast %26 : vector<1x4x8xbf16> to vector<4x8xbf16>
    %cst_19 = arith.constant dense<0.000000e+00> : vector<256x8xf32>
    %28 = tpu.matmul %25, %27, %cst_19 {dimension_numbers = #tpu.dot_dimension_numbers<[1], [0], [0], [1], [0, 0, 1, 1], [], []>} : vector<256x4xbf16>, vector<4x8xbf16>, vector<256x8xf32> -> vector<256x8xf32>
    %29 = arith.addf %22, %28 : vector<256x8xf32>
    %c0_20 = arith.constant 0 : index
    %c1_21 = arith.constant 1 : index
    %c1_22 = arith.constant 1 : index
    %c0_23 = arith.constant 0 : index
    %30 = vector.load %arg1[%c0_20, %c1_21, %c1_22, %c0_23] : memref<1x18x18x4xbf16, #tpu.memory_space<vmem>>, vector<1x16x16x4xbf16>
    %31 = vector.shape_cast %30 : vector<1x16x16x4xbf16> to vector<16x16x4xbf16>
    %32 = vector.shape_cast %31 : vector<16x16x4xbf16> to vector<256x4xbf16>
    %33 = vector.extract_strided_slice %0 {offsets = [4, 0, 0], sizes = [1, 4, 8], strides = [1, 1, 1]} : vector<9x4x8xbf16> to vector<1x4x8xbf16>
    %34 = vector.shape_cast %33 : vector<1x4x8xbf16> to vector<4x8xbf16>
    %cst_24 = arith.constant dense<0.000000e+00> : vector<256x8xf32>
    %35 = tpu.matmul %32, %34, %cst_24 {dimension_numbers = #tpu.dot_dimension_numbers<[1], [0], [0], [1], [0, 0, 1, 1], [], []>} : vector<256x4xbf16>, vector<4x8xbf16>, vector<256x8xf32> -> vector<256x8xf32>
    %36 = arith.addf %29, %35 : vector<256x8xf32>
    %c0_25 = arith.constant 0 : index
    %c1_26 = arith.constant 1 : index
    %c2_27 = arith.constant 2 : index
    %c0_28 = arith.constant 0 : index
    %37 = vector.load %arg1[%c0_25, %c1_26, %c2_27, %c0_28] : memref<1x18x18x4xbf16, #tpu.memory_space<vmem>>, vector<1x16x16x4xbf16>
    %38 = vector.shape_cast %37 : vector<1x16x16x4xbf16> to vector<16x16x4xbf16>
    %39 = vector.shape_cast %38 : vector<16x16x4xbf16> to vector<256x4xbf16>
    %40 = vector.extract_strided_slice %0 {offsets = [5, 0, 0], sizes = [1, 4, 8], strides = [1, 1, 1]} : vector<9x4x8xbf16> to vector<1x4x8xbf16>
    %41 = vector.shape_cast %40 : vector<1x4x8xbf16> to vector<4x8xbf16>
    %cst_29 = arith.constant dense<0.000000e+00> : vector<256x8xf32>
    %42 = tpu.matmul %39, %41, %cst_29 {dimension_numbers = #tpu.dot_dimension_numbers<[1], [0], [0], [1], [0, 0, 1, 1], [], []>} : vector<256x4xbf16>, vector<4x8xbf16>, vector<256x8xf32> -> vector<256x8xf32>
    %43 = arith.addf %36, %42 : vector<256x8xf32>
    %c0_30 = arith.constant 0 : index
    %c2_31 = arith.constant 2 : index
    %c0_32 = arith.constant 0 : index
    %c0_33 = arith.constant 0 : index
    %44 = vector.load %arg1[%c0_30, %c2_31, %c0_32, %c0_33] : memref<1x18x18x4xbf16, #tpu.memory_space<vmem>>, vector<1x16x16x4xbf16>
    %45 = vector.shape_cast %44 : vector<1x16x16x4xbf16> to vector<16x16x4xbf16>
    %46 = vector.shape_cast %45 : vector<16x16x4xbf16> to vector<256x4xbf16>
    %47 = vector.extract_strided_slice %0 {offsets = [6, 0, 0], sizes = [1, 4, 8], strides = [1, 1, 1]} : vector<9x4x8xbf16> to vector<1x4x8xbf16>
    %48 = vector.shape_cast %47 : vector<1x4x8xbf16> to vector<4x8xbf16>
    %cst_34 = arith.constant dense<0.000000e+00> : vector<256x8xf32>
    %49 = tpu.matmul %46, %48, %cst_34 {dimension_numbers = #tpu.dot_dimension_numbers<[1], [0], [0], [1], [0, 0, 1, 1], [], []>} : vector<256x4xbf16>, vector<4x8xbf16>, vector<256x8xf32> -> vector<256x8xf32>
    %50 = arith.addf %43, %49 : vector<256x8xf32>
    %c0_35 = arith.constant 0 : index
    %c2_36 = arith.constant 2 : index
    %c1_37 = arith.constant 1 : index
    %c0_38 = arith.constant 0 : index
    %51 = vector.load %arg1[%c0_35, %c2_36, %c1_37, %c0_38] : memref<1x18x18x4xbf16, #tpu.memory_space<vmem>>, vector<1x16x16x4xbf16>
    %52 = vector.shape_cast %51 : vector<1x16x16x4xbf16> to vector<16x16x4xbf16>
    %53 = vector.shape_cast %52 : vector<16x16x4xbf16> to vector<256x4xbf16>
    %54 = vector.extract_strided_slice %0 {offsets = [7, 0, 0], sizes = [1, 4, 8], strides = [1, 1, 1]} : vector<9x4x8xbf16> to vector<1x4x8xbf16>
    %55 = vector.shape_cast %54 : vector<1x4x8xbf16> to vector<4x8xbf16>
    %cst_39 = arith.constant dense<0.000000e+00> : vector<256x8xf32>
    %56 = tpu.matmul %53, %55, %cst_39 {dimension_numbers = #tpu.dot_dimension_numbers<[1], [0], [0], [1], [0, 0, 1, 1], [], []>} : vector<256x4xbf16>, vector<4x8xbf16>, vector<256x8xf32> -> vector<256x8xf32>
    %57 = arith.addf %50, %56 : vector<256x8xf32>
    %c0_40 = arith.constant 0 : index
    %c2_41 = arith.constant 2 : index
    %c2_42 = arith.constant 2 : index
    %c0_43 = arith.constant 0 : index
    %58 = vector.load %arg1[%c0_40, %c2_41, %c2_42, %c0_43] : memref<1x18x18x4xbf16, #tpu.memory_space<vmem>>, vector<1x16x16x4xbf16>
    %59 = vector.shape_cast %58 : vector<1x16x16x4xbf16> to vector<16x16x4xbf16>
    %60 = vector.shape_cast %59 : vector<16x16x4xbf16> to vector<256x4xbf16>
    %61 = vector.extract_strided_slice %0 {offsets = [8, 0, 0], sizes = [1, 4, 8], strides = [1, 1, 1]} : vector<9x4x8xbf16> to vector<1x4x8xbf16>
    %62 = vector.shape_cast %61 : vector<1x4x8xbf16> to vector<4x8xbf16>
    %cst_44 = arith.constant dense<0.000000e+00> : vector<256x8xf32>
    %63 = tpu.matmul %60, %62, %cst_44 {dimension_numbers = #tpu.dot_dimension_numbers<[1], [0], [0], [1], [0, 0, 1, 1], [], []>} : vector<256x4xbf16>, vector<4x8xbf16>, vector<256x8xf32> -> vector<256x8xf32>
    %64 = arith.addf %57, %63 : vector<256x8xf32>
    %cst_45 = arith.constant dense<0.000000e+00> : vector<8xf32>
    %65 = vector.multi_reduction <add>, %64, %cst_45 [0] : vector<256x8xf32> to vector<8xf32>
    %66 = vector.shape_cast %65 : vector<8xf32> to vector<1x8xf32>
    %c0_46 = arith.constant 0 : index
    %c0_47 = arith.constant 0 : index
    %c0_48 = arith.constant 0 : index
    %67 = vector.load %arg4[%c0_46, %c0_47, %c0_48] : memref<1x1x8xf32, #tpu.memory_space<vmem>>, vector<1x1x8xf32>
    %68 = vector.shape_cast %67 : vector<1x1x8xf32> to vector<1x8xf32>
    %69 = vector.shape_cast %66 : vector<1x8xf32> to vector<1x1x8xf32>
    tpu.vector_store %arg4[%c0_46, %c0_47, %c0_48], %69 {strides = array<i32>} : memref<1x1x8xf32, #tpu.memory_space<vmem>>, vector<1x1x8xf32>,
    %70 = arith.mulf %64, %64 : vector<256x8xf32>
    %cst_49 = arith.constant dense<0.000000e+00> : vector<8xf32>
    %71 = vector.multi_reduction <add>, %70, %cst_49 [0] : vector<256x8xf32> to vector<8xf32>
    %72 = vector.shape_cast %71 : vector<8xf32> to vector<1x8xf32>
    %c0_50 = arith.constant 0 : index
    %c0_51 = arith.constant 0 : index
    %c0_52 = arith.constant 0 : index
    %73 = vector.load %arg5[%c0_50, %c0_51, %c0_52] : memref<1x1x8xf32, #tpu.memory_space<vmem>>, vector<1x1x8xf32>
    %74 = vector.shape_cast %73 : vector<1x1x8xf32> to vector<1x8xf32>
    %75 = vector.shape_cast %72 : vector<1x8xf32> to vector<1x1x8xf32>
    tpu.vector_store %arg5[%c0_50, %c0_51, %c0_52], %75 {strides = array<i32>} : memref<1x1x8xf32, #tpu.memory_space<vmem>>, vector<1x1x8xf32>,
    %76 = vector.shape_cast %64 : vector<256x8xf32> to vector<16x16x8xf32>
    %77 = arith.truncf %76 : vector<16x16x8xf32> to vector<16x16x8xbf16>
    %c0_53 = arith.constant 0 : index
    %c0_54 = arith.constant 0 : index
    %c0_55 = arith.constant 0 : index
    %c0_56 = arith.constant 0 : index
    %78 = vector.load %arg3[%c0_53, %c0_54, %c0_55, %c0_56] : memref<1x16x16x8xbf16, #tpu.memory_space<vmem>>, vector<1x16x16x8xbf16>
    %79 = vector.shape_cast %78 : vector<1x16x16x8xbf16> to vector<16x16x8xbf16>
    %80 = vector.shape_cast %77 : vector<16x16x8xbf16> to vector<1x16x16x8xbf16>
    tpu.vector_store %arg3[%c0_53, %c0_54, %c0_55, %c0_56], %80 {strides = array<i32>} : memref<1x16x16x8xbf16, #tpu.memory_space<vmem>>, vector<1x16x16x8xbf16>,
    return
  }
  func.func @transform_0(%arg0: i32) -> (i32, i32, i32, i32) {
    %c0_i32 = arith.constant 0 : i32
    %c0_i32_0 = arith.constant 0 : i32
    %c0_i32_1 = arith.constant 0 : i32
    %c0_i32_2 = arith.constant 0 : i32
    return %arg0, %c0_i32, %c0_i32_0, %c0_i32_1 : i32, i32, i32, i32
  }
  func.func @transform_1(%arg0: i32) -> (i32, i32, i32) {
    %c0_i32 = arith.constant 0 : i32
    %c0_i32_0 = arith.constant 0 : i32
    %c0_i32_1 = arith.constant 0 : i32
    %c0_i32_2 = arith.constant 0 : i32
    return %c0_i32, %c0_i32_0, %c0_i32_1 : i32, i32, i32
  }
  func.func @transform_2(%arg0: i32) -> (i32, i32, i32, i32) {
    %c0_i32 = arith.constant 0 : i32
    %c0_i32_0 = arith.constant 0 : i32
    %c0_i32_1 = arith.constant 0 : i32
    %c0_i32_2 = arith.constant 0 : i32
    return %arg0, %c0_i32, %c0_i32_0, %c0_i32_1 : i32, i32, i32, i32
  }
  func.func @transform_3(%arg0: i32) -> (i32, i32, i32) {
    %c0_i32 = arith.constant 0 : i32
    %c0_i32_0 = arith.constant 0 : i32
    %c0_i32_1 = arith.constant 0 : i32
    return %arg0, %c0_i32, %c0_i32_0 : i32, i32, i32
  }
  func.func @transform_4(%arg0: i32) -> (i32, i32, i32) {
    %c0_i32 = arith.constant 0 : i32
    %c0_i32_0 = arith.constant 0 : i32
    %c0_i32_1 = arith.constant 0 : i32
    return %arg0, %c0_i32, %c0_i32_0 : i32, i32, i32
  }
}

</mosaic_0001>

<llo_original>
// kernel: tpu_custom_call.1
$region0: #{tpu_custom_call.1}
  #allocation0 [shape = 'u32[]', space=smem, size = 0x4, offset = 0x4, fixed_abs, tag = 'smem constant byte address 0x4 - core index']
  #allocation1 [shape = 'u32[144,128]{1,0:T(1,128)}', space=vmem, size = 0x12000, scoped, tag = 'internal scratch']
  %s0 = inlined_call_operand.vmem [shape: bf16[2,18,18,4], index: 0, kind: input, shape index: {}]
  %s1 = inlined_call_operand.vmem [shape: bf16[9,4,8], index: 1, kind: input, shape index: {}]
  %s2 = inlined_call_operand.vmem [shape: bf16[2,16,16,8], index: 2, kind: output, shape index: {0}]
  %s3 = inlined_call_operand.hbm [shape: f32[2,1,8], index: 3, kind: output, shape index: {1}]
  %s4 = inlined_call_operand.hbm [shape: f32[2,1,8], index: 4, kind: output, shape index: {2}]
  %5 = xla_tuple %s2, %s3, %s4
  %s6 = sld [smem:[#allocation0]]
  $region57: #{tpu_custom_call.1} parent=0
    _
  %s8 = ssub.s32 1, %s6
  %s9 = scalar_select 0, %s8, %s6
  $region1: #{tpu_custom_call.1} parent=0
    #allocation2 [shape = 'u8[1024]{0}', space=vmem, size = 0x400, scoped, tag = 'output window, operand 1']
    #allocation3 [shape = 's32[2]{0}', space=sflag, size = 0x8, scoped, tag = 'scoped memory for tpu_custom_call.1']
    #allocation4 [shape = 'u8[1024]{0}', space=vmem, size = 0x400, scoped, tag = 'output window, operand 2']
    #allocation5 [shape = 's32[2]{0}', space=sflag, size = 0x8, scoped, tag = 'scoped memory for tpu_custom_call.1']
    %10 = vsyncpa [#allocation3], 0
    %s11 = scalar_lea.sflag [#allocation3], 1
    %12 = vsyncpa %s11, 0
    %13 = vsyncpa [#allocation5], 0
    %s14 = scalar_lea.sflag [#allocation5], 1
    %15 = vsyncpa %s14, 0
    loop: start=0, step=1, limit=4
    $region2: #{tpu_custom_call.1} parent=1 // loop_pre_header
      _
    $region3: #{tpu_custom_call.1} parent=1 // loop_header
      %s17 = sphi 0, %s21
      %p18 = scmp.ge.s32.totalorder %s17, 4
      %s27 = sphi 0, %s29
      %s30 = sphi 0, %s27
      %s31 = sphi 0, %s30
      %s47 = sphi 0, %s31
      %s51 = sphi 0, %s51
      %s53 = sphi 0, %s51
      %s54 = sphi 0, %s53
      %s68 = sphi 0, %s54
      %s74 = sphi 0, %s76
      %s77 = sphi 0, %s74
      %s78 = sphi 0, %s77
      %s94 = sphi 0, %s78
      %s100 = sphi 0, %s102
      %s103 = sphi 0, %s100
      %s104 = sphi 0, %s103
      %s120 = sphi 0, %s104
      %s126 = sphi 0, %s128
      %s129 = sphi 0, %s126
      %s130 = sphi 0, %s129
      %s146 = sphi 0, %s130
    $region4: #{tpu_custom_call.1} parent=1 // loop_header_branch
      %20 = sbr.rel (%p18) target = $region8
    $region5: #{tpu_custom_call.1} parent=1 // loop_body
      %s22 = ssub.s32 %s17, 1
      %s23 = ssub.s32 %s17, 2
      %s24 = sadd.s32 %s17, 1
      %s25 = ssub.s32 %s17, %s24
      %p26 = scmp.eq.s32.totalorder %s25, 0
      %s28 = sadd.s32 %s27, 1
      %s29 = scalar_select %p26, %s27, %s28
      %p32 = pneg %p26
      %p33 = scmp.eq.s32.totalorder %s17, 1
      %p34 = por %p32, %p33
      %p35 = scmp.ne.s32.totalorder %s27, %s30
      %p36 = scmp.eq.s32.totalorder %s17, 0
      %p37 = por %p35, %p36
      %p38 = scmp.ne.s32.totalorder %s27, %s30
      %p39 = scmp.eq.s32.totalorder %s22, 1
      %p40 = por %p38, %p39
      %p41 = scmp.ne.s32.totalorder %s30, %s31
      %p42 = scmp.eq.s32.totalorder %s22, 0
      %p43 = por %p41, %p42
      %p44 = scmp.ne.s32.totalorder %s30, %s31
      %p45 = scmp.eq.s32.totalorder %s23, 1
      %p46 = por %p44, %p45
      %p48 = scmp.ne.s32.totalorder %s31, %s47
      %p49 = scmp.eq.s32.totalorder %s23, 0
      %p50 = por %p48, %p49
      %s52 = sadd.s32 %s51, 1
      %p55 = scmp.eq.s32.totalorder %s17, 1
      %p56 = scmp.ne.s32.totalorder %s51, %s53
      %p57 = scmp.eq.s32.totalorder %s17, 0
      %p58 = por %p56, %p57
      %p59 = scmp.ne.s32.totalorder %s51, %s53
      %p60 = scmp.eq.s32.totalorder %s22, 1
      %p61 = por %p59, %p60
      %p62 = scmp.ne.s32.totalorder %s53, %s54
      %p63 = scmp.eq.s32.totalorder %s22, 0
      %p64 = por %p62, %p63
      %p65 = scmp.ne.s32.totalorder %s53, %s54
      %p66 = scmp.eq.s32.totalorder %s23, 1
      %p67 = por %p65, %p66
      %p69 = scmp.ne.s32.totalorder %s54, %s68
      %p70 = scmp.eq.s32.totalorder %s23, 0
      %p71 = por %p69, %p70
      %s72 = ssub.s32 %s17, %s24
      %p73 = scmp.eq.s32.totalorder %s72, 0
      %s75 = sadd.s32 %s74, 1
      %s76 = scalar_select %p73, %s74, %s75
      %p79 = pneg %p73
      %p80 = scmp.eq.s32.totalorder %s17, 1
      %p81 = por %p79, %p80
      %p82 = scmp.ne.s32.totalorder %s74, %s77
      %p83 = scmp.eq.s32.totalorder %s17, 0
      %p84 = por %p82, %p83
      %p85 = scmp.ne.s32.totalorder %s74, %s77
      %p86 = scmp.eq.s32.totalorder %s22, 1
      %p87 = por %p85, %p86
      %p88 = scmp.ne.s32.totalorder %s77, %s78
      %p89 = scmp.eq.s32.totalorder %s22, 0
      %p90 = por %p88, %p89
      %p91 = scmp.ne.s32.totalorder %s77, %s78
      %p92 = scmp.eq.s32.totalorder %s23, 1
      %p93 = por %p91, %p92
      %p95 = scmp.ne.s32.totalorder %s78, %s94
      %p96 = scmp.eq.s32.totalorder %s23, 0
      %p97 = por %p95, %p96
      %s98 = ssub.s32 %s17, %s24
      %p99 = scmp.eq.s32.totalorder %s98, 0
      %s101 = sadd.s32 %s100, 1
      %s102 = scalar_select %p99, %s100, %s101
      %p105 = pneg %p99
      %p106 = scmp.eq.s32.totalorder %s17, 1
      %p107 = por %p105, %p106
      %p108 = scmp.ne.s32.totalorder %s100, %s103
      %p109 = scmp.eq.s32.totalorder %s17, 0
      %p110 = por %p108, %p109
      %p111 = scmp.ne.s32.totalorder %s100, %s103
      %p112 = scmp.eq.s32.totalorder %s22, 1
      %p113 = por %p111, %p112
      %p114 = scmp.ne.s32.totalorder %s103, %s104
      %p115 = scmp.eq.s32.totalorder %s22, 0
      %p116 = por %p114, %p115
      %p117 = scmp.ne.s32.totalorder %s103, %s104
      %p118 = scmp.eq.s32.totalorder %s23, 1
      %p119 = por %p117, %p118
      %p121 = scmp.ne.s32.totalorder %s104, %s120
      %p122 = scmp.eq.s32.totalorder %s23, 0
      %p123 = por %p121, %p122
      %s124 = ssub.s32 %s17, %s24
      %p125 = scmp.eq.s32.totalorder %s124, 0
      %s127 = sadd.s32 %s126, 1
      %s128 = scalar_select %p125, %s126, %s127
      %p131 = pneg %p125
      %p132 = scmp.eq.s32.totalorder %s17, 1
      %p133 = por %p131, %p132
      %p134 = scmp.ne.s32.totalorder %s126, %s129
      %p135 = scmp.eq.s32.totalorder %s17, 0
      %p136 = por %p134, %p135
      %p137 = scmp.ne.s32.totalorder %s126, %s129
      %p138 = scmp.eq.s32.totalorder %s22, 1
      %p139 = por %p137, %p138
      %p140 = scmp.ne.s32.totalorder %s129, %s130
      %p141 = scmp.eq.s32.totalorder %s22, 0
      %p142 = por %p140, %p141
      %p143 = scmp.ne.s32.totalorder %s129, %s130
      %p144 = scmp.eq.s32.totalorder %s23, 1
      %p145 = por %p143, %p144
      %p147 = scmp.ne.s32.totalorder %s130, %s146
      %p148 = scmp.eq.s32.totalorder %s23, 0
      %p149 = por %p147, %p148
      %p150 = scmp.le.s32.totalorder 1, %s17
      %p151 = scmp.lt.s32.totalorder %s17, 3
      %p152 = pnand %p150, %p151
      %p153 = pneg %p152
      // Predicated region
      $region9: #{tpu_custom_call.1} parent=5 // pred_check
        _
      $region10: #{tpu_custom_call.1} parent=5 // pred_check_branch
        %155 = sbr.rel (%p152) target = $region12
      $region11: #{tpu_custom_call.1} parent=5 // pred_region
        %s156 = ssub.s32 %s17, 1
        // Predicated region
        $region13: #{tpu_custom_call.1} parent=11 // pred_check
          %p157 = pneg %p64
        $region14: #{tpu_custom_call.1} parent=11 // pred_check_branch
          %159 = sbr.rel (%p157) target = $region16
        $region15: #{tpu_custom_call.1} parent=11 // pred_region
          _
        $region16: #{tpu_custom_call.1} parent=11 // pred_fallthru
          _
      $region12: #{tpu_custom_call.1} parent=5 // pred_fallthru
        _
      %p160 = scmp.lt.s32.totalorder %s17, 2
      // Predicated region
      $region17: #{tpu_custom_call.1} parent=5 // pred_check
        %p161 = pneg %p160
      $region18: #{tpu_custom_call.1} parent=5 // pred_check_branch
        %163 = sbr.rel (%p161) target = $region20
      $region19: #{tpu_custom_call.1} parent=5 // pred_region
        // Predicated region
        $region21: #{tpu_custom_call.1} parent=19 // pred_check
          %p164 = pneg %p37
        $region22: #{tpu_custom_call.1} parent=19 // pred_check_branch
          %166 = sbr.rel (%p164) target = $region24
        $region23: #{tpu_custom_call.1} parent=19 // pred_region
          %p167 = scmp.lt.s32.totalorder %s17, 1
          %s168 = scalar_select %p167, %s17, 1
          %s169 = smul.addr %s168, 54
          %s170 = smul.addr %s169, 4
          %s171 = scalar_lea.vmem %s0, %s170
        $region24: #{tpu_custom_call.1} parent=19 // pred_fallthru
          _
      $region20: #{tpu_custom_call.1} parent=5 // pred_fallthru
        _
      %p172 = scmp.le.s32.totalorder 1, %s17
      %p173 = scmp.lt.s32.totalorder %s17, 3
      %p174 = pnand %p172, %p173
      %p175 = pneg %p174
      // Predicated region
      $region25: #{tpu_custom_call.1} parent=5 // pred_check
        _
      $region26: #{tpu_custom_call.1} parent=5 // pred_check_branch
        %177 = sbr.rel (%p174) target = $region28
      $region27: #{tpu_custom_call.1} parent=5 // pred_region
        %s178 = ssub.s32 %s17, 1
        %p179 = scmp.lt.s32.totalorder %s22, 1
        %s180 = scalar_select %p179, %s22, 1
        %s181 = smul.addr %s180, 54
        %s182 = smul.addr %s181, 4
        %s183 = scalar_lea.vmem %s0, %s182
        %p184 = pneg %p43
        %p185 = pneg %p40
        %p186 = pneg %p64
        %p187 = pneg %p61
        %p188 = pneg %p90
        %p189 = pneg %p87
        %p190 = scmp.lt.s32.totalorder %s22, 1
        %s191 = scalar_select %p190, %s22, 1
        %s192 = smul.addr %s191, 32
        %s193 = smul.addr %s192, 4
        %s194 = scalar_lea.vmem %s2, %s193
        %p195 = pneg %p116
        %p196 = pneg %p113
        %s197 = sand.u32 %s103, 1
        %s198 = scalar_lea.sflag [#allocation3], %s197
        %s199 = sand.u32 %s103, 1
        %s200 = scalar_lea.vmem [#allocation2], %s199
        %p201 = pneg %p142
        %p202 = pneg %p139
        %s203 = sand.u32 %s129, 1
        %s204 = scalar_lea.sflag [#allocation5], %s203
        %s205 = sand.u32 %s129, 1
        %s206 = scalar_lea.vmem [#allocation4], %s205
        %p207 = scmp.lt.s32.totalorder %s22, 1
        %s208 = scalar_select %p207, %s22, 1
        %s209 = smul.addr %s208, 54
        %s210 = smul.addr %s209, 4
        %s211 = scalar_lea.vmem %s0, %s210
        %p212 = scmp.lt.s32.totalorder %s22, 1
        %s213 = scalar_select %p212, %s22, 1
        %s214 = smul.addr %s213, 32
        %s215 = smul.addr %s214, 4
        %s216 = scalar_lea.vmem %s2, %s215
        %v218 = vld [vmem:[%s1] sm:$0x3]
        %v219 = vld [vmem:[%s1 + $0x2] sm:$0x3]
        %v220 = vld [vmem:[%s1 + $0x4] sm:$0x3]
        %v221 = vld [vmem:[%s1 + $0x6] sm:$0x3]
        %v222 = vld [vmem:[%s1 + $0x8] sm:$0x3]
        %v223 = vld [vmem:[%s1 + $0xa] sm:$0x3]
        %v224 = vld [vmem:[%s1 + $0xc] sm:$0x3]
        %v225 = vld [vmem:[%s1 + $0xe] sm:$0x3]
        %v226 = vld [vmem:[%s1 + $0x10] sm:$0x3]
        %v227 = vld [vmem:[%s211] sm:$0xf]
        %v228 = vld [vmem:[%s211 + $0x4] sm:$0xf]
        %v229 = vld [vmem:[%s211 + $0xc] sm:$0xf]
        %v230 = vld [vmem:[%s211 + $0x10] sm:$0xf]
        %v231 = vld [vmem:[%s211 + $0x18] sm:$0xf]
        %v232 = vld [vmem:[%s211 + $0x1c] sm:$0xf]
        %v233 = vld [vmem:[%s211 + $0x24] sm:$0xf]
        %v234 = vld [vmem:[%s211 + $0x28] sm:$0xf]
        %v235 = vld [vmem:[%s211 + $0x30] sm:$0xf]
        %v236 = vld [vmem:[%s211 + $0x34] sm:$0xf]
        %v237 = vld [vmem:[%s211 + $0x3c] sm:$0xf]
        %v238 = vld [vmem:[%s211 + $0x40] sm:$0xf]
        %v239 = vld [vmem:[%s211 + $0x48] sm:$0xf]
        %v240 = vld [vmem:[%s211 + $0x4c] sm:$0xf]
        %v241 = vld [vmem:[%s211 + $0x54] sm:$0xf]
        %v242 = vld [vmem:[%s211 + $0x58] sm:$0xf]
        %v243 = vld [vmem:[%s211 + $0x60] sm:$0xf]
        %v244 = vld [vmem:[%s211 + $0x64] sm:$0xf]
        %v245 = vld [vmem:[%s211 + $0x6c] sm:$0xf]
        %v246 = vld [vmem:[%s211 + $0x70] sm:$0xf]
        %v247 = vld [vmem:[%s211 + $0x78] sm:$0xf]
        %v248 = vld [vmem:[%s211 + $0x7c] sm:$0xf]
        %v249 = vld [vmem:[%s211 + $0x84] sm:$0xf]
        %v250 = vld [vmem:[%s211 + $0x88] sm:$0xf]
        %v251 = vld [vmem:[%s211 + $0x90] sm:$0xf]
        %v252 = vld [vmem:[%s211 + $0x94] sm:$0xf]
        %v253 = vld [vmem:[%s211 + $0x9c] sm:$0xf]
        %v254 = vld [vmem:[%s211 + $0xa0] sm:$0xf]
        %v255 = vld [vmem:[%s211 + $0xa8] sm:$0xf]
        %v256 = vld [vmem:[%s211 + $0xac] sm:$0xf]
        %v257 = vld [vmem:[%s211 + $0xb4] sm:$0xf]
        %v258 = vld [vmem:[%s211 + $0xb8] sm:$0xf]
        %v259 = vld [vmem:[%s211 + $0x8] sm:$0x1]
        %v260 = vld [vmem:[%s211 + $0x14] sm:$0x1]
        %v261 = vld [vmem:[%s211 + $0x20] sm:$0x1]
        %v262 = vld [vmem:[%s211 + $0x2c] sm:$0x1]
        %v263 = vld [vmem:[%s211 + $0x38] sm:$0x1]
        %v264 = vld [vmem:[%s211 + $0x44] sm:$0x1]
        %v265 = vld [vmem:[%s211 + $0x50] sm:$0x1]
        %v266 = vld [vmem:[%s211 + $0x5c] sm:$0x1]
        %v267 = vld [vmem:[%s211 + $0x68] sm:$0x1]
        %v268 = vld [vmem:[%s211 + $0x74] sm:$0x1]
        %v269 = vld [vmem:[%s211 + $0x80] sm:$0x1]
        %v270 = vld [vmem:[%s211 + $0x8c] sm:$0x1]
        %v271 = vld [vmem:[%s211 + $0x98] sm:$0x1]
        %v272 = vld [vmem:[%s211 + $0xa4] sm:$0x1]
        %v273 = vld [vmem:[%s211 + $0xb0] sm:$0x1]
        %v274 = vld [vmem:[%s211 + $0xbc] sm:$0x1]
        %vm275 = vsmask.f32 3328
        %vm276 = vsmask.f32 7440
        %vm277 = vmor %vm275, %vm276
        %v279 = vshrl.u32 %v227, 16
        %v281 = vrot.slane %v279, 4
        %v282 = vshll.u32 %v227, 16
        %v284 = vrot.slane %v282, 5
        %v285 = vor.u32 %v281, %v284
        %v286 = vrot.slane %v285, 4
        %v288 = vshll.u32 %v228, 16
        %v290 = vrot.slane %v288, 5
        %v291 = vsel %vm277, %v286, %v290
        %v292 = vshrl.u32 %v228, 16
        %v294 = vrot.slane %v292, 4
        %v295 = vor.u32 %v294, %v290
        %v296 = vrot.slane %v295, 4
        %v298 = vshll.u32 %v259, 16
        %v300 = vrot.slane %v298, 5
        %v301 = vsel %vm277, %v296, %v300
        %v303 = vshrl.u32 %v229, 16
        %v305 = vrot.slane %v303, 4
        %v306 = vshll.u32 %v229, 16
        %v308 = vrot.slane %v306, 5
        %v309 = vor.u32 %v305, %v308
        %v310 = vrot.slane %v309, 4
        %v312 = vshll.u32 %v230, 16
        %v314 = vrot.slane %v312, 5
        %v315 = vsel %vm277, %v310, %v314
        %v316 = vshrl.u32 %v230, 16
        %v318 = vrot.slane %v316, 4
        %v319 = vor.u32 %v318, %v314
        %v320 = vrot.slane %v319, 4
        %v322 = vshll.u32 %v260, 16
        %v324 = vrot.slane %v322, 5
        %v325 = vsel %vm277, %v320, %v324
        %v327 = vshrl.u32 %v231, 16
        %v329 = vrot.slane %v327, 4
        %v330 = vshll.u32 %v231, 16
        %v332 = vrot.slane %v330, 5
        %v333 = vor.u32 %v329, %v332
        %v334 = vrot.slane %v333, 4
        %v336 = vshll.u32 %v232, 16
        %v338 = vrot.slane %v336, 5
        %v339 = vsel %vm277, %v334, %v338
        %v340 = vshrl.u32 %v232, 16
        %v342 = vrot.slane %v340, 4
        %v343 = vor.u32 %v342, %v338
        %v344 = vrot.slane %v343, 4
        %v346 = vshll.u32 %v261, 16
        %v348 = vrot.slane %v346, 5
        %v349 = vsel %vm277, %v344, %v348
        %v351 = vshrl.u32 %v233, 16
        %v353 = vrot.slane %v351, 4
        %v354 = vshll.u32 %v233, 16
        %v356 = vrot.slane %v354, 5
        %v357 = vor.u32 %v353, %v356
        %v358 = vrot.slane %v357, 4
        %v360 = vshll.u32 %v234, 16
        %v362 = vrot.slane %v360, 5
        %v363 = vsel %vm277, %v358, %v362
        %v364 = vshrl.u32 %v234, 16
        %v366 = vrot.slane %v364, 4
        %v367 = vor.u32 %v366, %v362
        %v368 = vrot.slane %v367, 4
        %v370 = vshll.u32 %v262, 16
        %v372 = vrot.slane %v370, 5
        %v373 = vsel %vm277, %v368, %v372
        %v375 = vshrl.u32 %v235, 16
        %v377 = vrot.slane %v375, 4
        %v378 = vshll.u32 %v235, 16
        %v380 = vrot.slane %v378, 5
        %v381 = vor.u32 %v377, %v380
        %v382 = vrot.slane %v381, 4
        %v384 = vshll.u32 %v236, 16
        %v386 = vrot.slane %v384, 5
        %v387 = vsel %vm277, %v382, %v386
        %v388 = vshrl.u32 %v236, 16
        %v390 = vrot.slane %v388, 4
        %v391 = vor.u32 %v390, %v386
        %v392 = vrot.slane %v391, 4
        %v394 = vshll.u32 %v263, 16
        %v396 = vrot.slane %v394, 5
        %v397 = vsel %vm277, %v392, %v396
        %v399 = vshrl.u32 %v237, 16
        %v401 = vrot.slane %v399, 4
        %v402 = vshll.u32 %v237, 16
        %v404 = vrot.slane %v402, 5
        %v405 = vor.u32 %v401, %v404
        %v406 = vrot.slane %v405, 4
        %v408 = vshll.u32 %v238, 16
        %v410 = vrot.slane %v408, 5
        %v411 = vsel %vm277, %v406, %v410
        %v412 = vshrl.u32 %v238, 16
        %v414 = vrot.slane %v412, 4
        %v415 = vor.u32 %v414, %v410
        %v416 = vrot.slane %v415, 4
        %v418 = vshll.u32 %v264, 16
        %v420 = vrot.slane %v418, 5
        %v421 = vsel %vm277, %v416, %v420
        %v423 = vshrl.u32 %v239, 16
        %v425 = vrot.slane %v423, 4
        %v426 = vshll.u32 %v239, 16
        %v428 = vrot.slane %v426, 5
        %v429 = vor.u32 %v425, %v428
        %v430 = vrot.slane %v429, 4
        %v432 = vshll.u32 %v240, 16
        %v434 = vrot.slane %v432, 5
        %v435 = vsel %vm277, %v430, %v434
        %v436 = vshrl.u32 %v240, 16
        %v438 = vrot.slane %v436, 4
        %v439 = vor.u32 %v438, %v434
        %v440 = vrot.slane %v439, 4
        %v442 = vshll.u32 %v265, 16
        %v444 = vrot.slane %v442, 5
        %v445 = vsel %vm277, %v440, %v444
        %v447 = vshrl.u32 %v241, 16
        %v449 = vrot.slane %v447, 4
        %v450 = vshll.u32 %v241, 16
        %v452 = vrot.slane %v450, 5
        %v453 = vor.u32 %v449, %v452
        %v454 = vrot.slane %v453, 4
        %v456 = vshll.u32 %v242, 16
        %v458 = vrot.slane %v456, 5
        %v459 = vsel %vm277, %v454, %v458
        %v460 = vshrl.u32 %v242, 16
        %v462 = vrot.slane %v460, 4
        %v463 = vor.u32 %v462, %v458
        %v464 = vrot.slane %v463, 4
        %v466 = vshll.u32 %v266, 16
        %v468 = vrot.slane %v466, 5
        %v469 = vsel %vm277, %v464, %v468
        %v471 = vshrl.u32 %v243, 16
        %v473 = vrot.slane %v471, 4
        %v474 = vshll.u32 %v243, 16
        %v476 = vrot.slane %v474, 5
        %v477 = vor.u32 %v473, %v476
        %v478 = vrot.slane %v477, 4
        %v480 = vshll.u32 %v244, 16
        %v482 = vrot.slane %v480, 5
        %v483 = vsel %vm277, %v478, %v482
        %v484 = vshrl.u32 %v244, 16
        %v486 = vrot.slane %v484, 4
        %v487 = vor.u32 %v486, %v482
        %v488 = vrot.slane %v487, 4
        %v490 = vshll.u32 %v267, 16
        %v492 = vrot.slane %v490, 5
        %v493 = vsel %vm277, %v488, %v492
        %v495 = vshrl.u32 %v245, 16
        %v497 = vrot.slane %v495, 4
        %v498 = vshll.u32 %v245, 16
        %v500 = vrot.slane %v498, 5
        %v501 = vor.u32 %v497, %v500
        %v502 = vrot.slane %v501, 4
        %v504 = vshll.u32 %v246, 16
        %v506 = vrot.slane %v504, 5
        %v507 = vsel %vm277, %v502, %v506
        %v508 = vshrl.u32 %v246, 16
        %v510 = vrot.slane %v508, 4
        %v511 = vor.u32 %v510, %v506
        %v512 = vrot.slane %v511, 4
        %v514 = vshll.u32 %v268, 16
        %v516 = vrot.slane %v514, 5
        %v517 = vsel %vm277, %v512, %v516
        %v519 = vshrl.u32 %v247, 16
        %v521 = vrot.slane %v519, 4
        %v522 = vshll.u32 %v247, 16
        %v524 = vrot.slane %v522, 5
        %v525 = vor.u32 %v521, %v524
        %v526 = vrot.slane %v525, 4
        %v528 = vshll.u32 %v248, 16
        %v530 = vrot.slane %v528, 5
        %v531 = vsel %vm277, %v526, %v530
        %v532 = vshrl.u32 %v248, 16
        %v534 = vrot.slane %v532, 4
        %v535 = vor.u32 %v534, %v530
        %v536 = vrot.slane %v535, 4
        %v538 = vshll.u32 %v269, 16
        %v540 = vrot.slane %v538, 5
        %v541 = vsel %vm277, %v536, %v540
        %v543 = vshrl.u32 %v249, 16
        %v545 = vrot.slane %v543, 4
        %v546 = vshll.u32 %v249, 16
        %v548 = vrot.slane %v546, 5
        %v549 = vor.u32 %v545, %v548
        %v550 = vrot.slane %v549, 4
        %v552 = vshll.u32 %v250, 16
        %v554 = vrot.slane %v552, 5
        %v555 = vsel %vm277, %v550, %v554
        %v556 = vshrl.u32 %v250, 16
        %v558 = vrot.slane %v556, 4
        %v559 = vor.u32 %v558, %v554
        %v560 = vrot.slane %v559, 4
        %v562 = vshll.u32 %v270, 16
        %v564 = vrot.slane %v562, 5
        %v565 = vsel %vm277, %v560, %v564
        %v567 = vshrl.u32 %v251, 16
        %v569 = vrot.slane %v567, 4
        %v570 = vshll.u32 %v251, 16
        %v572 = vrot.slane %v570, 5
        %v573 = vor.u32 %v569, %v572
        %v574 = vrot.slane %v573, 4
        %v576 = vshll.u32 %v252, 16
        %v578 = vrot.slane %v576, 5
        %v579 = vsel %vm277, %v574, %v578
        %v580 = vshrl.u32 %v252, 16
        %v582 = vrot.slane %v580, 4
        %v583 = vor.u32 %v582, %v578
        %v584 = vrot.slane %v583, 4
        %v586 = vshll.u32 %v271, 16
        %v588 = vrot.slane %v586, 5
        %v589 = vsel %vm277, %v584, %v588
        %v591 = vshrl.u32 %v253, 16
        %v593 = vrot.slane %v591, 4
        %v594 = vshll.u32 %v253, 16
        %v596 = vrot.slane %v594, 5
        %v597 = vor.u32 %v593, %v596
        %v598 = vrot.slane %v597, 4
        %v600 = vshll.u32 %v254, 16
        %v602 = vrot.slane %v600, 5
        %v603 = vsel %vm277, %v598, %v602
        %v604 = vshrl.u32 %v254, 16
        %v606 = vrot.slane %v604, 4
        %v607 = vor.u32 %v606, %v602
        %v608 = vrot.slane %v607, 4
        %v610 = vshll.u32 %v272, 16
        %v612 = vrot.slane %v610, 5
        %v613 = vsel %vm277, %v608, %v612
        %v615 = vshrl.u32 %v255, 16
        %v617 = vrot.slane %v615, 4
        %v618 = vshll.u32 %v255, 16
        %v620 = vrot.slane %v618, 5
        %v621 = vor.u32 %v617, %v620
        %v622 = vrot.slane %v621, 4
        %v624 = vshll.u32 %v256, 16
        %v626 = vrot.slane %v624, 5
        %v627 = vsel %vm277, %v622, %v626
        %v628 = vshrl.u32 %v256, 16
        %v630 = vrot.slane %v628, 4
        %v631 = vor.u32 %v630, %v626
        %v632 = vrot.slane %v631, 4
        %v634 = vshll.u32 %v273, 16
        %v636 = vrot.slane %v634, 5
        %v637 = vsel %vm277, %v632, %v636
        %v639 = vshrl.u32 %v257, 16
        %v641 = vrot.slane %v639, 4
        %v642 = vshll.u32 %v257, 16
        %v644 = vrot.slane %v642, 5
        %v645 = vor.u32 %v641, %v644
        %v646 = vrot.slane %v645, 4
        %v648 = vshll.u32 %v258, 16
        %v650 = vrot.slane %v648, 5
        %v651 = vsel %vm277, %v646, %v650
        %v652 = vshrl.u32 %v258, 16
        %v654 = vrot.slane %v652, 4
        %v655 = vor.u32 %v654, %v650
        %v656 = vrot.slane %v655, 4
        %v658 = vshll.u32 %v274, 16
        %v660 = vrot.slane %v658, 5
        %v661 = vsel %vm277, %v656, %v660
        %v662 = vunpack.c.l.b16 %v291
        %v663 = vunpack.c.l.b16 %v301
        %v664 = vunpack.c.l.b16 %v315
        %v665 = vunpack.c.l.b16 %v325
        %v666 = vunpack.c.l.b16 %v339
        %v667 = vunpack.c.l.b16 %v349
        %v668 = vunpack.c.l.b16 %v363
        %v669 = vunpack.c.l.b16 %v373
        %v670 = vunpack.c.l.b16 %v387
        %v671 = vunpack.c.l.b16 %v397
        %v672 = vunpack.c.l.b16 %v411
        %v673 = vunpack.c.l.b16 %v421
        %v674 = vunpack.c.l.b16 %v435
        %v675 = vunpack.c.l.b16 %v445
        %v676 = vunpack.c.l.b16 %v459
        %v677 = vunpack.c.l.b16 %v469
        %v678 = vunpack.c.l.b16 %v483
        %v679 = vunpack.c.l.b16 %v493
        %v680 = vunpack.c.l.b16 %v507
        %v681 = vunpack.c.l.b16 %v517
        %v682 = vunpack.c.l.b16 %v531
        %v683 = vunpack.c.l.b16 %v541
        %v684 = vunpack.c.l.b16 %v555
        %v685 = vunpack.c.l.b16 %v565
        %v686 = vunpack.c.l.b16 %v579
        %v687 = vunpack.c.l.b16 %v589
        %v688 = vunpack.c.l.b16 %v603
        %v689 = vunpack.c.l.b16 %v613
        %v690 = vunpack.c.l.b16 %v627
        %v691 = vunpack.c.l.b16 %v637
        %v692 = vunpack.c.l.b16 %v651
        %v693 = vunpack.c.l.b16 %v661
        %v694 = vpack.c.b16 %v663, %v662
        %v695 = vpack.c.b16 %v665, %v664
        %v696 = vpack.c.b16 %v667, %v666
        %v697 = vpack.c.b16 %v669, %v668
        %v698 = vpack.c.b16 %v671, %v670
        %v699 = vpack.c.b16 %v673, %v672
        %v700 = vpack.c.b16 %v675, %v674
        %v701 = vpack.c.b16 %v677, %v676
        %v702 = vpack.c.b16 %v679, %v678
        %v703 = vpack.c.b16 %v681, %v680
        %v704 = vpack.c.b16 %v683, %v682
        %v705 = vpack.c.b16 %v685, %v684
        %v706 = vpack.c.b16 %v687, %v686
        %v707 = vpack.c.b16 %v689, %v688
        %v708 = vpack.c.b16 %v691, %v690
        %v709 = vpack.c.b16 %v693, %v692
        %vm710 = vcmask 31744
        %v712 = vsel %vm710, %v694, 0
        %v715 = vsel %vm710, %v695, 0
        %v718 = vsel %vm710, %v696, 0
        %v721 = vsel %vm710, %v697, 0
        %v724 = vsel %vm710, %v698, 0
        %v727 = vsel %vm710, %v699, 0
        %v730 = vsel %vm710, %v700, 0
        %v733 = vsel %vm710, %v701, 0
        %v736 = vsel %vm710, %v702, 0
        %v739 = vsel %vm710, %v703, 0
        %v742 = vsel %vm710, %v704, 0
        %v745 = vsel %vm710, %v705, 0
        %v748 = vsel %vm710, %v706, 0
        %v751 = vsel %vm710, %v707, 0
        %v754 = vsel %vm710, %v708, 0
        %v757 = vsel %vm710, %v709, 0
        %vm759 = vcmask 1041408
        %v761 = vsel %vm759, %v219, 0
        %763 = vmatprep.subr.bf16.mxu0 0
        %764 = vmatpush1.bf16.msra.mxu0 %v761
        %765 = vmatprep.subr.bf16.mxu0 0
        %766 = vmatpush1.bf16.msra.mxu0 0
        %767 = vmatprep.subr.bf16.mxu0 0
        %768 = vmatpush1.bf16.msra.mxu0 0
        %769 = vmatprep.subr.bf16.mxu0 0
        %770 = vmatpush1.bf16.msra.mxu0 0
        %771 = vmatprep.subr.bf16.mxu0 0
        %772 = vmatpush1.bf16.msra.mxu0 0
        %773 = vmatprep.subr.bf16.mxu0 0
        %774 = vmatpush1.bf16.msra.mxu0 0
        %775 = vmatprep.subr.bf16.mxu0 0
        %776 = vmatpush1.bf16.msra.mxu0 0
        %777 = vmatprep.subr.bf16.mxu0 0
        %778 = vmatpush1.bf16.msra.mxu0 0
        %779 = vmatprep.subr.bf16.mxu0 0
        %780 = vmatpush1.bf16.msra.mxu0 0
        %781 = vmatprep.subr.bf16.mxu0 0
        %782 = vmatpush1.bf16.msra.mxu0 0
        %783 = vmatprep.subr.bf16.mxu0 0
        %784 = vmatpush1.bf16.msra.mxu0 0
        %785 = vmatprep.subr.bf16.mxu0 0
        %786 = vmatpush1.bf16.msra.mxu0 0
        %787 = vmatprep.subr.bf16.mxu0 0
        %788 = vmatpush1.bf16.msra.mxu0 0
        %789 = vmatprep.subr.bf16.mxu0 0
        %790 = vmatpush1.bf16.msra.mxu0 0
        %791 = vmatprep.subr.bf16.mxu0 0
        %792 = vmatpush1.bf16.msra.mxu0 0
        %793 = vmatprep.subr.bf16.mxu0 0
        %794 = vmatpush1.bf16.msra.mxu0 0
        %795 = vmatprep.mubr.bf16.mxu0 0
        %796 = vmatmul.mubr.bf16.gmra.mrb[0].mxu0 %v712
        %v797 = vpop.f32.mrb[0].mxu0
        %v798 = vadd.f32 0.0, %v797
        %v799 = vpop.f32.mrb[0].mxu0
        %v800 = vpop.f32.mrb[0].mxu0
        %v801 = vadd.f32 0.0, %v800
        %v802 = vpop.f32.mrb[0].mxu0
        %803 = vmatprep.mubr.bf16.mxu0 0
        %804 = vmatmul.mubr.bf16.gmra.mrb[0].mxu0 %v715
        %v805 = vpop.f32.mrb[0].mxu0
        %v806 = vadd.f32 0.0, %v805
        %v807 = vpop.f32.mrb[0].mxu0
        %v808 = vpop.f32.mrb[0].mxu0
        %v809 = vadd.f32 0.0, %v808
        %v810 = vpop.f32.mrb[0].mxu0
        %811 = vmatprep.mubr.bf16.mxu0 0
        %812 = vmatmul.mubr.bf16.gmra.mrb[0].mxu0 %v718
        %v813 = vpop.f32.mrb[0].mxu0
        %v814 = vadd.f32 0.0, %v813
        %v815 = vpop.f32.mrb[0].mxu0
        %v816 = vpop.f32.mrb[0].mxu0
        %v817 = vadd.f32 0.0, %v816
        %v818 = vpop.f32.mrb[0].mxu0
        %819 = vmatprep.mubr.bf16.mxu0 0
        %820 = vmatmul.mubr.bf16.gmra.mrb[0].mxu0 %v721
        %v821 = vpop.f32.mrb[0].mxu0
        %v822 = vadd.f32 0.0, %v821
        %v823 = vpop.f32.mrb[0].mxu0
        %v824 = vpop.f32.mrb[0].mxu0
        %v825 = vadd.f32 0.0, %v824
        %v826 = vpop.f32.mrb[0].mxu0
        %827 = vmatprep.mubr.bf16.mxu0 0
        %828 = vmatmul.mubr.bf16.gmra.mrb[0].mxu0 %v724
        %v829 = vpop.f32.mrb[0].mxu0
        %v830 = vadd.f32 0.0, %v829
        %v831 = vpop.f32.mrb[0].mxu0
        %v832 = vpop.f32.mrb[0].mxu0
        %v833 = vadd.f32 0.0, %v832
        %v834 = vpop.f32.mrb[0].mxu0
        %835 = vmatprep.mubr.bf16.mxu0 0
        %836 = vmatmul.mubr.bf16.gmra.mrb[0].mxu0 %v727
        %v837 = vpop.f32.mrb[0].mxu0
        %v838 = vadd.f32 0.0, %v837
        %v839 = vpop.f32.mrb[0].mxu0
        %v840 = vpop.f32.mrb[0].mxu0
        %v841 = vadd.f32 0.0, %v840
        %v842 = vpop.f32.mrb[0].mxu0
        %843 = vmatprep.mubr.bf16.mxu0 0
        %844 = vmatmul.mubr.bf16.gmra.mrb[0].mxu0 %v730
        %v845 = vpop.f32.mrb[0].mxu0
        %v846 = vadd.f32 0.0, %v845
        %v847 = vpop.f32.mrb[0].mxu0
        %v848 = vpop.f32.mrb[0].mxu0
        %v849 = vadd.f32 0.0, %v848
        %v850 = vpop.f32.mrb[0].mxu0
        %851 = vmatprep.mubr.bf16.mxu0 0
        %852 = vmatmul.mubr.bf16.gmra.mrb[0].mxu0 %v733
        %v853 = vpop.f32.mrb[0].mxu0
        %v854 = vadd.f32 0.0, %v853
        %v855 = vpop.f32.mrb[0].mxu0
        %v856 = vpop.f32.mrb[0].mxu0
        %v857 = vadd.f32 0.0, %v856
        %v858 = vpop.f32.mrb[0].mxu0
        %859 = vmatprep.mubr.bf16.mxu0 0
        %860 = vmatmul.mubr.bf16.gmra.mrb[0].mxu0 %v736
        %v861 = vpop.f32.mrb[0].mxu0
        %v862 = vadd.f32 0.0, %v861
        %v863 = vpop.f32.mrb[0].mxu0
        %v864 = vpop.f32.mrb[0].mxu0
        %v865 = vadd.f32 0.0, %v864
        %v866 = vpop.f32.mrb[0].mxu0
        %867 = vmatprep.mubr.bf16.mxu0 0
        %868 = vmatmul.mubr.bf16.gmra.mrb[0].mxu0 %v739
        %v869 = vpop.f32.mrb[0].mxu0
        %v870 = vadd.f32 0.0, %v869
        %v871 = vpop.f32.mrb[0].mxu0
        %v872 = vpop.f32.mrb[0].mxu0
        %v873 = vadd.f32 0.0, %v872
        %v874 = vpop.f32.mrb[0].mxu0
        %875 = vmatprep.mubr.bf16.mxu0 0
        %876 = vmatmul.mubr.bf16.gmra.mrb[0].mxu0 %v742
        %v877 = vpop.f32.mrb[0].mxu0
        %v878 = vadd.f32 0.0, %v877
        %v879 = vpop.f32.mrb[0].mxu0
        %v880 = vpop.f32.mrb[0].mxu0
        %v881 = vadd.f32 0.0, %v880
        %v882 = vpop.f32.mrb[0].mxu0
        %883 = vmatprep.mubr.bf16.mxu0 0
        %884 = vmatmul.mubr.bf16.gmra.mrb[0].mxu0 %v745
        %v885 = vpop.f32.mrb[0].mxu0
        %v886 = vadd.f32 0.0, %v885
        %v887 = vpop.f32.mrb[0].mxu0
        %v888 = vpop.f32.mrb[0].mxu0
        %v889 = vadd.f32 0.0, %v888
        %v890 = vpop.f32.mrb[0].mxu0
        %891 = vmatprep.mubr.bf16.mxu0 0
        %892 = vmatmul.mubr.bf16.gmra.mrb[0].mxu0 %v748
        %v893 = vpop.f32.mrb[0].mxu0
        %v894 = vadd.f32 0.0, %v893
        %v895 = vpop.f32.mrb[0].mxu0
        %v896 = vpop.f32.mrb[0].mxu0
        %v897 = vadd.f32 0.0, %v896
        %v898 = vpop.f32.mrb[0].mxu0
        %899 = vmatprep.mubr.bf16.mxu0 0
        %900 = vmatmul.mubr.bf16.gmra.mrb[0].mxu0 %v751
        %v901 = vpop.f32.mrb[0].mxu0
        %v902 = vadd.f32 0.0, %v901
        %v903 = vpop.f32.mrb[0].mxu0
        %v904 = vpop.f32.mrb[0].mxu0
        %v905 = vadd.f32 0.0, %v904
        %v906 = vpop.f32.mrb[0].mxu0
        %907 = vmatprep.mubr.bf16.mxu0 0
        %908 = vmatmul.mubr.bf16.gmra.mrb[0].mxu0 %v754
        %v909 = vpop.f32.mrb[0].mxu0
        %v910 = vadd.f32 0.0, %v909
        %v911 = vpop.f32.mrb[0].mxu0
        %v912 = vpop.f32.mrb[0].mxu0
        %v913 = vadd.f32 0.0, %v912
        %v914 = vpop.f32.mrb[0].mxu0
        %915 = vmatprep.mubr.bf16.mxu0 0
        %916 = vmatmul.mubr.bf16.gmra.mrb[0].mxu0 %v757
        %v917 = vpop.f32.mrb[0].mxu0
        %v918 = vadd.f32 0.0, %v917
        %v919 = vpop.f32.mrb[0].mxu0
        %v920 = vpop.f32.mrb[0].mxu0
        %v921 = vadd.f32 0.0, %v920
        %v922 = vpop.f32.mrb[0].mxu0
        %923 = vdwg.mxu0
        %v956 = vunpack.c.l.b16 %v227
        %v957 = vunpack.c.l.b16 %v228
        %v958 = vunpack.c.l.b16 %v229
        %v959 = vunpack.c.l.b16 %v230
        %v960 = vunpack.c.l.b16 %v231
        %v961 = vunpack.c.l.b16 %v232
        %v962 = vunpack.c.l.b16 %v233
        %v963 = vunpack.c.l.b16 %v234
        %v964 = vunpack.c.l.b16 %v235
        %v965 = vunpack.c.l.b16 %v236
        %v966 = vunpack.c.l.b16 %v237
        %v967 = vunpack.c.l.b16 %v238
        %v968 = vunpack.c.l.b16 %v239
        %v969 = vunpack.c.l.b16 %v240
        %v970 = vunpack.c.l.b16 %v241
        %v971 = vunpack.c.l.b16 %v242
        %v972 = vunpack.c.l.b16 %v243
        %v973 = vunpack.c.l.b16 %v244
        %v974 = vunpack.c.l.b16 %v245
        %v975 = vunpack.c.l.b16 %v246
        %v976 = vunpack.c.l.b16 %v247
        %v977 = vunpack.c.l.b16 %v248
        %v978 = vunpack.c.l.b16 %v249
        %v979 = vunpack.c.l.b16 %v250
        %v980 = vunpack.c.l.b16 %v251
        %v981 = vunpack.c.l.b16 %v252
        %v982 = vunpack.c.l.b16 %v253
        %v983 = vunpack.c.l.b16 %v254
        %v984 = vunpack.c.l.b16 %v255
        %v985 = vunpack.c.l.b16 %v256
        %v986 = vunpack.c.l.b16 %v257
        %v987 = vunpack.c.l.b16 %v258
        %v988 = vpack.c.b16 %v957, %v956
        %v989 = vpack.c.b16 %v959, %v958
        %v990 = vpack.c.b16 %v961, %v960
        %v991 = vpack.c.b16 %v963, %v962
        %v992 = vpack.c.b16 %v965, %v964
        %v993 = vpack.c.b16 %v967, %v966
        %v994 = vpack.c.b16 %v969, %v968
        %v995 = vpack.c.b16 %v971, %v970
        %v996 = vpack.c.b16 %v973, %v972
        %v997 = vpack.c.b16 %v975, %v974
        %v998 = vpack.c.b16 %v977, %v976
        %v999 = vpack.c.b16 %v979, %v978
        %v1000 = vpack.c.b16 %v981, %v980
        %v1001 = vpack.c.b16 %v983, %v982
        %v1002 = vpack.c.b16 %v985, %v984
        %v1003 = vpack.c.b16 %v987, %v986
        %v1005 = vsel %vm710, %v988, 0
        %v1008 = vsel %vm710, %v989, 0
        %v1011 = vsel %vm710, %v990, 0
        %v1014 = vsel %vm710, %v991, 0
        %v1017 = vsel %vm710, %v992, 0
        %v1020 = vsel %vm710, %v993, 0
        %v1023 = vsel %vm710, %v994, 0
        %v1026 = vsel %vm710, %v995, 0
        %v1029 = vsel %vm710, %v996, 0
        %v1032 = vsel %vm710, %v997, 0
        %v1035 = vsel %vm710, %v998, 0
        %v1038 = vsel %vm710, %v999, 0
        %v1041 = vsel %vm710, %v1000, 0
        %v1044 = vsel %vm710, %v1001, 0
        %v1047 = vsel %vm710, %v1002, 0
        %v1050 = vsel %vm710, %v1003, 0
        %v1053 = vsel %vm759, %v218, 0
        %1055 = vmatprep.subr.bf16.mxu0 0
        %1056 = vmatpush1.bf16.msra.mxu0 %v1053
        %1057 = vmatprep.subr.bf16.mxu0 0
        %1058 = vmatpush1.bf16.msra.mxu0 0
        %1059 = vmatprep.subr.bf16.mxu0 0
        %1060 = vmatpush1.bf16.msra.mxu0 0
        %1061 = vmatprep.subr.bf16.mxu0 0
        %1062 = vmatpush1.bf16.msra.mxu0 0
        %1063 = vmatprep.subr.bf16.mxu0 0
        %1064 = vmatpush1.bf16.msra.mxu0 0
        %1065 = vmatprep.subr.bf16.mxu0 0
        %1066 = vmatpush1.bf16.msra.mxu0 0
        %1067 = vmatprep.subr.bf16.mxu0 0
        %1068 = vmatpush1.bf16.msra.mxu0 0
        %1069 = vmatprep.subr.bf16.mxu0 0
        %1070 = vmatpush1.bf16.msra.mxu0 0
        %1071 = vmatprep.subr.bf16.mxu0 0
        %1072 = vmatpush1.bf16.msra.mxu0 0
        %1073 = vmatprep.subr.bf16.mxu0 0
        %1074 = vmatpush1.bf16.msra.mxu0 0
        %1075 = vmatprep.subr.bf16.mxu0 0
        %1076 = vmatpush1.bf16.msra.mxu0 0
        %1077 = vmatprep.subr.bf16.mxu0 0
        %1078 = vmatpush1.bf16.msra.mxu0 0
        %1079 = vmatprep.subr.bf16.mxu0 0
        %1080 = vmatpush1.bf16.msra.mxu0 0
        %1081 = vmatprep.subr.bf16.mxu0 0
        %1082 = vmatpush1.bf16.msra.mxu0 0
        %1083 = vmatprep.subr.bf16.mxu0 0
        %1084 = vmatpush1.bf16.msra.mxu0 0
        %1085 = vmatprep.subr.bf16.mxu0 0
        %1086 = vmatpush1.bf16.msra.mxu0 0
        %1087 = vmatprep.mubr.bf16.mxu0 0
        %1088 = vmatmul.mubr.bf16.gmra.mrb[0].mxu0 %v1005
        %v1089 = vpop.f32.mrb[0].mxu0
        %v1090 = vadd.f32 %v798, %v1089
        %v1091 = vpop.f32.mrb[0].mxu0
        %v1092 = vpop.f32.mrb[0].mxu0
        %v1093 = vadd.f32 %v801, %v1092
        %v1094 = vpop.f32.mrb[0].mxu0
        %1095 = vmatprep.mubr.bf16.mxu0 0
        %1096 = vmatmul.mubr.bf16.gmra.mrb[0].mxu0 %v1008
        %v1097 = vpop.f32.mrb[0].mxu0
        %v1098 = vadd.f32 %v806, %v1097
        %v1099 = vpop.f32.mrb[0].mxu0
        %v1100 = vpop.f32.mrb[0].mxu0
        %v1101 = vadd.f32 %v809, %v1100
        %v1102 = vpop.f32.mrb[0].mxu0
        %1103 = vmatprep.mubr.bf16.mxu0 0
        %1104 = vmatmul.mubr.bf16.gmra.mrb[0].mxu0 %v1011
        %v1105 = vpop.f32.mrb[0].mxu0
        %v1106 = vadd.f32 %v814, %v1105
        %v1107 = vpop.f32.mrb[0].mxu0
        %v1108 = vpop.f32.mrb[0].mxu0
        %v1109 = vadd.f32 %v817, %v1108
        %v1110 = vpop.f32.mrb[0].mxu0
        %1111 = vmatprep.mubr.bf16.mxu0 0
        %1112 = vmatmul.mubr.bf16.gmra.mrb[0].mxu0 %v1014
        %v1113 = vpop.f32.mrb[0].mxu0
        %v1114 = vadd.f32 %v822, %v1113
        %v1115 = vpop.f32.mrb[0].mxu0
        %v1116 = vpop.f32.mrb[0].mxu0
        %v1117 = vadd.f32 %v825, %v1116
        %v1118 = vpop.f32.mrb[0].mxu0
        %1119 = vmatprep.mubr.bf16.mxu0 0
        %1120 = vmatmul.mubr.bf16.gmra.mrb[0].mxu0 %v1017
        %v1121 = vpop.f32.mrb[0].mxu0
        %v1122 = vadd.f32 %v830, %v1121
        %v1123 = vpop.f32.mrb[0].mxu0
        %v1124 = vpop.f32.mrb[0].mxu0
        %v1125 = vadd.f32 %v833, %v1124
        %v1126 = vpop.f32.mrb[0].mxu0
        %1127 = vmatprep.mubr.bf16.mxu0 0
        %1128 = vmatmul.mubr.bf16.gmra.mrb[0].mxu0 %v1020
        %v1129 = vpop.f32.mrb[0].mxu0
        %v1130 = vadd.f32 %v838, %v1129
        %v1131 = vpop.f32.mrb[0].mxu0
        %v1132 = vpop.f32.mrb[0].mxu0
        %v1133 = vadd.f32 %v841, %v1132
        %v1134 = vpop.f32.mrb[0].mxu0
        %1135 = vmatprep.mubr.bf16.mxu0 0
        %1136 = vmatmul.mubr.bf16.gmra.mrb[0].mxu0 %v1023
        %v1137 = vpop.f32.mrb[0].mxu0
        %v1138 = vadd.f32 %v846, %v1137
        %v1139 = vpop.f32.mrb[0].mxu0
        %v1140 = vpop.f32.mrb[0].mxu0
        %v1141 = vadd.f32 %v849, %v1140
        %v1142 = vpop.f32.mrb[0].mxu0
        %1143 = vmatprep.mubr.bf16.mxu0 0
        %1144 = vmatmul.mubr.bf16.gmra.mrb[0].mxu0 %v1026
        %v1145 = vpop.f32.mrb[0].mxu0
        %v1146 = vadd.f32 %v854, %v1145
        %v1147 = vpop.f32.mrb[0].mxu0
        %v1148 = vpop.f32.mrb[0].mxu0
        %v1149 = vadd.f32 %v857, %v1148
        %v1150 = vpop.f32.mrb[0].mxu0
        %1151 = vmatprep.mubr.bf16.mxu0 0
        %1152 = vmatmul.mubr.bf16.gmra.mrb[0].mxu0 %v1029
        %v1153 = vpop.f32.mrb[0].mxu0
        %v1154 = vadd.f32 %v862, %v1153
        %v1155 = vpop.f32.mrb[0].mxu0
        %v1156 = vpop.f32.mrb[0].mxu0
        %v1157 = vadd.f32 %v865, %v1156
        %v1158 = vpop.f32.mrb[0].mxu0
        %1159 = vmatprep.mubr.bf16.mxu0 0
        %1160 = vmatmul.mubr.bf16.gmra.mrb[0].mxu0 %v1032
        %v1161 = vpop.f32.mrb[0].mxu0
        %v1162 = vadd.f32 %v870, %v1161
        %v1163 = vpop.f32.mrb[0].mxu0
        %v1164 = vpop.f32.mrb[0].mxu0
        %v1165 = vadd.f32 %v873, %v1164
        %v1166 = vpop.f32.mrb[0].mxu0
        %1167 = vmatprep.mubr.bf16.mxu0 0
        %1168 = vmatmul.mubr.bf16.gmra.mrb[0].mxu0 %v1035
        %v1169 = vpop.f32.mrb[0].mxu0
        %v1170 = vadd.f32 %v878, %v1169
        %v1171 = vpop.f32.mrb[0].mxu0
        %v1172 = vpop.f32.mrb[0].mxu0
        %v1173 = vadd.f32 %v881, %v1172
        %v1174 = vpop.f32.mrb[0].mxu0
        %1175 = vmatprep.mubr.bf16.mxu0 0
        %1176 = vmatmul.mubr.bf16.gmra.mrb[0].mxu0 %v1038
        %v1177 = vpop.f32.mrb[0].mxu0
        %v1178 = vadd.f32 %v886, %v1177
        %v1179 = vpop.f32.mrb[0].mxu0
        %v1180 = vpop.f32.mrb[0].mxu0
        %v1181 = vadd.f32 %v889, %v1180
        %v1182 = vpop.f32.mrb[0].mxu0
        %1183 = vmatprep.mubr.bf16.mxu0 0
        %1184 = vmatmul.mubr.bf16.gmra.mrb[0].mxu0 %v1041
        %v1185 = vpop.f32.mrb[0].mxu0
        %v1186 = vadd.f32 %v894, %v1185
        %v1187 = vpop.f32.mrb[0].mxu0
        %v1188 = vpop.f32.mrb[0].mxu0
        %v1189 = vadd.f32 %v897, %v1188
        %v1190 = vpop.f32.mrb[0].mxu0
        %1191 = vmatprep.mubr.bf16.mxu0 0
        %1192 = vmatmul.mubr.bf16.gmra.mrb[0].mxu0 %v1044
        %v1193 = vpop.f32.mrb[0].mxu0
        %v1194 = vadd.f32 %v902, %v1193
        %v1195 = vpop.f32.mrb[0].mxu0
        %v1196 = vpop.f32.mrb[0].mxu0
        %v1197 = vadd.f32 %v905, %v1196
        %v1198 = vpop.f32.mrb[0].mxu0
        %1199 = vmatprep.mubr.bf16.mxu0 0
        %1200 = vmatmul.mubr.bf16.gmra.mrb[0].mxu0 %v1047
        %v1201 = vpop.f32.mrb[0].mxu0
        %v1202 = vadd.f32 %v910, %v1201
        %v1203 = vpop.f32.mrb[0].mxu0
        %v1204 = vpop.f32.mrb[0].mxu0
        %v1205 = vadd.f32 %v913, %v1204
        %v1206 = vpop.f32.mrb[0].mxu0
        %1207 = vmatprep.mubr.bf16.mxu0 0
        %1208 = vmatmul.mubr.bf16.gmra.mrb[0].mxu0 %v1050
        %v1209 = vpop.f32.mrb[0].mxu0
        %v1210 = vadd.f32 %v918, %v1209
        %v1211 = vpop.f32.mrb[0].mxu0
        %v1212 = vpop.f32.mrb[0].mxu0
        %v1213 = vadd.f32 %v921, %v1212
        %v1214 = vpop.f32.mrb[0].mxu0
        %1215 = vdwg.mxu0
        %v1216 = vld [vmem:[%s211] sm:$0xe]
        %v1217 = vld [vmem:[%s211 + $0xc] sm:$0xe]
        %v1218 = vld [vmem:[%s211 + $0x18] sm:$0xe]
        %v1219 = vld [vmem:[%s211 + $0x24] sm:$0xe]
        %v1220 = vld [vmem:[%s211 + $0x30] sm:$0xe]
        %v1221 = vld [vmem:[%s211 + $0x3c] sm:$0xe]
        %v1222 = vld [vmem:[%s211 + $0x48] sm:$0xe]
        %v1223 = vld [vmem:[%s211 + $0x54] sm:$0xe]
        %v1224 = vld [vmem:[%s211 + $0x60] sm:$0xe]
        %v1225 = vld [vmem:[%s211 + $0x6c] sm:$0xe]
        %v1226 = vld [vmem:[%s211 + $0x78] sm:$0xe]
        %v1227 = vld [vmem:[%s211 + $0x84] sm:$0xe]
        %v1228 = vld [vmem:[%s211 + $0x90] sm:$0xe]
        %v1229 = vld [vmem:[%s211 + $0x9c] sm:$0xe]
        %v1230 = vld [vmem:[%s211 + $0xa8] sm:$0xe]
        %v1231 = vld [vmem:[%s211 + $0xb4] sm:$0xe]
        %vm1264 = vcmask 1042432
        %vm1265 = vcmask 1046532
        %vm1266 = vmor %vm1264, %vm1265
        %v1267 = vrot.slane %v1216, 5
        %v1268 = vrot.slane %v1267, 4
        %v1269 = vrot.slane %v228, 5
        %v1270 = vsel %vm1266, %v1268, %v1269
        %v1271 = vrot.slane %v1269, 4
        %v1272 = vrot.slane %v259, 5
        %v1273 = vsel %vm1266, %v1271, %v1272
        %v1274 = vrot.slane %v1217, 5
        %v1275 = vrot.slane %v1274, 4
        %v1276 = vrot.slane %v230, 5
        %v1277 = vsel %vm1266, %v1275, %v1276
        %v1278 = vrot.slane %v1276, 4
        %v1279 = vrot.slane %v260, 5
        %v1280 = vsel %vm1266, %v1278, %v1279
        %v1281 = vrot.slane %v1218, 5
        %v1282 = vrot.slane %v1281, 4
        %v1283 = vrot.slane %v232, 5
        %v1284 = vsel %vm1266, %v1282, %v1283
        %v1285 = vrot.slane %v1283, 4
        %v1286 = vrot.slane %v261, 5
        %v1287 = vsel %vm1266, %v1285, %v1286
        %v1288 = vrot.slane %v1219, 5
        %v1289 = vrot.slane %v1288, 4
        %v1290 = vrot.slane %v234, 5
        %v1291 = vsel %vm1266, %v1289, %v1290
        %v1292 = vrot.slane %v1290, 4
        %v1293 = vrot.slane %v262, 5
        %v1294 = vsel %vm1266, %v1292, %v1293
        %v1295 = vrot.slane %v1220, 5
        %v1296 = vrot.slane %v1295, 4
        %v1297 = vrot.slane %v236, 5
        %v1298 = vsel %vm1266, %v1296, %v1297
        %v1299 = vrot.slane %v1297, 4
        %v1300 = vrot.slane %v263, 5
        %v1301 = vsel %vm1266, %v1299, %v1300
        %v1302 = vrot.slane %v1221, 5
        %v1303 = vrot.slane %v1302, 4
        %v1304 = vrot.slane %v238, 5
        %v1305 = vsel %vm1266, %v1303, %v1304
        %v1306 = vrot.slane %v1304, 4
        %v1307 = vrot.slane %v264, 5
        %v1308 = vsel %vm1266, %v1306, %v1307
        %v1309 = vrot.slane %v1222, 5
        %v1310 = vrot.slane %v1309, 4
        %v1311 = vrot.slane %v240, 5
        %v1312 = vsel %vm1266, %v1310, %v1311
        %v1313 = vrot.slane %v1311, 4
        %v1314 = vrot.slane %v265, 5
        %v1315 = vsel %vm1266, %v1313, %v1314
        %v1316 = vrot.slane %v1223, 5
        %v1317 = vrot.slane %v1316, 4
        %v1318 = vrot.slane %v242, 5
        %v1319 = vsel %vm1266, %v1317, %v1318
        %v1320 = vrot.slane %v1318, 4
        %v1321 = vrot.slane %v266, 5
        %v1322 = vsel %vm1266, %v1320, %v1321
        %v1323 = vrot.slane %v1224, 5
        %v1324 = vrot.slane %v1323, 4
        %v1325 = vrot.slane %v244, 5
        %v1326 = vsel %vm1266, %v1324, %v1325
        %v1327 = vrot.slane %v1325, 4
        %v1328 = vrot.slane %v267, 5
        %v1329 = vsel %vm1266, %v1327, %v1328
        %v1330 = vrot.slane %v1225, 5
        %v1331 = vrot.slane %v1330, 4
        %v1332 = vrot.slane %v246, 5
        %v1333 = vsel %vm1266, %v1331, %v1332
        %v1334 = vrot.slane %v1332, 4
        %v1335 = vrot.slane %v268, 5
        %v1336 = vsel %vm1266, %v1334, %v1335
        %v1337 = vrot.slane %v1226, 5
        %v1338 = vrot.slane %v1337, 4
        %v1339 = vrot.slane %v248, 5
        %v1340 = vsel %vm1266, %v1338, %v1339
        %v1341 = vrot.slane %v1339, 4
        %v1342 = vrot.slane %v269, 5
        %v1343 = vsel %vm1266, %v1341, %v1342
        %v1344 = vrot.slane %v1227, 5
        %v1345 = vrot.slane %v1344, 4
        %v1346 = vrot.slane %v250, 5
        %v1347 = vsel %vm1266, %v1345, %v1346
        %v1348 = vrot.slane %v1346, 4
        %v1349 = vrot.slane %v270, 5
        %v1350 = vsel %vm1266, %v1348, %v1349
        %v1351 = vrot.slane %v1228, 5
        %v1352 = vrot.slane %v1351, 4
        %v1353 = vrot.slane %v252, 5
        %v1354 = vsel %vm1266, %v1352, %v1353
        %v1355 = vrot.slane %v1353, 4
        %v1356 = vrot.slane %v271, 5
        %v1357 = vsel %vm1266, %v1355, %v1356
        %v1358 = vrot.slane %v1229, 5
        %v1359 = vrot.slane %v1358, 4
        %v1360 = vrot.slane %v254, 5
        %v1361 = vsel %vm1266, %v1359, %v1360
        %v1362 = vrot.slane %v1360, 4
        %v1363 = vrot.slane %v272, 5
        %v1364 = vsel %vm1266, %v1362, %v1363
        %v1365 = vrot.slane %v1230, 5
        %v1366 = vrot.slane %v1365, 4
        %v1367 = vrot.slane %v256, 5
        %v1368 = vsel %vm1266, %v1366, %v1367
        %v1369 = vrot.slane %v1367, 4
        %v1370 = vrot.slane %v273, 5
        %v1371 = vsel %vm1266, %v1369, %v1370
        %v1372 = vrot.slane %v1231, 5
        %v1373 = vrot.slane %v1372, 4
        %v1374 = vrot.slane %v258, 5
        %v1375 = vsel %vm1266, %v1373, %v1374
        %v1376 = vrot.slane %v1374, 4
        %v1377 = vrot.slane %v274, 5
        %v1378 = vsel %vm1266, %v1376, %v1377
        %v1379 = vunpack.c.l.b16 %v1270
        %v1380 = vunpack.c.l.b16 %v1273
        %v1381 = vunpack.c.l.b16 %v1277
        %v1382 = vunpack.c.l.b16 %v1280
        %v1383 = vunpack.c.l.b16 %v1284
        %v1384 = vunpack.c.l.b16 %v1287
        %v1385 = vunpack.c.l.b16 %v1291
        %v1386 = vunpack.c.l.b16 %v1294
        %v1387 = vunpack.c.l.b16 %v1298
        %v1388 = vunpack.c.l.b16 %v1301
        %v1389 = vunpack.c.l.b16 %v1305
        %v1390 = vunpack.c.l.b16 %v1308
        %v1391 = vunpack.c.l.b16 %v1312
        %v1392 = vunpack.c.l.b16 %v1315
        %v1393 = vunpack.c.l.b16 %v1319
        %v1394 = vunpack.c.l.b16 %v1322
        %v1395 = vunpack.c.l.b16 %v1326
        %v1396 = vunpack.c.l.b16 %v1329
        %v1397 = vunpack.c.l.b16 %v1333
        %v1398 = vunpack.c.l.b16 %v1336
        %v1399 = vunpack.c.l.b16 %v1340
        %v1400 = vunpack.c.l.b16 %v1343
        %v1401 = vunpack.c.l.b16 %v1347
        %v1402 = vunpack.c.l.b16 %v1350
        %v1403 = vunpack.c.l.b16 %v1354
        %v1404 = vunpack.c.l.b16 %v1357
        %v1405 = vunpack.c.l.b16 %v1361
        %v1406 = vunpack.c.l.b16 %v1364
        %v1407 = vunpack.c.l.b16 %v1368
        %v1408 = vunpack.c.l.b16 %v1371
        %v1409 = vunpack.c.l.b16 %v1375
        %v1410 = vunpack.c.l.b16 %v1378
        %v1411 = vpack.c.b16 %v1380, %v1379
        %v1412 = vpack.c.b16 %v1382, %v1381
        %v1413 = vpack.c.b16 %v1384, %v1383
        %v1414 = vpack.c.b16 %v1386, %v1385
        %v1415 = vpack.c.b16 %v1388, %v1387
        %v1416 = vpack.c.b16 %v1390, %v1389
        %v1417 = vpack.c.b16 %v1392, %v1391
        %v1418 = vpack.c.b16 %v1394, %v1393
        %v1419 = vpack.c.b16 %v1396, %v1395
        %v1420 = vpack.c.b16 %v1398, %v1397
        %v1421 = vpack.c.b16 %v1400, %v1399
        %v1422 = vpack.c.b16 %v1402, %v1401
        %v1423 = vpack.c.b16 %v1404, %v1403
        %v1424 = vpack.c.b16 %v1406, %v1405
        %v1425 = vpack.c.b16 %v1408, %v1407
        %v1426 = vpack.c.b16 %v1410, %v1409
        %v1428 = vsel %vm710, %v1411, 0
        %v1431 = vsel %vm710, %v1412, 0
        %v1434 = vsel %vm710, %v1413, 0
        %v1437 = vsel %vm710, %v1414, 0
        %v1440 = vsel %vm710, %v1415, 0
        %v1443 = vsel %vm710, %v1416, 0
        %v1446 = vsel %vm710, %v1417, 0
        %v1449 = vsel %vm710, %v1418, 0
        %v1452 = vsel %vm710, %v1419, 0
        %v1455 = vsel %vm710, %v1420, 0
        %v1458 = vsel %vm710, %v1421, 0
        %v1461 = vsel %vm710, %v1422, 0
        %v1464 = vsel %vm710, %v1423, 0
        %v1467 = vsel %vm710, %v1424, 0
        %v1470 = vsel %vm710, %v1425, 0
        %v1473 = vsel %vm710, %v1426, 0
        %v1476 = vsel %vm759, %v220, 0
        %1478 = vmatprep.subr.bf16.mxu0 0
        %1479 = vmatpush1.bf16.msra.mxu0 %v1476
        %1480 = vmatprep.subr.bf16.mxu0 0
        %1481 = vmatpush1.bf16.msra.mxu0 0
        %1482 = vmatprep.subr.bf16.mxu0 0
        %1483 = vmatpush1.bf16.msra.mxu0 0
        %1484 = vmatprep.subr.bf16.mxu0 0
        %1485 = vmatpush1.bf16.msra.mxu0 0
        %1486 = vmatprep.subr.bf16.mxu0 0
        %1487 = vmatpush1.bf16.msra.mxu0 0
        %1488 = vmatprep.subr.bf16.mxu0 0
        %1489 = vmatpush1.bf16.msra.mxu0 0
        %1490 = vmatprep.subr.bf16.mxu0 0
        %1491 = vmatpush1.bf16.msra.mxu0 0
        %1492 = vmatprep.subr.bf16.mxu0 0
        %1493 = vmatpush1.bf16.msra.mxu0 0
        %1494 = vmatprep.subr.bf16.mxu0 0
        %1495 = vmatpush1.bf16.msra.mxu0 0
        %1496 = vmatprep.subr.bf16.mxu0 0
        %1497 = vmatpush1.bf16.msra.mxu0 0
        %1498 = vmatprep.subr.bf16.mxu0 0
        %1499 = vmatpush1.bf16.msra.mxu0 0
        %1500 = vmatprep.subr.bf16.mxu0 0
        %1501 = vmatpush1.bf16.msra.mxu0 0
        %1502 = vmatprep.subr.bf16.mxu0 0
        %1503 = vmatpush1.bf16.msra.mxu0 0
        %1504 = vmatprep.subr.bf16.mxu0 0
        %1505 = vmatpush1.bf16.msra.mxu0 0
        %1506 = vmatprep.subr.bf16.mxu0 0
        %1507 = vmatpush1.bf16.msra.mxu0 0
        %1508 = vmatprep.subr.bf16.mxu0 0
        %1509 = vmatpush1.bf16.msra.mxu0 0
        %1510 = vmatprep.mubr.bf16.mxu0 0
        %1511 = vmatmul.mubr.bf16.gmra.mrb[0].mxu0 %v1428
        %v1512 = vpop.f32.mrb[0].mxu0
        %v1513 = vadd.f32 0.0, %v1512
        %v1514 = vpop.f32.mrb[0].mxu0
        %v1515 = vpop.f32.mrb[0].mxu0
        %v1516 = vadd.f32 0.0, %v1515
        %v1517 = vpop.f32.mrb[0].mxu0
        %1518 = vmatprep.mubr.bf16.mxu0 0
        %1519 = vmatmul.mubr.bf16.gmra.mrb[0].mxu0 %v1431
        %v1520 = vpop.f32.mrb[0].mxu0
        %v1521 = vadd.f32 0.0, %v1520
        %v1522 = vpop.f32.mrb[0].mxu0
        %v1523 = vpop.f32.mrb[0].mxu0
        %v1524 = vadd.f32 0.0, %v1523
        %v1525 = vpop.f32.mrb[0].mxu0
        %1526 = vmatprep.mubr.bf16.mxu0 0
        %1527 = vmatmul.mubr.bf16.gmra.mrb[0].mxu0 %v1434
        %v1528 = vpop.f32.mrb[0].mxu0
        %v1529 = vadd.f32 0.0, %v1528
        %v1530 = vpop.f32.mrb[0].mxu0
        %v1531 = vpop.f32.mrb[0].mxu0
        %v1532 = vadd.f32 0.0, %v1531
        %v1533 = vpop.f32.mrb[0].mxu0
        %1534 = vmatprep.mubr.bf16.mxu0 0
        %1535 = vmatmul.mubr.bf16.gmra.mrb[0].mxu0 %v1437
        %v1536 = vpop.f32.mrb[0].mxu0
        %v1537 = vadd.f32 0.0, %v1536
        %v1538 = vpop.f32.mrb[0].mxu0
        %v1539 = vpop.f32.mrb[0].mxu0
        %v1540 = vadd.f32 0.0, %v1539
        %v1541 = vpop.f32.mrb[0].mxu0
        %1542 = vmatprep.mubr.bf16.mxu0 0
        %1543 = vmatmul.mubr.bf16.gmra.mrb[0].mxu0 %v1440
        %v1544 = vpop.f32.mrb[0].mxu0
        %v1545 = vadd.f32 0.0, %v1544
        %v1546 = vpop.f32.mrb[0].mxu0
        %v1547 = vpop.f32.mrb[0].mxu0
        %v1548 = vadd.f32 0.0, %v1547
        %v1549 = vpop.f32.mrb[0].mxu0
        %1550 = vmatprep.mubr.bf16.mxu0 0
        %1551 = vmatmul.mubr.bf16.gmra.mrb[0].mxu0 %v1443
        %v1552 = vpop.f32.mrb[0].mxu0
        %v1553 = vadd.f32 0.0, %v1552
        %v1554 = vpop.f32.mrb[0].mxu0
        %v1555 = vpop.f32.mrb[0].mxu0
        %v1556 = vadd.f32 0.0, %v1555
        %v1557 = vpop.f32.mrb[0].mxu0
        %1558 = vmatprep.mubr.bf16.mxu0 0
        %1559 = vmatmul.mubr.bf16.gmra.mrb[0].mxu0 %v1446
        %v1560 = vpop.f32.mrb[0].mxu0
        %v1561 = vadd.f32 0.0, %v1560
        %v1562 = vpop.f32.mrb[0].mxu0
        %v1563 = vpop.f32.mrb[0].mxu0
        %v1564 = vadd.f32 0.0, %v1563
        %v1565 = vpop.f32.mrb[0].mxu0
        %1566 = vmatprep.mubr.bf16.mxu0 0
        %1567 = vmatmul.mubr.bf16.gmra.mrb[0].mxu0 %v1449
        %v1568 = vpop.f32.mrb[0].mxu0
        %v1569 = vadd.f32 0.0, %v1568
        %v1570 = vpop.f32.mrb[0].mxu0
        %v1571 = vpop.f32.mrb[0].mxu0
        %v1572 = vadd.f32 0.0, %v1571
        %v1573 = vpop.f32.mrb[0].mxu0
        %1574 = vmatprep.mubr.bf16.mxu0 0
        %1575 = vmatmul.mubr.bf16.gmra.mrb[0].mxu0 %v1452
        %v1576 = vpop.f32.mrb[0].mxu0
        %v1577 = vadd.f32 0.0, %v1576
        %v1578 = vpop.f32.mrb[0].mxu0
        %v1579 = vpop.f32.mrb[0].mxu0
        %v1580 = vadd.f32 0.0, %v1579
        %v1581 = vpop.f32.mrb[0].mxu0
        %1582 = vmatprep.mubr.bf16.mxu0 0
        %1583 = vmatmul.mubr.bf16.gmra.mrb[0].mxu0 %v1455
        %v1584 = vpop.f32.mrb[0].mxu0
        %v1585 = vadd.f32 0.0, %v1584
        %v1586 = vpop.f32.mrb[0].mxu0
        %v1587 = vpop.f32.mrb[0].mxu0
        %v1588 = vadd.f32 0.0, %v1587
        %v1589 = vpop.f32.mrb[0].mxu0
        %1590 = vmatprep.mubr.bf16.mxu0 0
        %1591 = vmatmul.mubr.bf16.gmra.mrb[0].mxu0 %v1458
        %v1592 = vpop.f32.mrb[0].mxu0
        %v1593 = vadd.f32 0.0, %v1592
        %v1594 = vpop.f32.mrb[0].mxu0
        %v1595 = vpop.f32.mrb[0].mxu0
        %v1596 = vadd.f32 0.0, %v1595
        %v1597 = vpop.f32.mrb[0].mxu0
        %1598 = vmatprep.mubr.bf16.mxu0 0
        %1599 = vmatmul.mubr.bf16.gmra.mrb[0].mxu0 %v1461
        %v1600 = vpop.f32.mrb[0].mxu0
        %v1601 = vadd.f32 0.0, %v1600
        %v1602 = vpop.f32.mrb[0].mxu0
        %v1603 = vpop.f32.mrb[0].mxu0
        %v1604 = vadd.f32 0.0, %v1603
        %v1605 = vpop.f32.mrb[0].mxu0
        %1606 = vmatprep.mubr.bf16.mxu0 0
        %1607 = vmatmul.mubr.bf16.gmra.mrb[0].mxu0 %v1464
        %v1608 = vpop.f32.mrb[0].mxu0
        %v1609 = vadd.f32 0.0, %v1608
        %v1610 = vpop.f32.mrb[0].mxu0
        %v1611 = vpop.f32.mrb[0].mxu0
        %v1612 = vadd.f32 0.0, %v1611
        %v1613 = vpop.f32.mrb[0].mxu0
        %1614 = vmatprep.mubr.bf16.mxu0 0
        %1615 = vmatmul.mubr.bf16.gmra.mrb[0].mxu0 %v1467
        %v1616 = vpop.f32.mrb[0].mxu0
        %v1617 = vadd.f32 0.0, %v1616
        %v1618 = vpop.f32.mrb[0].mxu0
        %v1619 = vpop.f32.mrb[0].mxu0
        %v1620 = vadd.f32 0.0, %v1619
        %v1621 = vpop.f32.mrb[0].mxu0
        %1622 = vmatprep.mubr.bf16.mxu0 0
        %1623 = vmatmul.mubr.bf16.gmra.mrb[0].mxu0 %v1470
        %v1624 = vpop.f32.mrb[0].mxu0
        %v1625 = vadd.f32 0.0, %v1624
        %v1626 = vpop.f32.mrb[0].mxu0
        %v1627 = vpop.f32.mrb[0].mxu0
        %v1628 = vadd.f32 0.0, %v1627
        %v1629 = vpop.f32.mrb[0].mxu0
        %1630 = vmatprep.mubr.bf16.mxu0 0
        %1631 = vmatmul.mubr.bf16.gmra.mrb[0].mxu0 %v1473
        %v1632 = vpop.f32.mrb[0].mxu0
        %v1633 = vadd.f32 0.0, %v1632
        %v1634 = vpop.f32.mrb[0].mxu0
        %v1635 = vpop.f32.mrb[0].mxu0
        %v1636 = vadd.f32 0.0, %v1635
        %v1637 = vpop.f32.mrb[0].mxu0
        %1638 = vdwg.mxu0
        %v1639 = vadd.f32 %v1090, %v1513
        %v1640 = vadd.f32 %v1093, %v1516
        %v1641 = vadd.f32 %v1098, %v1521
        %v1642 = vadd.f32 %v1101, %v1524
        %v1643 = vadd.f32 %v1106, %v1529
        %v1644 = vadd.f32 %v1109, %v1532
        %v1645 = vadd.f32 %v1114, %v1537
        %v1646 = vadd.f32 %v1117, %v1540
        %v1647 = vadd.f32 %v1122, %v1545
        %v1648 = vadd.f32 %v1125, %v1548
        %v1649 = vadd.f32 %v1130, %v1553
        %v1650 = vadd.f32 %v1133, %v1556
        %v1651 = vadd.f32 %v1138, %v1561
        %v1652 = vadd.f32 %v1141, %v1564
        %v1653 = vadd.f32 %v1146, %v1569
        %v1654 = vadd.f32 %v1149, %v1572
        %v1655 = vadd.f32 %v1154, %v1577
        %v1656 = vadd.f32 %v1157, %v1580
        %v1657 = vadd.f32 %v1162, %v1585
        %v1658 = vadd.f32 %v1165, %v1588
        %v1659 = vadd.f32 %v1170, %v1593
        %v1660 = vadd.f32 %v1173, %v1596
        %v1661 = vadd.f32 %v1178, %v1601
        %v1662 = vadd.f32 %v1181, %v1604
        %v1663 = vadd.f32 %v1186, %v1609
        %v1664 = vadd.f32 %v1189, %v1612
        %v1665 = vadd.f32 %v1194, %v1617
        %v1666 = vadd.f32 %v1197, %v1620
        %v1667 = vadd.f32 %v1202, %v1625
        %v1668 = vadd.f32 %v1205, %v1628
        %v1669 = vadd.f32 %v1210, %v1633
        %v1670 = vadd.f32 %v1213, %v1636
        %s1671 = scalar_lea.vmem %s211, 12
        %v1672 = vld [vmem:[%s1671] sm:$0xf]
        %v1673 = vld [vmem:[%s1671 + $0x4] sm:$0xf]
        %v1674 = vld [vmem:[%s1671 + $0xc] sm:$0xf]
        %v1675 = vld [vmem:[%s1671 + $0x10] sm:$0xf]
        %v1676 = vld [vmem:[%s1671 + $0x18] sm:$0xf]
        %v1677 = vld [vmem:[%s1671 + $0x1c] sm:$0xf]
        %v1678 = vld [vmem:[%s1671 + $0x24] sm:$0xf]
        %v1679 = vld [vmem:[%s1671 + $0x28] sm:$0xf]
        %v1680 = vld [vmem:[%s1671 + $0x30] sm:$0xf]
        %v1681 = vld [vmem:[%s1671 + $0x34] sm:$0xf]
        %v1682 = vld [vmem:[%s1671 + $0x3c] sm:$0xf]
        %v1683 = vld [vmem:[%s1671 + $0x40] sm:$0xf]
        %v1684 = vld [vmem:[%s1671 + $0x48] sm:$0xf]
        %v1685 = vld [vmem:[%s1671 + $0x4c] sm:$0xf]
        %v1686 = vld [vmem:[%s1671 + $0x54] sm:$0xf]
        %v1687 = vld [vmem:[%s1671 + $0x58] sm:$0xf]
        %v1688 = vld [vmem:[%s1671 + $0x60] sm:$0xf]
        %v1689 = vld [vmem:[%s1671 + $0x64] sm:$0xf]
        %v1690 = vld [vmem:[%s1671 + $0x6c] sm:$0xf]
        %v1691 = vld [vmem:[%s1671 + $0x70] sm:$0xf]
        %v1692 = vld [vmem:[%s1671 + $0x78] sm:$0xf]
        %v1693 = vld [vmem:[%s1671 + $0x7c] sm:$0xf]
        %v1694 = vld [vmem:[%s1671 + $0x84] sm:$0xf]
        %v1695 = vld [vmem:[%s1671 + $0x88] sm:$0xf]
        %v1696 = vld [vmem:[%s1671 + $0x90] sm:$0xf]
        %v1697 = vld [vmem:[%s1671 + $0x94] sm:$0xf]
        %v1698 = vld [vmem:[%s1671 + $0x9c] sm:$0xf]
        %v1699 = vld [vmem:[%s1671 + $0xa0] sm:$0xf]
        %v1700 = vld [vmem:[%s1671 + $0xa8] sm:$0xf]
        %v1701 = vld [vmem:[%s1671 + $0xac] sm:$0xf]
        %v1702 = vld [vmem:[%s1671 + $0xb4] sm:$0xf]
        %v1703 = vld [vmem:[%s1671 + $0xb8] sm:$0xf]
        %v1736 = vunpack.c.l.b16 %v1672
        %v1737 = vunpack.c.l.b16 %v1673
        %v1738 = vunpack.c.l.b16 %v1674
        %v1739 = vunpack.c.l.b16 %v1675
        %v1740 = vunpack.c.l.b16 %v1676
        %v1741 = vunpack.c.l.b16 %v1677
        %v1742 = vunpack.c.l.b16 %v1678
        %v1743 = vunpack.c.l.b16 %v1679
        %v1744 = vunpack.c.l.b16 %v1680
        %v1745 = vunpack.c.l.b16 %v1681
        %v1746 = vunpack.c.l.b16 %v1682
        %v1747 = vunpack.c.l.b16 %v1683
        %v1748 = vunpack.c.l.b16 %v1684
        %v1749 = vunpack.c.l.b16 %v1685
        %v1750 = vunpack.c.l.b16 %v1686
        %v1751 = vunpack.c.l.b16 %v1687
        %v1752 = vunpack.c.l.b16 %v1688
        %v1753 = vunpack.c.l.b16 %v1689
        %v1754 = vunpack.c.l.b16 %v1690
        %v1755 = vunpack.c.l.b16 %v1691
        %v1756 = vunpack.c.l.b16 %v1692
        %v1757 = vunpack.c.l.b16 %v1693
        %v1758 = vunpack.c.l.b16 %v1694
        %v1759 = vunpack.c.l.b16 %v1695
        %v1760 = vunpack.c.l.b16 %v1696
        %v1761 = vunpack.c.l.b16 %v1697
        %v1762 = vunpack.c.l.b16 %v1698
        %v1763 = vunpack.c.l.b16 %v1699
        %v1764 = vunpack.c.l.b16 %v1700
        %v1765 = vunpack.c.l.b16 %v1701
        %v1766 = vunpack.c.l.b16 %v1702
        %v1767 = vunpack.c.l.b16 %v1703
        %v1768 = vpack.c.b16 %v1737, %v1736
        %v1769 = vpack.c.b16 %v1739, %v1738
        %v1770 = vpack.c.b16 %v1741, %v1740
        %v1771 = vpack.c.b16 %v1743, %v1742
        %v1772 = vpack.c.b16 %v1745, %v1744
        %v1773 = vpack.c.b16 %v1747, %v1746
        %v1774 = vpack.c.b16 %v1749, %v1748
        %v1775 = vpack.c.b16 %v1751, %v1750
        %v1776 = vpack.c.b16 %v1753, %v1752
        %v1777 = vpack.c.b16 %v1755, %v1754
        %v1778 = vpack.c.b16 %v1757, %v1756
        %v1779 = vpack.c.b16 %v1759, %v1758
        %v1780 = vpack.c.b16 %v1761, %v1760
        %v1781 = vpack.c.b16 %v1763, %v1762
        %v1782 = vpack.c.b16 %v1765, %v1764
        %v1783 = vpack.c.b16 %v1767, %v1766
        %v1785 = vsel %vm710, %v1768, 0
        %v1788 = vsel %vm710, %v1769, 0
        %v1791 = vsel %vm710, %v1770, 0
        %v1794 = vsel %vm710, %v1771, 0
        %v1797 = vsel %vm710, %v1772, 0
        %v1800 = vsel %vm710, %v1773, 0
        %v1803 = vsel %vm710, %v1774, 0
        %v1806 = vsel %vm710, %v1775, 0
        %v1809 = vsel %vm710, %v1776, 0
        %v1812 = vsel %vm710, %v1777, 0
        %v1815 = vsel %vm710, %v1778, 0
        %v1818 = vsel %vm710, %v1779, 0
        %v1821 = vsel %vm710, %v1780, 0
        %v1824 = vsel %vm710, %v1781, 0
        %v1827 = vsel %vm710, %v1782, 0
        %v1830 = vsel %vm710, %v1783, 0
        %v1833 = vsel %vm759, %v221, 0
        %1835 = vmatprep.subr.bf16.mxu0 0
        %1836 = vmatpush1.bf16.msra.mxu0 %v1833
        %1837 = vmatprep.subr.bf16.mxu0 0
        %1838 = vmatpush1.bf16.msra.mxu0 0
        %1839 = vmatprep.subr.bf16.mxu0 0
        %1840 = vmatpush1.bf16.msra.mxu0 0
        %1841 = vmatprep.subr.bf16.mxu0 0
        %1842 = vmatpush1.bf16.msra.mxu0 0
        %1843 = vmatprep.subr.bf16.mxu0 0
        %1844 = vmatpush1.bf16.msra.mxu0 0
        %1845 = vmatprep.subr.bf16.mxu0 0
        %1846 = vmatpush1.bf16.msra.mxu0 0
        %1847 = vmatprep.subr.bf16.mxu0 0
        %1848 = vmatpush1.bf16.msra.mxu0 0
        %1849 = vmatprep.subr.bf16.mxu0 0
        %1850 = vmatpush1.bf16.msra.mxu0 0
        %1851 = vmatprep.subr.bf16.mxu0 0
        %1852 = vmatpush1.bf16.msra.mxu0 0
        %1853 = vmatprep.subr.bf16.mxu0 0
        %1854 = vmatpush1.bf16.msra.mxu0 0
        %1855 = vmatprep.subr.bf16.mxu0 0
        %1856 = vmatpush1.bf16.msra.mxu0 0
        %1857 = vmatprep.subr.bf16.mxu0 0
        %1858 = vmatpush1.bf16.msra.mxu0 0
        %1859 = vmatprep.subr.bf16.mxu0 0
        %1860 = vmatpush1.bf16.msra.mxu0 0
        %1861 = vmatprep.subr.bf16.mxu0 0
        %1862 = vmatpush1.bf16.msra.mxu0 0
        %1863 = vmatprep.subr.bf16.mxu0 0
        %1864 = vmatpush1.bf16.msra.mxu0 0
        %1865 = vmatprep.subr.bf16.mxu0 0
        %1866 = vmatpush1.bf16.msra.mxu0 0
        %1867 = vmatprep.mubr.bf16.mxu0 0
        %1868 = vmatmul.mubr.bf16.gmra.mrb[0].mxu0 %v1785
        %v1869 = vpop.f32.mrb[0].mxu0
        %v1870 = vadd.f32 0.0, %v1869
        %v1871 = vpop.f32.mrb[0].mxu0
        %v1872 = vpop.f32.mrb[0].mxu0
        %v1873 = vadd.f32 0.0, %v1872
        %v1874 = vpop.f32.mrb[0].mxu0
        %1875 = vmatprep.mubr.bf16.mxu0 0
        %1876 = vmatmul.mubr.bf16.gmra.mrb[0].mxu0 %v1788
        %v1877 = vpop.f32.mrb[0].mxu0
        %v1878 = vadd.f32 0.0, %v1877
        %v1879 = vpop.f32.mrb[0].mxu0
        %v1880 = vpop.f32.mrb[0].mxu0
        %v1881 = vadd.f32 0.0, %v1880
        %v1882 = vpop.f32.mrb[0].mxu0
        %1883 = vmatprep.mubr.bf16.mxu0 0
        %1884 = vmatmul.mubr.bf16.gmra.mrb[0].mxu0 %v1791
        %v1885 = vpop.f32.mrb[0].mxu0
        %v1886 = vadd.f32 0.0, %v1885
        %v1887 = vpop.f32.mrb[0].mxu0
        %v1888 = vpop.f32.mrb[0].mxu0
        %v1889 = vadd.f32 0.0, %v1888
        %v1890 = vpop.f32.mrb[0].mxu0
        %1891 = vmatprep.mubr.bf16.mxu0 0
        %1892 = vmatmul.mubr.bf16.gmra.mrb[0].mxu0 %v1794
        %v1893 = vpop.f32.mrb[0].mxu0
        %v1894 = vadd.f32 0.0, %v1893
        %v1895 = vpop.f32.mrb[0].mxu0
        %v1896 = vpop.f32.mrb[0].mxu0
        %v1897 = vadd.f32 0.0, %v1896
        %v1898 = vpop.f32.mrb[0].mxu0
        %1899 = vmatprep.mubr.bf16.mxu0 0
        %1900 = vmatmul.mubr.bf16.gmra.mrb[0].mxu0 %v1797
        %v1901 = vpop.f32.mrb[0].mxu0
        %v1902 = vadd.f32 0.0, %v1901
        %v1903 = vpop.f32.mrb[0].mxu0
        %v1904 = vpop.f32.mrb[0].mxu0
        %v1905 = vadd.f32 0.0, %v1904
        %v1906 = vpop.f32.mrb[0].mxu0
        %1907 = vmatprep.mubr.bf16.mxu0 0
        %1908 = vmatmul.mubr.bf16.gmra.mrb[0].mxu0 %v1800
        %v1909 = vpop.f32.mrb[0].mxu0
        %v1910 = vadd.f32 0.0, %v1909
        %v1911 = vpop.f32.mrb[0].mxu0
        %v1912 = vpop.f32.mrb[0].mxu0
        %v1913 = vadd.f32 0.0, %v1912
        %v1914 = vpop.f32.mrb[0].mxu0
        %1915 = vmatprep.mubr.bf16.mxu0 0
        %1916 = vmatmul.mubr.bf16.gmra.mrb[0].mxu0 %v1803
        %v1917 = vpop.f32.mrb[0].mxu0
        %v1918 = vadd.f32 0.0, %v1917
        %v1919 = vpop.f32.mrb[0].mxu0
        %v1920 = vpop.f32.mrb[0].mxu0
        %v1921 = vadd.f32 0.0, %v1920
        %v1922 = vpop.f32.mrb[0].mxu0
        %1923 = vmatprep.mubr.bf16.mxu0 0
        %1924 = vmatmul.mubr.bf16.gmra.mrb[0].mxu0 %v1806
        %v1925 = vpop.f32.mrb[0].mxu0
        %v1926 = vadd.f32 0.0, %v1925
        %v1927 = vpop.f32.mrb[0].mxu0
        %v1928 = vpop.f32.mrb[0].mxu0
        %v1929 = vadd.f32 0.0, %v1928
        %v1930 = vpop.f32.mrb[0].mxu0
        %1931 = vmatprep.mubr.bf16.mxu0 0
        %1932 = vmatmul.mubr.bf16.gmra.mrb[0].mxu0 %v1809
        %v1933 = vpop.f32.mrb[0].mxu0
        %v1934 = vadd.f32 0.0, %v1933
        %v1935 = vpop.f32.mrb[0].mxu0
        %v1936 = vpop.f32.mrb[0].mxu0
        %v1937 = vadd.f32 0.0, %v1936
        %v1938 = vpop.f32.mrb[0].mxu0
        %1939 = vmatprep.mubr.bf16.mxu0 0
        %1940 = vmatmul.mubr.bf16.gmra.mrb[0].mxu0 %v1812
        %v1941 = vpop.f32.mrb[0].mxu0
        %v1942 = vadd.f32 0.0, %v1941
        %v1943 = vpop.f32.mrb[0].mxu0
        %v1944 = vpop.f32.mrb[0].mxu0
        %v1945 = vadd.f32 0.0, %v1944
        %v1946 = vpop.f32.mrb[0].mxu0
        %1947 = vmatprep.mubr.bf16.mxu0 0
        %1948 = vmatmul.mubr.bf16.gmra.mrb[0].mxu0 %v1815
        %v1949 = vpop.f32.mrb[0].mxu0
        %v1950 = vadd.f32 0.0, %v1949
        %v1951 = vpop.f32.mrb[0].mxu0
        %v1952 = vpop.f32.mrb[0].mxu0
        %v1953 = vadd.f32 0.0, %v1952
        %v1954 = vpop.f32.mrb[0].mxu0
        %1955 = vmatprep.mubr.bf16.mxu0 0
        %1956 = vmatmul.mubr.bf16.gmra.mrb[0].mxu0 %v1818
        %v1957 = vpop.f32.mrb[0].mxu0
        %v1958 = vadd.f32 0.0, %v1957
        %v1959 = vpop.f32.mrb[0].mxu0
        %v1960 = vpop.f32.mrb[0].mxu0
        %v1961 = vadd.f32 0.0, %v1960
        %v1962 = vpop.f32.mrb[0].mxu0
        %1963 = vmatprep.mubr.bf16.mxu0 0
        %1964 = vmatmul.mubr.bf16.gmra.mrb[0].mxu0 %v1821
        %v1965 = vpop.f32.mrb[0].mxu0
        %v1966 = vadd.f32 0.0, %v1965
        %v1967 = vpop.f32.mrb[0].mxu0
        %v1968 = vpop.f32.mrb[0].mxu0
        %v1969 = vadd.f32 0.0, %v1968
        %v1970 = vpop.f32.mrb[0].mxu0
        %1971 = vmatprep.mubr.bf16.mxu0 0
        %1972 = vmatmul.mubr.bf16.gmra.mrb[0].mxu0 %v1824
        %v1973 = vpop.f32.mrb[0].mxu0
        %v1974 = vadd.f32 0.0, %v1973
        %v1975 = vpop.f32.mrb[0].mxu0
        %v1976 = vpop.f32.mrb[0].mxu0
        %v1977 = vadd.f32 0.0, %v1976
        %v1978 = vpop.f32.mrb[0].mxu0
        %1979 = vmatprep.mubr.bf16.mxu0 0
        %1980 = vmatmul.mubr.bf16.gmra.mrb[0].mxu0 %v1827
        %v1981 = vpop.f32.mrb[0].mxu0
        %v1982 = vadd.f32 0.0, %v1981
        %v1983 = vpop.f32.mrb[0].mxu0
        %v1984 = vpop.f32.mrb[0].mxu0
        %v1985 = vadd.f32 0.0, %v1984
        %v1986 = vpop.f32.mrb[0].mxu0
        %1987 = vmatprep.mubr.bf16.mxu0 0
        %1988 = vmatmul.mubr.bf16.gmra.mrb[0].mxu0 %v1830
        %v1989 = vpop.f32.mrb[0].mxu0
        %v1990 = vadd.f32 0.0, %v1989
        %v1991 = vpop.f32.mrb[0].mxu0
        %v1992 = vpop.f32.mrb[0].mxu0
        %v1993 = vadd.f32 0.0, %v1992
        %v1994 = vpop.f32.mrb[0].mxu0
        %1995 = vdwg.mxu0
        %v1996 = vadd.f32 %v1639, %v1870
        %v1997 = vadd.f32 %v1640, %v1873
        %v1998 = vadd.f32 %v1641, %v1878
        %v1999 = vadd.f32 %v1642, %v1881
        %v2000 = vadd.f32 %v1643, %v1886
        %v2001 = vadd.f32 %v1644, %v1889
        %v2002 = vadd.f32 %v1645, %v1894
        %v2003 = vadd.f32 %v1646, %v1897
        %v2004 = vadd.f32 %v1647, %v1902
        %v2005 = vadd.f32 %v1648, %v1905
        %v2006 = vadd.f32 %v1649, %v1910
        %v2007 = vadd.f32 %v1650, %v1913
        %v2008 = vadd.f32 %v1651, %v1918
        %v2009 = vadd.f32 %v1652, %v1921
        %v2010 = vadd.f32 %v1653, %v1926
        %v2011 = vadd.f32 %v1654, %v1929
        %v2012 = vadd.f32 %v1655, %v1934
        %v2013 = vadd.f32 %v1656, %v1937
        %v2014 = vadd.f32 %v1657, %v1942
        %v2015 = vadd.f32 %v1658, %v1945
        %v2016 = vadd.f32 %v1659, %v1950
        %v2017 = vadd.f32 %v1660, %v1953
        %v2018 = vadd.f32 %v1661, %v1958
        %v2019 = vadd.f32 %v1662, %v1961
        %v2020 = vadd.f32 %v1663, %v1966
        %v2021 = vadd.f32 %v1664, %v1969
        %v2022 = vadd.f32 %v1665, %v1974
        %v2023 = vadd.f32 %v1666, %v1977
        %v2024 = vadd.f32 %v1667, %v1982
        %v2025 = vadd.f32 %v1668, %v1985
        %v2026 = vadd.f32 %v1669, %v1990
        %v2027 = vadd.f32 %v1670, %v1993
        %v2028 = vld [vmem:[%s1671] sm:$0xf]
        %v2029 = vld [vmem:[%s1671 + $0x4] sm:$0xf]
        %v2030 = vld [vmem:[%s1671 + $0x8] sm:$0x1]
        %v2031 = vld [vmem:[%s1671 + $0xc] sm:$0xf]
        %v2032 = vld [vmem:[%s1671 + $0x10] sm:$0xf]
        %v2033 = vld [vmem:[%s1671 + $0x14] sm:$0x1]
        %v2034 = vld [vmem:[%s1671 + $0x18] sm:$0xf]
        %v2035 = vld [vmem:[%s1671 + $0x1c] sm:$0xf]
        %v2036 = vld [vmem:[%s1671 + $0x20] sm:$0x1]
        %v2037 = vld [vmem:[%s1671 + $0x24] sm:$0xf]
        %v2038 = vld [vmem:[%s1671 + $0x28] sm:$0xf]
        %v2039 = vld [vmem:[%s1671 + $0x2c] sm:$0x1]
        %v2040 = vld [vmem:[%s1671 + $0x30] sm:$0xf]
        %v2041 = vld [vmem:[%s1671 + $0x34] sm:$0xf]
        %v2042 = vld [vmem:[%s1671 + $0x38] sm:$0x1]
        %v2043 = vld [vmem:[%s1671 + $0x3c] sm:$0xf]
        %v2044 = vld [vmem:[%s1671 + $0x40] sm:$0xf]
        %v2045 = vld [vmem:[%s1671 + $0x44] sm:$0x1]
        %v2046 = vld [vmem:[%s1671 + $0x48] sm:$0xf]
        %v2047 = vld [vmem:[%s1671 + $0x4c] sm:$0xf]
        %v2048 = vld [vmem:[%s1671 + $0x50] sm:$0x1]
        %v2049 = vld [vmem:[%s1671 + $0x54] sm:$0xf]
        %v2050 = vld [vmem:[%s1671 + $0x58] sm:$0xf]
        %v2051 = vld [vmem:[%s1671 + $0x5c] sm:$0x1]
        %v2052 = vld [vmem:[%s1671 + $0x60] sm:$0xf]
        %v2053 = vld [vmem:[%s1671 + $0x64] sm:$0xf]
        %v2054 = vld [vmem:[%s1671 + $0x68] sm:$0x1]
        %v2055 = vld [vmem:[%s1671 + $0x6c] sm:$0xf]
        %v2056 = vld [vmem:[%s1671 + $0x70] sm:$0xf]
        %v2057 = vld [vmem:[%s1671 + $0x74] sm:$0x1]
        %v2058 = vld [vmem:[%s1671 + $0x78] sm:$0xf]
        %v2059 = vld [vmem:[%s1671 + $0x7c] sm:$0xf]
        %v2060 = vld [vmem:[%s1671 + $0x80] sm:$0x1]
        %v2061 = vld [vmem:[%s1671 + $0x84] sm:$0xf]
        %v2062 = vld [vmem:[%s1671 + $0x88] sm:$0xf]
        %v2063 = vld [vmem:[%s1671 + $0x8c] sm:$0x1]
        %v2064 = vld [vmem:[%s1671 + $0x90] sm:$0xf]
        %v2065 = vld [vmem:[%s1671 + $0x94] sm:$0xf]
        %v2066 = vld [vmem:[%s1671 + $0x98] sm:$0x1]
        %v2067 = vld [vmem:[%s1671 + $0x9c] sm:$0xf]
        %v2068 = vld [vmem:[%s1671 + $0xa0] sm:$0xf]
        %v2069 = vld [vmem:[%s1671 + $0xa4] sm:$0x1]
        %v2070 = vld [vmem:[%s1671 + $0xa8] sm:$0xf]
        %v2071 = vld [vmem:[%s1671 + $0xac] sm:$0xf]
        %v2072 = vld [vmem:[%s1671 + $0xb0] sm:$0x1]
        %v2073 = vld [vmem:[%s1671 + $0xb4] sm:$0xf]
        %v2074 = vld [vmem:[%s1671 + $0xb8] sm:$0xf]
        %v2075 = vld [vmem:[%s1671 + $0xbc] sm:$0x1]
        %v2077 = vshrl.u32 %v2028, 16
        %v2079 = vrot.slane %v2077, 4
        %v2080 = vshll.u32 %v2028, 16
        %v2082 = vrot.slane %v2080, 5
        %v2083 = vor.u32 %v2079, %v2082
        %v2084 = vrot.slane %v2083, 4
        %v2086 = vshll.u32 %v2029, 16
        %v2088 = vrot.slane %v2086, 5
        %v2089 = vsel %vm277, %v2084, %v2088
        %v2090 = vshrl.u32 %v2029, 16
        %v2092 = vrot.slane %v2090, 4
        %v2093 = vor.u32 %v2092, %v2088
        %v2094 = vrot.slane %v2093, 4
        %v2096 = vshll.u32 %v2030, 16
        %v2098 = vrot.slane %v2096, 5
        %v2099 = vsel %vm277, %v2094, %v2098
        %v2101 = vshrl.u32 %v2031, 16
        %v2103 = vrot.slane %v2101, 4
        %v2104 = vshll.u32 %v2031, 16
        %v2106 = vrot.slane %v2104, 5
        %v2107 = vor.u32 %v2103, %v2106
        %v2108 = vrot.slane %v2107, 4
        %v2110 = vshll.u32 %v2032, 16
        %v2112 = vrot.slane %v2110, 5
        %v2113 = vsel %vm277, %v2108, %v2112
        %v2114 = vshrl.u32 %v2032, 16
        %v2116 = vrot.slane %v2114, 4
        %v2117 = vor.u32 %v2116, %v2112
        %v2118 = vrot.slane %v2117, 4
        %v2120 = vshll.u32 %v2033, 16
        %v2122 = vrot.slane %v2120, 5
        %v2123 = vsel %vm277, %v2118, %v2122
        %v2125 = vshrl.u32 %v2034, 16
        %v2127 = vrot.slane %v2125, 4
        %v2128 = vshll.u32 %v2034, 16
        %v2130 = vrot.slane %v2128, 5
        %v2131 = vor.u32 %v2127, %v2130
        %v2132 = vrot.slane %v2131, 4
        %v2134 = vshll.u32 %v2035, 16
        %v2136 = vrot.slane %v2134, 5
        %v2137 = vsel %vm277, %v2132, %v2136
        %v2138 = vshrl.u32 %v2035, 16
        %v2140 = vrot.slane %v2138, 4
        %v2141 = vor.u32 %v2140, %v2136
        %v2142 = vrot.slane %v2141, 4
        %v2144 = vshll.u32 %v2036, 16
        %v2146 = vrot.slane %v2144, 5
        %v2147 = vsel %vm277, %v2142, %v2146
        %v2149 = vshrl.u32 %v2037, 16
        %v2151 = vrot.slane %v2149, 4
        %v2152 = vshll.u32 %v2037, 16
        %v2154 = vrot.slane %v2152, 5
        %v2155 = vor.u32 %v2151, %v2154
        %v2156 = vrot.slane %v2155, 4
        %v2158 = vshll.u32 %v2038, 16
        %v2160 = vrot.slane %v2158, 5
        %v2161 = vsel %vm277, %v2156, %v2160
        %v2162 = vshrl.u32 %v2038, 16
        %v2164 = vrot.slane %v2162, 4
        %v2165 = vor.u32 %v2164, %v2160
        %v2166 = vrot.slane %v2165, 4
        %v2168 = vshll.u32 %v2039, 16
        %v2170 = vrot.slane %v2168, 5
        %v2171 = vsel %vm277, %v2166, %v2170
        %v2173 = vshrl.u32 %v2040, 16
        %v2175 = vrot.slane %v2173, 4
        %v2176 = vshll.u32 %v2040, 16
        %v2178 = vrot.slane %v2176, 5
        %v2179 = vor.u32 %v2175, %v2178
        %v2180 = vrot.slane %v2179, 4
        %v2182 = vshll.u32 %v2041, 16
        %v2184 = vrot.slane %v2182, 5
        %v2185 = vsel %vm277, %v2180, %v2184
        %v2186 = vshrl.u32 %v2041, 16
        %v2188 = vrot.slane %v2186, 4
        %v2189 = vor.u32 %v2188, %v2184
        %v2190 = vrot.slane %v2189, 4
        %v2192 = vshll.u32 %v2042, 16
        %v2194 = vrot.slane %v2192, 5
        %v2195 = vsel %vm277, %v2190, %v2194
        %v2197 = vshrl.u32 %v2043, 16
        %v2199 = vrot.slane %v2197, 4
        %v2200 = vshll.u32 %v2043, 16
        %v2202 = vrot.slane %v2200, 5
        %v2203 = vor.u32 %v2199, %v2202
        %v2204 = vrot.slane %v2203, 4
        %v2206 = vshll.u32 %v2044, 16
        %v2208 = vrot.slane %v2206, 5
        %v2209 = vsel %vm277, %v2204, %v2208
        %v2210 = vshrl.u32 %v2044, 16
        %v2212 = vrot.slane %v2210, 4
        %v2213 = vor.u32 %v2212, %v2208
        %v2214 = vrot.slane %v2213, 4
        %v2216 = vshll.u32 %v2045, 16
        %v2218 = vrot.slane %v2216, 5
        %v2219 = vsel %vm277, %v2214, %v2218
        %v2221 = vshrl.u32 %v2046, 16
        %v2223 = vrot.slane %v2221, 4
        %v2224 = vshll.u32 %v2046, 16
        %v2226 = vrot.slane %v2224, 5
        %v2227 = vor.u32 %v2223, %v2226
        %v2228 = vrot.slane %v2227, 4
        %v2230 = vshll.u32 %v2047, 16
        %v2232 = vrot.slane %v2230, 5
        %v2233 = vsel %vm277, %v2228, %v2232
        %v2234 = vshrl.u32 %v2047, 16
        %v2236 = vrot.slane %v2234, 4
        %v2237 = vor.u32 %v2236, %v2232
        %v2238 = vrot.slane %v2237, 4
        %v2240 = vshll.u32 %v2048, 16
        %v2242 = vrot.slane %v2240, 5
        %v2243 = vsel %vm277, %v2238, %v2242
        %v2245 = vshrl.u32 %v2049, 16
        %v2247 = vrot.slane %v2245, 4
        %v2248 = vshll.u32 %v2049, 16
        %v2250 = vrot.slane %v2248, 5
        %v2251 = vor.u32 %v2247, %v2250
        %v2252 = vrot.slane %v2251, 4
        %v2254 = vshll.u32 %v2050, 16
        %v2256 = vrot.slane %v2254, 5
        %v2257 = vsel %vm277, %v2252, %v2256
        %v2258 = vshrl.u32 %v2050, 16
        %v2260 = vrot.slane %v2258, 4
        %v2261 = vor.u32 %v2260, %v2256
        %v2262 = vrot.slane %v2261, 4
        %v2264 = vshll.u32 %v2051, 16
        %v2266 = vrot.slane %v2264, 5
        %v2267 = vsel %vm277, %v2262, %v2266
        %v2269 = vshrl.u32 %v2052, 16
        %v2271 = vrot.slane %v2269, 4
        %v2272 = vshll.u32 %v2052, 16
        %v2274 = vrot.slane %v2272, 5
        %v2275 = vor.u32 %v2271, %v2274
        %v2276 = vrot.slane %v2275, 4
        %v2278 = vshll.u32 %v2053, 16
        %v2280 = vrot.slane %v2278, 5
        %v2281 = vsel %vm277, %v2276, %v2280
        %v2282 = vshrl.u32 %v2053, 16
        %v2284 = vrot.slane %v2282, 4
        %v2285 = vor.u32 %v2284, %v2280
        %v2286 = vrot.slane %v2285, 4
        %v2288 = vshll.u32 %v2054, 16
        %v2290 = vrot.slane %v2288, 5
        %v2291 = vsel %vm277, %v2286, %v2290
        %v2293 = vshrl.u32 %v2055, 16
        %v2295 = vrot.slane %v2293, 4
        %v2296 = vshll.u32 %v2055, 16
        %v2298 = vrot.slane %v2296, 5
        %v2299 = vor.u32 %v2295, %v2298
        %v2300 = vrot.slane %v2299, 4
        %v2302 = vshll.u32 %v2056, 16
        %v2304 = vrot.slane %v2302, 5
        %v2305 = vsel %vm277, %v2300, %v2304
        %v2306 = vshrl.u32 %v2056, 16
        %v2308 = vrot.slane %v2306, 4
        %v2309 = vor.u32 %v2308, %v2304
        %v2310 = vrot.slane %v2309, 4
        %v2312 = vshll.u32 %v2057, 16
        %v2314 = vrot.slane %v2312, 5
        %v2315 = vsel %vm277, %v2310, %v2314
        %v2317 = vshrl.u32 %v2058, 16
        %v2319 = vrot.slane %v2317, 4
        %v2320 = vshll.u32 %v2058, 16
        %v2322 = vrot.slane %v2320, 5
        %v2323 = vor.u32 %v2319, %v2322
        %v2324 = vrot.slane %v2323, 4
        %v2326 = vshll.u32 %v2059, 16
        %v2328 = vrot.slane %v2326, 5
        %v2329 = vsel %vm277, %v2324, %v2328
        %v2330 = vshrl.u32 %v2059, 16
        %v2332 = vrot.slane %v2330, 4
        %v2333 = vor.u32 %v2332, %v2328
        %v2334 = vrot.slane %v2333, 4
        %v2336 = vshll.u32 %v2060, 16
        %v2338 = vrot.slane %v2336, 5
        %v2339 = vsel %vm277, %v2334, %v2338
        %v2341 = vshrl.u32 %v2061, 16
        %v2343 = vrot.slane %v2341, 4
        %v2344 = vshll.u32 %v2061, 16
        %v2346 = vrot.slane %v2344, 5
        %v2347 = vor.u32 %v2343, %v2346
        %v2348 = vrot.slane %v2347, 4
        %v2350 = vshll.u32 %v2062, 16
        %v2352 = vrot.slane %v2350, 5
        %v2353 = vsel %vm277, %v2348, %v2352
        %v2354 = vshrl.u32 %v2062, 16
        %v2356 = vrot.slane %v2354, 4
        %v2357 = vor.u32 %v2356, %v2352
        %v2358 = vrot.slane %v2357, 4
        %v2360 = vshll.u32 %v2063, 16
        %v2362 = vrot.slane %v2360, 5
        %v2363 = vsel %vm277, %v2358, %v2362
        %v2365 = vshrl.u32 %v2064, 16
        %v2367 = vrot.slane %v2365, 4
        %v2368 = vshll.u32 %v2064, 16
        %v2370 = vrot.slane %v2368, 5
        %v2371 = vor.u32 %v2367, %v2370
        %v2372 = vrot.slane %v2371, 4
        %v2374 = vshll.u32 %v2065, 16
        %v2376 = vrot.slane %v2374, 5
        %v2377 = vsel %vm277, %v2372, %v2376
        %v2378 = vshrl.u32 %v2065, 16
        %v2380 = vrot.slane %v2378, 4
        %v2381 = vor.u32 %v2380, %v2376
        %v2382 = vrot.slane %v2381, 4
        %v2384 = vshll.u32 %v2066, 16
        %v2386 = vrot.slane %v2384, 5
        %v2387 = vsel %vm277, %v2382, %v2386
        %v2389 = vshrl.u32 %v2067, 16
        %v2391 = vrot.slane %v2389, 4
        %v2392 = vshll.u32 %v2067, 16
        %v2394 = vrot.slane %v2392, 5
        %v2395 = vor.u32 %v2391, %v2394
        %v2396 = vrot.slane %v2395, 4
        %v2398 = vshll.u32 %v2068, 16
        %v2400 = vrot.slane %v2398, 5
        %v2401 = vsel %vm277, %v2396, %v2400
        %v2402 = vshrl.u32 %v2068, 16
        %v2404 = vrot.slane %v2402, 4
        %v2405 = vor.u32 %v2404, %v2400
        %v2406 = vrot.slane %v2405, 4
        %v2408 = vshll.u32 %v2069, 16
        %v2410 = vrot.slane %v2408, 5
        %v2411 = vsel %vm277, %v2406, %v2410
        %v2413 = vshrl.u32 %v2070, 16
        %v2415 = vrot.slane %v2413, 4
        %v2416 = vshll.u32 %v2070, 16
        %v2418 = vrot.slane %v2416, 5
        %v2419 = vor.u32 %v2415, %v2418
        %v2420 = vrot.slane %v2419, 4
        %v2422 = vshll.u32 %v2071, 16
        %v2424 = vrot.slane %v2422, 5
        %v2425 = vsel %vm277, %v2420, %v2424
        %v2426 = vshrl.u32 %v2071, 16
        %v2428 = vrot.slane %v2426, 4
        %v2429 = vor.u32 %v2428, %v2424
        %v2430 = vrot.slane %v2429, 4
        %v2432 = vshll.u32 %v2072, 16
        %v2434 = vrot.slane %v2432, 5
        %v2435 = vsel %vm277, %v2430, %v2434
        %v2437 = vshrl.u32 %v2073, 16
        %v2439 = vrot.slane %v2437, 4
        %v2440 = vshll.u32 %v2073, 16
        %v2442 = vrot.slane %v2440, 5
        %v2443 = vor.u32 %v2439, %v2442
        %v2444 = vrot.slane %v2443, 4
        %v2446 = vshll.u32 %v2074, 16
        %v2448 = vrot.slane %v2446, 5
        %v2449 = vsel %vm277, %v2444, %v2448
        %v2450 = vshrl.u32 %v2074, 16
        %v2452 = vrot.slane %v2450, 4
        %v2453 = vor.u32 %v2452, %v2448
        %v2454 = vrot.slane %v2453, 4
        %v2456 = vshll.u32 %v2075, 16
        %v2458 = vrot.slane %v2456, 5
        %v2459 = vsel %vm277, %v2454, %v2458
        %v2460 = vunpack.c.l.b16 %v2089
        %v2461 = vunpack.c.l.b16 %v2099
        %v2462 = vunpack.c.l.b16 %v2113
        %v2463 = vunpack.c.l.b16 %v2123
        %v2464 = vunpack.c.l.b16 %v2137
        %v2465 = vunpack.c.l.b16 %v2147
        %v2466 = vunpack.c.l.b16 %v2161
        %v2467 = vunpack.c.l.b16 %v2171
        %v2468 = vunpack.c.l.b16 %v2185
        %v2469 = vunpack.c.l.b16 %v2195
        %v2470 = vunpack.c.l.b16 %v2209
        %v2471 = vunpack.c.l.b16 %v2219
        %v2472 = vunpack.c.l.b16 %v2233
        %v2473 = vunpack.c.l.b16 %v2243
        %v2474 = vunpack.c.l.b16 %v2257
        %v2475 = vunpack.c.l.b16 %v2267
        %v2476 = vunpack.c.l.b16 %v2281
        %v2477 = vunpack.c.l.b16 %v2291
        %v2478 = vunpack.c.l.b16 %v2305
        %v2479 = vunpack.c.l.b16 %v2315
        %v2480 = vunpack.c.l.b16 %v2329
        %v2481 = vunpack.c.l.b16 %v2339
        %v2482 = vunpack.c.l.b16 %v2353
        %v2483 = vunpack.c.l.b16 %v2363
        %v2484 = vunpack.c.l.b16 %v2377
        %v2485 = vunpack.c.l.b16 %v2387
        %v2486 = vunpack.c.l.b16 %v2401
        %v2487 = vunpack.c.l.b16 %v2411
        %v2488 = vunpack.c.l.b16 %v2425
        %v2489 = vunpack.c.l.b16 %v2435
        %v2490 = vunpack.c.l.b16 %v2449
        %v2491 = vunpack.c.l.b16 %v2459
        %v2492 = vpack.c.b16 %v2461, %v2460
        %v2493 = vpack.c.b16 %v2463, %v2462
        %v2494 = vpack.c.b16 %v2465, %v2464
        %v2495 = vpack.c.b16 %v2467, %v2466
        %v2496 = vpack.c.b16 %v2469, %v2468
        %v2497 = vpack.c.b16 %v2471, %v2470
        %v2498 = vpack.c.b16 %v2473, %v2472
        %v2499 = vpack.c.b16 %v2475, %v2474
        %v2500 = vpack.c.b16 %v2477, %v2476
        %v2501 = vpack.c.b16 %v2479, %v2478
        %v2502 = vpack.c.b16 %v2481, %v2480
        %v2503 = vpack.c.b16 %v2483, %v2482
        %v2504 = vpack.c.b16 %v2485, %v2484
        %v2505 = vpack.c.b16 %v2487, %v2486
        %v2506 = vpack.c.b16 %v2489, %v2488
        %v2507 = vpack.c.b16 %v2491, %v2490
        %v2509 = vsel %vm710, %v2492, 0
        %v2512 = vsel %vm710, %v2493, 0
        %v2515 = vsel %vm710, %v2494, 0
        %v2518 = vsel %vm710, %v2495, 0
        %v2521 = vsel %vm710, %v2496, 0
        %v2524 = vsel %vm710, %v2497, 0
        %v2527 = vsel %vm710, %v2498, 0
        %v2530 = vsel %vm710, %v2499, 0
        %v2533 = vsel %vm710, %v2500, 0
        %v2536 = vsel %vm710, %v2501, 0
        %v2539 = vsel %vm710, %v2502, 0
        %v2542 = vsel %vm710, %v2503, 0
        %v2545 = vsel %vm710, %v2504, 0
        %v2548 = vsel %vm710, %v2505, 0
        %v2551 = vsel %vm710, %v2506, 0
        %v2554 = vsel %vm710, %v2507, 0
        %v2557 = vsel %vm759, %v222, 0
        %2559 = vmatprep.subr.bf16.mxu0 0
        %2560 = vmatpush1.bf16.msra.mxu0 %v2557
        %2561 = vmatprep.subr.bf16.mxu0 0
        %2562 = vmatpush1.bf16.msra.mxu0 0
        %2563 = vmatprep.subr.bf16.mxu0 0
        %2564 = vmatpush1.bf16.msra.mxu0 0
        %2565 = vmatprep.subr.bf16.mxu0 0
        %2566 = vmatpush1.bf16.msra.mxu0 0
        %2567 = vmatprep.subr.bf16.mxu0 0
        %2568 = vmatpush1.bf16.msra.mxu0 0
        %2569 = vmatprep.subr.bf16.mxu0 0
        %2570 = vmatpush1.bf16.msra.mxu0 0
        %2571 = vmatprep.subr.bf16.mxu0 0
        %2572 = vmatpush1.bf16.msra.mxu0 0
        %2573 = vmatprep.subr.bf16.mxu0 0
        %2574 = vmatpush1.bf16.msra.mxu0 0
        %2575 = vmatprep.subr.bf16.mxu0 0
        %2576 = vmatpush1.bf16.msra.mxu0 0
        %2577 = vmatprep.subr.bf16.mxu0 0
        %2578 = vmatpush1.bf16.msra.mxu0 0
        %2579 = vmatprep.subr.bf16.mxu0 0
        %2580 = vmatpush1.bf16.msra.mxu0 0
        %2581 = vmatprep.subr.bf16.mxu0 0
        %2582 = vmatpush1.bf16.msra.mxu0 0
        %2583 = vmatprep.subr.bf16.mxu0 0
        %2584 = vmatpush1.bf16.msra.mxu0 0
        %2585 = vmatprep.subr.bf16.mxu0 0
        %2586 = vmatpush1.bf16.msra.mxu0 0
        %2587 = vmatprep.subr.bf16.mxu0 0
        %2588 = vmatpush1.bf16.msra.mxu0 0
        %2589 = vmatprep.subr.bf16.mxu0 0
        %2590 = vmatpush1.bf16.msra.mxu0 0
        %2591 = vmatprep.mubr.bf16.mxu0 0
        %2592 = vmatmul.mubr.bf16.gmra.mrb[0].mxu0 %v2509
        %v2593 = vpop.f32.mrb[0].mxu0
        %v2594 = vadd.f32 0.0, %v2593
        %v2595 = vpop.f32.mrb[0].mxu0
        %v2596 = vpop.f32.mrb[0].mxu0
        %v2597 = vadd.f32 0.0, %v2596
        %v2598 = vpop.f32.mrb[0].mxu0
        %2599 = vmatprep.mubr.bf16.mxu0 0
        %2600 = vmatmul.mubr.bf16.gmra.mrb[0].mxu0 %v2512
        %v2601 = vpop.f32.mrb[0].mxu0
        %v2602 = vadd.f32 0.0, %v2601
        %v2603 = vpop.f32.mrb[0].mxu0
        %v2604 = vpop.f32.mrb[0].mxu0
        %v2605 = vadd.f32 0.0, %v2604
        %v2606 = vpop.f32.mrb[0].mxu0
        %2607 = vmatprep.mubr.bf16.mxu0 0
        %2608 = vmatmul.mubr.bf16.gmra.mrb[0].mxu0 %v2515
        %v2609 = vpop.f32.mrb[0].mxu0
        %v2610 = vadd.f32 0.0, %v2609
        %v2611 = vpop.f32.mrb[0].mxu0
        %v2612 = vpop.f32.mrb[0].mxu0
        %v2613 = vadd.f32 0.0, %v2612
        %v2614 = vpop.f32.mrb[0].mxu0
        %2615 = vmatprep.mubr.bf16.mxu0 0
        %2616 = vmatmul.mubr.bf16.gmra.mrb[0].mxu0 %v2518
        %v2617 = vpop.f32.mrb[0].mxu0
        %v2618 = vadd.f32 0.0, %v2617
        %v2619 = vpop.f32.mrb[0].mxu0
        %v2620 = vpop.f32.mrb[0].mxu0
        %v2621 = vadd.f32 0.0, %v2620
        %v2622 = vpop.f32.mrb[0].mxu0
        %2623 = vmatprep.mubr.bf16.mxu0 0
        %2624 = vmatmul.mubr.bf16.gmra.mrb[0].mxu0 %v2521
        %v2625 = vpop.f32.mrb[0].mxu0
        %v2626 = vadd.f32 0.0, %v2625
        %v2627 = vpop.f32.mrb[0].mxu0
        %v2628 = vpop.f32.mrb[0].mxu0
        %v2629 = vadd.f32 0.0, %v2628
        %v2630 = vpop.f32.mrb[0].mxu0
        %2631 = vmatprep.mubr.bf16.mxu0 0
        %2632 = vmatmul.mubr.bf16.gmra.mrb[0].mxu0 %v2524
        %v2633 = vpop.f32.mrb[0].mxu0
        %v2634 = vadd.f32 0.0, %v2633
        %v2635 = vpop.f32.mrb[0].mxu0
        %v2636 = vpop.f32.mrb[0].mxu0
        %v2637 = vadd.f32 0.0, %v2636
        %v2638 = vpop.f32.mrb[0].mxu0
        %2639 = vmatprep.mubr.bf16.mxu0 0
        %2640 = vmatmul.mubr.bf16.gmra.mrb[0].mxu0 %v2527
        %v2641 = vpop.f32.mrb[0].mxu0
        %v2642 = vadd.f32 0.0, %v2641
        %v2643 = vpop.f32.mrb[0].mxu0
        %v2644 = vpop.f32.mrb[0].mxu0
        %v2645 = vadd.f32 0.0, %v2644
        %v2646 = vpop.f32.mrb[0].mxu0
        %2647 = vmatprep.mubr.bf16.mxu0 0
        %2648 = vmatmul.mubr.bf16.gmra.mrb[0].mxu0 %v2530
        %v2649 = vpop.f32.mrb[0].mxu0
        %v2650 = vadd.f32 0.0, %v2649
        %v2651 = vpop.f32.mrb[0].mxu0
        %v2652 = vpop.f32.mrb[0].mxu0
        %v2653 = vadd.f32 0.0, %v2652
        %v2654 = vpop.f32.mrb[0].mxu0
        %2655 = vmatprep.mubr.bf16.mxu0 0
        %2656 = vmatmul.mubr.bf16.gmra.mrb[0].mxu0 %v2533
        %v2657 = vpop.f32.mrb[0].mxu0
        %v2658 = vadd.f32 0.0, %v2657
        %v2659 = vpop.f32.mrb[0].mxu0
        %v2660 = vpop.f32.mrb[0].mxu0
        %v2661 = vadd.f32 0.0, %v2660
        %v2662 = vpop.f32.mrb[0].mxu0
        %2663 = vmatprep.mubr.bf16.mxu0 0
        %2664 = vmatmul.mubr.bf16.gmra.mrb[0].mxu0 %v2536
        %v2665 = vpop.f32.mrb[0].mxu0
        %v2666 = vadd.f32 0.0, %v2665
        %v2667 = vpop.f32.mrb[0].mxu0
        %v2668 = vpop.f32.mrb[0].mxu0
        %v2669 = vadd.f32 0.0, %v2668
        %v2670 = vpop.f32.mrb[0].mxu0
        %2671 = vmatprep.mubr.bf16.mxu0 0
        %2672 = vmatmul.mubr.bf16.gmra.mrb[0].mxu0 %v2539
        %v2673 = vpop.f32.mrb[0].mxu0
        %v2674 = vadd.f32 0.0, %v2673
        %v2675 = vpop.f32.mrb[0].mxu0
        %v2676 = vpop.f32.mrb[0].mxu0
        %v2677 = vadd.f32 0.0, %v2676
        %v2678 = vpop.f32.mrb[0].mxu0
        %2679 = vmatprep.mubr.bf16.mxu0 0
        %2680 = vmatmul.mubr.bf16.gmra.mrb[0].mxu0 %v2542
        %v2681 = vpop.f32.mrb[0].mxu0
        %v2682 = vadd.f32 0.0, %v2681
        %v2683 = vpop.f32.mrb[0].mxu0
        %v2684 = vpop.f32.mrb[0].mxu0
        %v2685 = vadd.f32 0.0, %v2684
        %v2686 = vpop.f32.mrb[0].mxu0
        %2687 = vmatprep.mubr.bf16.mxu0 0
        %2688 = vmatmul.mubr.bf16.gmra.mrb[0].mxu0 %v2545
        %v2689 = vpop.f32.mrb[0].mxu0
        %v2690 = vadd.f32 0.0, %v2689
        %v2691 = vpop.f32.mrb[0].mxu0
        %v2692 = vpop.f32.mrb[0].mxu0
        %v2693 = vadd.f32 0.0, %v2692
        %v2694 = vpop.f32.mrb[0].mxu0
        %2695 = vmatprep.mubr.bf16.mxu0 0
        %2696 = vmatmul.mubr.bf16.gmra.mrb[0].mxu0 %v2548
        %v2697 = vpop.f32.mrb[0].mxu0
        %v2698 = vadd.f32 0.0, %v2697
        %v2699 = vpop.f32.mrb[0].mxu0
        %v2700 = vpop.f32.mrb[0].mxu0
        %v2701 = vadd.f32 0.0, %v2700
        %v2702 = vpop.f32.mrb[0].mxu0
        %2703 = vmatprep.mubr.bf16.mxu0 0
        %2704 = vmatmul.mubr.bf16.gmra.mrb[0].mxu0 %v2551
        %v2705 = vpop.f32.mrb[0].mxu0
        %v2706 = vadd.f32 0.0, %v2705
        %v2707 = vpop.f32.mrb[0].mxu0
        %v2708 = vpop.f32.mrb[0].mxu0
        %v2709 = vadd.f32 0.0, %v2708
        %v2710 = vpop.f32.mrb[0].mxu0
        %2711 = vmatprep.mubr.bf16.mxu0 0
        %2712 = vmatmul.mubr.bf16.gmra.mrb[0].mxu0 %v2554
        %v2713 = vpop.f32.mrb[0].mxu0
        %v2714 = vadd.f32 0.0, %v2713
        %v2715 = vpop.f32.mrb[0].mxu0
        %v2716 = vpop.f32.mrb[0].mxu0
        %v2717 = vadd.f32 0.0, %v2716
        %v2718 = vpop.f32.mrb[0].mxu0
        %2719 = vdwg.mxu0
        %v2720 = vadd.f32 %v1996, %v2594
        %v2721 = vadd.f32 %v1997, %v2597
        %v2722 = vadd.f32 %v1998, %v2602
        %v2723 = vadd.f32 %v1999, %v2605
        %v2724 = vadd.f32 %v2000, %v2610
        %v2725 = vadd.f32 %v2001, %v2613
        %v2726 = vadd.f32 %v2002, %v2618
        %v2727 = vadd.f32 %v2003, %v2621
        %v2728 = vadd.f32 %v2004, %v2626
        %v2729 = vadd.f32 %v2005, %v2629
        %v2730 = vadd.f32 %v2006, %v2634
        %v2731 = vadd.f32 %v2007, %v2637
        %v2732 = vadd.f32 %v2008, %v2642
        %v2733 = vadd.f32 %v2009, %v2645
        %v2734 = vadd.f32 %v2010, %v2650
        %v2735 = vadd.f32 %v2011, %v2653
        %v2736 = vadd.f32 %v2012, %v2658
        %v2737 = vadd.f32 %v2013, %v2661
        %v2738 = vadd.f32 %v2014, %v2666
        %v2739 = vadd.f32 %v2015, %v2669
        %v2740 = vadd.f32 %v2016, %v2674
        %v2741 = vadd.f32 %v2017, %v2677
        %v2742 = vadd.f32 %v2018, %v2682
        %v2743 = vadd.f32 %v2019, %v2685
        %v2744 = vadd.f32 %v2020, %v2690
        %v2745 = vadd.f32 %v2021, %v2693
        %v2746 = vadd.f32 %v2022, %v2698
        %v2747 = vadd.f32 %v2023, %v2701
        %v2748 = vadd.f32 %v2024, %v2706
        %v2749 = vadd.f32 %v2025, %v2709
        %v2750 = vadd.f32 %v2026, %v2714
        %v2751 = vadd.f32 %v2027, %v2717
        %v2752 = vld [vmem:[%s1671] sm:$0xe]
        %v2753 = vld [vmem:[%s1671 + $0xc] sm:$0xe]
        %v2754 = vld [vmem:[%s1671 + $0x18] sm:$0xe]
        %v2755 = vld [vmem:[%s1671 + $0x24] sm:$0xe]
        %v2756 = vld [vmem:[%s1671 + $0x30] sm:$0xe]
        %v2757 = vld [vmem:[%s1671 + $0x3c] sm:$0xe]
        %v2758 = vld [vmem:[%s1671 + $0x48] sm:$0xe]
        %v2759 = vld [vmem:[%s1671 + $0x54] sm:$0xe]
        %v2760 = vld [vmem:[%s1671 + $0x60] sm:$0xe]
        %v2761 = vld [vmem:[%s1671 + $0x6c] sm:$0xe]
        %v2762 = vld [vmem:[%s1671 + $0x78] sm:$0xe]
        %v2763 = vld [vmem:[%s1671 + $0x84] sm:$0xe]
        %v2764 = vld [vmem:[%s1671 + $0x90] sm:$0xe]
        %v2765 = vld [vmem:[%s1671 + $0x9c] sm:$0xe]
        %v2766 = vld [vmem:[%s1671 + $0xa8] sm:$0xe]
        %v2767 = vld [vmem:[%s1671 + $0xb4] sm:$0xe]
        %v2816 = vrot.slane %v2752, 5
        %v2817 = vrot.slane %v2816, 4
        %v2818 = vrot.slane %v2029, 5
        %v2819 = vsel %vm1266, %v2817, %v2818
        %v2820 = vrot.slane %v2818, 4
        %v2821 = vrot.slane %v2030, 5
        %v2822 = vsel %vm1266, %v2820, %v2821
        %v2823 = vrot.slane %v2753, 5
        %v2824 = vrot.slane %v2823, 4
        %v2825 = vrot.slane %v2032, 5
        %v2826 = vsel %vm1266, %v2824, %v2825
        %v2827 = vrot.slane %v2825, 4
        %v2828 = vrot.slane %v2033, 5
        %v2829 = vsel %vm1266, %v2827, %v2828
        %v2830 = vrot.slane %v2754, 5
        %v2831 = vrot.slane %v2830, 4
        %v2832 = vrot.slane %v2035, 5
        %v2833 = vsel %vm1266, %v2831, %v2832
        %v2834 = vrot.slane %v2832, 4
        %v2835 = vrot.slane %v2036, 5
        %v2836 = vsel %vm1266, %v2834, %v2835
        %v2837 = vrot.slane %v2755, 5
        %v2838 = vrot.slane %v2837, 4
        %v2839 = vrot.slane %v2038, 5
        %v2840 = vsel %vm1266, %v2838, %v2839
        %v2841 = vrot.slane %v2839, 4
        %v2842 = vrot.slane %v2039, 5
        %v2843 = vsel %vm1266, %v2841, %v2842
        %v2844 = vrot.slane %v2756, 5
        %v2845 = vrot.slane %v2844, 4
        %v2846 = vrot.slane %v2041, 5
        %v2847 = vsel %vm1266, %v2845, %v2846
        %v2848 = vrot.slane %v2846, 4
        %v2849 = vrot.slane %v2042, 5
        %v2850 = vsel %vm1266, %v2848, %v2849
        %v2851 = vrot.slane %v2757, 5
        %v2852 = vrot.slane %v2851, 4
        %v2853 = vrot.slane %v2044, 5
        %v2854 = vsel %vm1266, %v2852, %v2853
        %v2855 = vrot.slane %v2853, 4
        %v2856 = vrot.slane %v2045, 5
        %v2857 = vsel %vm1266, %v2855, %v2856
        %v2858 = vrot.slane %v2758, 5
        %v2859 = vrot.slane %v2858, 4
        %v2860 = vrot.slane %v2047, 5
        %v2861 = vsel %vm1266, %v2859, %v2860
        %v2862 = vrot.slane %v2860, 4
        %v2863 = vrot.slane %v2048, 5
        %v2864 = vsel %vm1266, %v2862, %v2863
        %v2865 = vrot.slane %v2759, 5
        %v2866 = vrot.slane %v2865, 4
        %v2867 = vrot.slane %v2050, 5
        %v2868 = vsel %vm1266, %v2866, %v2867
        %v2869 = vrot.slane %v2867, 4
        %v2870 = vrot.slane %v2051, 5
        %v2871 = vsel %vm1266, %v2869, %v2870
        %v2872 = vrot.slane %v2760, 5
        %v2873 = vrot.slane %v2872, 4
        %v2874 = vrot.slane %v2053, 5
        %v2875 = vsel %vm1266, %v2873, %v2874
        %v2876 = vrot.slane %v2874, 4
        %v2877 = vrot.slane %v2054, 5
        %v2878 = vsel %vm1266, %v2876, %v2877
        %v2879 = vrot.slane %v2761, 5
        %v2880 = vrot.slane %v2879, 4
        %v2881 = vrot.slane %v2056, 5
        %v2882 = vsel %vm1266, %v2880, %v2881
        %v2883 = vrot.slane %v2881, 4
        %v2884 = vrot.slane %v2057, 5
        %v2885 = vsel %vm1266, %v2883, %v2884
        %v2886 = vrot.slane %v2762, 5
        %v2887 = vrot.slane %v2886, 4
        %v2888 = vrot.slane %v2059, 5
        %v2889 = vsel %vm1266, %v2887, %v2888
        %v2890 = vrot.slane %v2888, 4
        %v2891 = vrot.slane %v2060, 5
        %v2892 = vsel %vm1266, %v2890, %v2891
        %v2893 = vrot.slane %v2763, 5
        %v2894 = vrot.slane %v2893, 4
        %v2895 = vrot.slane %v2062, 5
        %v2896 = vsel %vm1266, %v2894, %v2895
        %v2897 = vrot.slane %v2895, 4
        %v2898 = vrot.slane %v2063, 5
        %v2899 = vsel %vm1266, %v2897, %v2898
        %v2900 = vrot.slane %v2764, 5
        %v2901 = vrot.slane %v2900, 4
        %v2902 = vrot.slane %v2065, 5
        %v2903 = vsel %vm1266, %v2901, %v2902
        %v2904 = vrot.slane %v2902, 4
        %v2905 = vrot.slane %v2066, 5
        %v2906 = vsel %vm1266, %v2904, %v2905
        %v2907 = vrot.slane %v2765, 5
        %v2908 = vrot.slane %v2907, 4
        %v2909 = vrot.slane %v2068, 5
        %v2910 = vsel %vm1266, %v2908, %v2909
        %v2911 = vrot.slane %v2909, 4
        %v2912 = vrot.slane %v2069, 5
        %v2913 = vsel %vm1266, %v2911, %v2912
        %v2914 = vrot.slane %v2766, 5
        %v2915 = vrot.slane %v2914, 4
        %v2916 = vrot.slane %v2071, 5
        %v2917 = vsel %vm1266, %v2915, %v2916
        %v2918 = vrot.slane %v2916, 4
        %v2919 = vrot.slane %v2072, 5
        %v2920 = vsel %vm1266, %v2918, %v2919
        %v2921 = vrot.slane %v2767, 5
        %v2922 = vrot.slane %v2921, 4
        %v2923 = vrot.slane %v2074, 5
        %v2924 = vsel %vm1266, %v2922, %v2923
        %v2925 = vrot.slane %v2923, 4
        %v2926 = vrot.slane %v2075, 5
        %v2927 = vsel %vm1266, %v2925, %v2926
        %v2928 = vunpack.c.l.b16 %v2819
        %v2929 = vunpack.c.l.b16 %v2822
        %v2930 = vunpack.c.l.b16 %v2826
        %v2931 = vunpack.c.l.b16 %v2829
        %v2932 = vunpack.c.l.b16 %v2833
        %v2933 = vunpack.c.l.b16 %v2836
        %v2934 = vunpack.c.l.b16 %v2840
        %v2935 = vunpack.c.l.b16 %v2843
        %v2936 = vunpack.c.l.b16 %v2847
        %v2937 = vunpack.c.l.b16 %v2850
        %v2938 = vunpack.c.l.b16 %v2854
        %v2939 = vunpack.c.l.b16 %v2857
        %v2940 = vunpack.c.l.b16 %v2861
        %v2941 = vunpack.c.l.b16 %v2864
        %v2942 = vunpack.c.l.b16 %v2868
        %v2943 = vunpack.c.l.b16 %v2871
        %v2944 = vunpack.c.l.b16 %v2875
        %v2945 = vunpack.c.l.b16 %v2878
        %v2946 = vunpack.c.l.b16 %v2882
        %v2947 = vunpack.c.l.b16 %v2885
        %v2948 = vunpack.c.l.b16 %v2889
        %v2949 = vunpack.c.l.b16 %v2892
        %v2950 = vunpack.c.l.b16 %v2896
        %v2951 = vunpack.c.l.b16 %v2899
        %v2952 = vunpack.c.l.b16 %v2903
        %v2953 = vunpack.c.l.b16 %v2906
        %v2954 = vunpack.c.l.b16 %v2910
        %v2955 = vunpack.c.l.b16 %v2913
        %v2956 = vunpack.c.l.b16 %v2917
        %v2957 = vunpack.c.l.b16 %v2920
        %v2958 = vunpack.c.l.b16 %v2924
        %v2959 = vunpack.c.l.b16 %v2927
        %v2960 = vpack.c.b16 %v2929, %v2928
        %v2961 = vpack.c.b16 %v2931, %v2930
        %v2962 = vpack.c.b16 %v2933, %v2932
        %v2963 = vpack.c.b16 %v2935, %v2934
        %v2964 = vpack.c.b16 %v2937, %v2936
        %v2965 = vpack.c.b16 %v2939, %v2938
        %v2966 = vpack.c.b16 %v2941, %v2940
        %v2967 = vpack.c.b16 %v2943, %v2942
        %v2968 = vpack.c.b16 %v2945, %v2944
        %v2969 = vpack.c.b16 %v2947, %v2946
        %v2970 = vpack.c.b16 %v2949, %v2948
        %v2971 = vpack.c.b16 %v2951, %v2950
        %v2972 = vpack.c.b16 %v2953, %v2952
        %v2973 = vpack.c.b16 %v2955, %v2954
        %v2974 = vpack.c.b16 %v2957, %v2956
        %v2975 = vpack.c.b16 %v2959, %v2958
        %v2977 = vsel %vm710, %v2960, 0
        %v2980 = vsel %vm710, %v2961, 0
        %v2983 = vsel %vm710, %v2962, 0
        %v2986 = vsel %vm710, %v2963, 0
        %v2989 = vsel %vm710, %v2964, 0
        %v2992 = vsel %vm710, %v2965, 0
        %v2995 = vsel %vm710, %v2966, 0
        %v2998 = vsel %vm710, %v2967, 0
        %v3001 = vsel %vm710, %v2968, 0
        %v3004 = vsel %vm710, %v2969, 0
        %v3007 = vsel %vm710, %v2970, 0
        %v3010 = vsel %vm710, %v2971, 0
        %v3013 = vsel %vm710, %v2972, 0
        %v3016 = vsel %vm710, %v2973, 0
        %v3019 = vsel %vm710, %v2974, 0
        %v3022 = vsel %vm710, %v2975, 0
        %v3025 = vsel %vm759, %v223, 0
        %3027 = vmatprep.subr.bf16.mxu0 0
        %3028 = vmatpush1.bf16.msra.mxu0 %v3025
        %3029 = vmatprep.subr.bf16.mxu0 0
        %3030 = vmatpush1.bf16.msra.mxu0 0
        %3031 = vmatprep.subr.bf16.mxu0 0
        %3032 = vmatpush1.bf16.msra.mxu0 0
        %3033 = vmatprep.subr.bf16.mxu0 0
        %3034 = vmatpush1.bf16.msra.mxu0 0
        %3035 = vmatprep.subr.bf16.mxu0 0
        %3036 = vmatpush1.bf16.msra.mxu0 0
        %3037 = vmatprep.subr.bf16.mxu0 0
        %3038 = vmatpush1.bf16.msra.mxu0 0
        %3039 = vmatprep.subr.bf16.mxu0 0
        %3040 = vmatpush1.bf16.msra.mxu0 0
        %3041 = vmatprep.subr.bf16.mxu0 0
        %3042 = vmatpush1.bf16.msra.mxu0 0
        %3043 = vmatprep.subr.bf16.mxu0 0
        %3044 = vmatpush1.bf16.msra.mxu0 0
        %3045 = vmatprep.subr.bf16.mxu0 0
        %3046 = vmatpush1.bf16.msra.mxu0 0
        %3047 = vmatprep.subr.bf16.mxu0 0
        %3048 = vmatpush1.bf16.msra.mxu0 0
        %3049 = vmatprep.subr.bf16.mxu0 0
        %3050 = vmatpush1.bf16.msra.mxu0 0
        %3051 = vmatprep.subr.bf16.mxu0 0
        %3052 = vmatpush1.bf16.msra.mxu0 0
        %3053 = vmatprep.subr.bf16.mxu0 0
        %3054 = vmatpush1.bf16.msra.mxu0 0
        %3055 = vmatprep.subr.bf16.mxu0 0
        %3056 = vmatpush1.bf16.msra.mxu0 0
        %3057 = vmatprep.subr.bf16.mxu0 0
        %3058 = vmatpush1.bf16.msra.mxu0 0
        %3059 = vmatprep.mubr.bf16.mxu0 0
        %3060 = vmatmul.mubr.bf16.gmra.mrb[0].mxu0 %v2977
        %v3061 = vpop.f32.mrb[0].mxu0
        %v3062 = vadd.f32 0.0, %v3061
        %v3063 = vpop.f32.mrb[0].mxu0
        %v3064 = vpop.f32.mrb[0].mxu0
        %v3065 = vadd.f32 0.0, %v3064
        %v3066 = vpop.f32.mrb[0].mxu0
        %3067 = vmatprep.mubr.bf16.mxu0 0
        %3068 = vmatmul.mubr.bf16.gmra.mrb[0].mxu0 %v2980
        %v3069 = vpop.f32.mrb[0].mxu0
        %v3070 = vadd.f32 0.0, %v3069
        %v3071 = vpop.f32.mrb[0].mxu0
        %v3072 = vpop.f32.mrb[0].mxu0
        %v3073 = vadd.f32 0.0, %v3072
        %v3074 = vpop.f32.mrb[0].mxu0
        %3075 = vmatprep.mubr.bf16.mxu0 0
        %3076 = vmatmul.mubr.bf16.gmra.mrb[0].mxu0 %v2983
        %v3077 = vpop.f32.mrb[0].mxu0
        %v3078 = vadd.f32 0.0, %v3077
        %v3079 = vpop.f32.mrb[0].mxu0
        %v3080 = vpop.f32.mrb[0].mxu0
        %v3081 = vadd.f32 0.0, %v3080
        %v3082 = vpop.f32.mrb[0].mxu0
        %3083 = vmatprep.mubr.bf16.mxu0 0
        %3084 = vmatmul.mubr.bf16.gmra.mrb[0].mxu0 %v2986
        %v3085 = vpop.f32.mrb[0].mxu0
        %v3086 = vadd.f32 0.0, %v3085
        %v3087 = vpop.f32.mrb[0].mxu0
        %v3088 = vpop.f32.mrb[0].mxu0
        %v3089 = vadd.f32 0.0, %v3088
        %v3090 = vpop.f32.mrb[0].mxu0
        %3091 = vmatprep.mubr.bf16.mxu0 0
        %3092 = vmatmul.mubr.bf16.gmra.mrb[0].mxu0 %v2989
        %v3093 = vpop.f32.mrb[0].mxu0
        %v3094 = vadd.f32 0.0, %v3093
        %v3095 = vpop.f32.mrb[0].mxu0
        %v3096 = vpop.f32.mrb[0].mxu0
        %v3097 = vadd.f32 0.0, %v3096
        %v3098 = vpop.f32.mrb[0].mxu0
        %3099 = vmatprep.mubr.bf16.mxu0 0
        %3100 = vmatmul.mubr.bf16.gmra.mrb[0].mxu0 %v2992
        %v3101 = vpop.f32.mrb[0].mxu0
        %v3102 = vadd.f32 0.0, %v3101
        %v3103 = vpop.f32.mrb[0].mxu0
        %v3104 = vpop.f32.mrb[0].mxu0
        %v3105 = vadd.f32 0.0, %v3104
        %v3106 = vpop.f32.mrb[0].mxu0
        %3107 = vmatprep.mubr.bf16.mxu0 0
        %3108 = vmatmul.mubr.bf16.gmra.mrb[0].mxu0 %v2995
        %v3109 = vpop.f32.mrb[0].mxu0
        %v3110 = vadd.f32 0.0, %v3109
        %v3111 = vpop.f32.mrb[0].mxu0
        %v3112 = vpop.f32.mrb[0].mxu0
        %v3113 = vadd.f32 0.0, %v3112
        %v3114 = vpop.f32.mrb[0].mxu0
        %3115 = vmatprep.mubr.bf16.mxu0 0
        %3116 = vmatmul.mubr.bf16.gmra.mrb[0].mxu0 %v2998
        %v3117 = vpop.f32.mrb[0].mxu0
        %v3118 = vadd.f32 0.0, %v3117
        %v3119 = vpop.f32.mrb[0].mxu0
        %v3120 = vpop.f32.mrb[0].mxu0
        %v3121 = vadd.f32 0.0, %v3120
        %v3122 = vpop.f32.mrb[0].mxu0
        %3123 = vmatprep.mubr.bf16.mxu0 0
        %3124 = vmatmul.mubr.bf16.gmra.mrb[0].mxu0 %v3001
        %v3125 = vpop.f32.mrb[0].mxu0
        %v3126 = vadd.f32 0.0, %v3125
        %v3127 = vpop.f32.mrb[0].mxu0
        %v3128 = vpop.f32.mrb[0].mxu0
        %v3129 = vadd.f32 0.0, %v3128
        %v3130 = vpop.f32.mrb[0].mxu0
        %3131 = vmatprep.mubr.bf16.mxu0 0
        %3132 = vmatmul.mubr.bf16.gmra.mrb[0].mxu0 %v3004
        %v3133 = vpop.f32.mrb[0].mxu0
        %v3134 = vadd.f32 0.0, %v3133
        %v3135 = vpop.f32.mrb[0].mxu0
        %v3136 = vpop.f32.mrb[0].mxu0
        %v3137 = vadd.f32 0.0, %v3136
        %v3138 = vpop.f32.mrb[0].mxu0
        %3139 = vmatprep.mubr.bf16.mxu0 0
        %3140 = vmatmul.mubr.bf16.gmra.mrb[0].mxu0 %v3007
        %v3141 = vpop.f32.mrb[0].mxu0
        %v3142 = vadd.f32 0.0, %v3141
        %v3143 = vpop.f32.mrb[0].mxu0
        %v3144 = vpop.f32.mrb[0].mxu0
        %v3145 = vadd.f32 0.0, %v3144
        %v3146 = vpop.f32.mrb[0].mxu0
        %3147 = vmatprep.mubr.bf16.mxu0 0
        %3148 = vmatmul.mubr.bf16.gmra.mrb[0].mxu0 %v3010
        %v3149 = vpop.f32.mrb[0].mxu0
        %v3150 = vadd.f32 0.0, %v3149
        %v3151 = vpop.f32.mrb[0].mxu0
        %v3152 = vpop.f32.mrb[0].mxu0
        %v3153 = vadd.f32 0.0, %v3152
        %v3154 = vpop.f32.mrb[0].mxu0
        %3155 = vmatprep.mubr.bf16.mxu0 0
        %3156 = vmatmul.mubr.bf16.gmra.mrb[0].mxu0 %v3013
        %v3157 = vpop.f32.mrb[0].mxu0
        %v3158 = vadd.f32 0.0, %v3157
        %v3159 = vpop.f32.mrb[0].mxu0
        %v3160 = vpop.f32.mrb[0].mxu0
        %v3161 = vadd.f32 0.0, %v3160
        %v3162 = vpop.f32.mrb[0].mxu0
        %3163 = vmatprep.mubr.bf16.mxu0 0
        %3164 = vmatmul.mubr.bf16.gmra.mrb[0].mxu0 %v3016
        %v3165 = vpop.f32.mrb[0].mxu0
        %v3166 = vadd.f32 0.0, %v3165
        %v3167 = vpop.f32.mrb[0].mxu0
        %v3168 = vpop.f32.mrb[0].mxu0
        %v3169 = vadd.f32 0.0, %v3168
        %v3170 = vpop.f32.mrb[0].mxu0
        %3171 = vmatprep.mubr.bf16.mxu0 0
        %3172 = vmatmul.mubr.bf16.gmra.mrb[0].mxu0 %v3019
        %v3173 = vpop.f32.mrb[0].mxu0
        %v3174 = vadd.f32 0.0, %v3173
        %v3175 = vpop.f32.mrb[0].mxu0
        %v3176 = vpop.f32.mrb[0].mxu0
        %v3177 = vadd.f32 0.0, %v3176
        %v3178 = vpop.f32.mrb[0].mxu0
        %3179 = vmatprep.mubr.bf16.mxu0 0
        %3180 = vmatmul.mubr.bf16.gmra.mrb[0].mxu0 %v3022
        %v3181 = vpop.f32.mrb[0].mxu0
        %v3182 = vadd.f32 0.0, %v3181
        %v3183 = vpop.f32.mrb[0].mxu0
        %v3184 = vpop.f32.mrb[0].mxu0
        %v3185 = vadd.f32 0.0, %v3184
        %v3186 = vpop.f32.mrb[0].mxu0
        %3187 = vdwg.mxu0
        %v3188 = vadd.f32 %v2720, %v3062
        %v3189 = vadd.f32 %v2721, %v3065
        %v3190 = vadd.f32 %v2722, %v3070
        %v3191 = vadd.f32 %v2723, %v3073
        %v3192 = vadd.f32 %v2724, %v3078
        %v3193 = vadd.f32 %v2725, %v3081
        %v3194 = vadd.f32 %v2726, %v3086
        %v3195 = vadd.f32 %v2727, %v3089
        %v3196 = vadd.f32 %v2728, %v3094
        %v3197 = vadd.f32 %v2729, %v3097
        %v3198 = vadd.f32 %v2730, %v3102
        %v3199 = vadd.f32 %v2731, %v3105
        %v3200 = vadd.f32 %v2732, %v3110
        %v3201 = vadd.f32 %v2733, %v3113
        %v3202 = vadd.f32 %v2734, %v3118
        %v3203 = vadd.f32 %v2735, %v3121
        %v3204 = vadd.f32 %v2736, %v3126
        %v3205 = vadd.f32 %v2737, %v3129
        %v3206 = vadd.f32 %v2738, %v3134
        %v3207 = vadd.f32 %v2739, %v3137
        %v3208 = vadd.f32 %v2740, %v3142
        %v3209 = vadd.f32 %v2741, %v3145
        %v3210 = vadd.f32 %v2742, %v3150
        %v3211 = vadd.f32 %v2743, %v3153
        %v3212 = vadd.f32 %v2744, %v3158
        %v3213 = vadd.f32 %v2745, %v3161
        %v3214 = vadd.f32 %v2746, %v3166
        %v3215 = vadd.f32 %v2747, %v3169
        %v3216 = vadd.f32 %v2748, %v3174
        %v3217 = vadd.f32 %v2749, %v3177
        %v3218 = vadd.f32 %v2750, %v3182
        %v3219 = vadd.f32 %v2751, %v3185
        %s3220 = scalar_lea.vmem %s211, 24
        %v3221 = vld [vmem:[%s3220] sm:$0xf]
        %v3222 = vld [vmem:[%s3220 + $0x4] sm:$0xf]
        %v3223 = vld [vmem:[%s3220 + $0xc] sm:$0xf]
        %v3224 = vld [vmem:[%s3220 + $0x10] sm:$0xf]
        %v3225 = vld [vmem:[%s3220 + $0x18] sm:$0xf]
        %v3226 = vld [vmem:[%s3220 + $0x1c] sm:$0xf]
        %v3227 = vld [vmem:[%s3220 + $0x24] sm:$0xf]
        %v3228 = vld [vmem:[%s3220 + $0x28] sm:$0xf]
        %v3229 = vld [vmem:[%s3220 + $0x30] sm:$0xf]
        %v3230 = vld [vmem:[%s3220 + $0x34] sm:$0xf]
        %v3231 = vld [vmem:[%s3220 + $0x3c] sm:$0xf]
        %v3232 = vld [vmem:[%s3220 + $0x40] sm:$0xf]
        %v3233 = vld [vmem:[%s3220 + $0x48] sm:$0xf]
        %v3234 = vld [vmem:[%s3220 + $0x4c] sm:$0xf]
        %v3235 = vld [vmem:[%s3220 + $0x54] sm:$0xf]
        %v3236 = vld [vmem:[%s3220 + $0x58] sm:$0xf]
        %v3237 = vld [vmem:[%s3220 + $0x60] sm:$0xf]
        %v3238 = vld [vmem:[%s3220 + $0x64] sm:$0xf]
        %v3239 = vld [vmem:[%s3220 + $0x6c] sm:$0xf]
        %v3240 = vld [vmem:[%s3220 + $0x70] sm:$0xf]
        %v3241 = vld [vmem:[%s3220 + $0x78] sm:$0xf]
        %v3242 = vld [vmem:[%s3220 + $0x7c] sm:$0xf]
        %v3243 = vld [vmem:[%s3220 + $0x84] sm:$0xf]
        %v3244 = vld [vmem:[%s3220 + $0x88] sm:$0xf]
        %v3245 = vld [vmem:[%s3220 + $0x90] sm:$0xf]
        %v3246 = vld [vmem:[%s3220 + $0x94] sm:$0xf]
        %v3247 = vld [vmem:[%s3220 + $0x9c] sm:$0xf]
        %v3248 = vld [vmem:[%s3220 + $0xa0] sm:$0xf]
        %v3249 = vld [vmem:[%s3220 + $0xa8] sm:$0xf]
        %v3250 = vld [vmem:[%s3220 + $0xac] sm:$0xf]
        %v3251 = vld [vmem:[%s3220 + $0xb4] sm:$0xf]
        %v3252 = vld [vmem:[%s3220 + $0xb8] sm:$0xf]
        %v3285 = vunpack.c.l.b16 %v3221
        %v3286 = vunpack.c.l.b16 %v3222
        %v3287 = vunpack.c.l.b16 %v3223
        %v3288 = vunpack.c.l.b16 %v3224
        %v3289 = vunpack.c.l.b16 %v3225
        %v3290 = vunpack.c.l.b16 %v3226
        %v3291 = vunpack.c.l.b16 %v3227
        %v3292 = vunpack.c.l.b16 %v3228
        %v3293 = vunpack.c.l.b16 %v3229
        %v3294 = vunpack.c.l.b16 %v3230
        %v3295 = vunpack.c.l.b16 %v3231
        %v3296 = vunpack.c.l.b16 %v3232
        %v3297 = vunpack.c.l.b16 %v3233
        %v3298 = vunpack.c.l.b16 %v3234
        %v3299 = vunpack.c.l.b16 %v3235
        %v3300 = vunpack.c.l.b16 %v3236
        %v3301 = vunpack.c.l.b16 %v3237
        %v3302 = vunpack.c.l.b16 %v3238
        %v3303 = vunpack.c.l.b16 %v3239
        %v3304 = vunpack.c.l.b16 %v3240
        %v3305 = vunpack.c.l.b16 %v3241
        %v3306 = vunpack.c.l.b16 %v3242
        %v3307 = vunpack.c.l.b16 %v3243
        %v3308 = vunpack.c.l.b16 %v3244
        %v3309 = vunpack.c.l.b16 %v3245
        %v3310 = vunpack.c.l.b16 %v3246
        %v3311 = vunpack.c.l.b16 %v3247
        %v3312 = vunpack.c.l.b16 %v3248
        %v3313 = vunpack.c.l.b16 %v3249
        %v3314 = vunpack.c.l.b16 %v3250
        %v3315 = vunpack.c.l.b16 %v3251
        %v3316 = vunpack.c.l.b16 %v3252
        %v3317 = vpack.c.b16 %v3286, %v3285
        %v3318 = vpack.c.b16 %v3288, %v3287
        %v3319 = vpack.c.b16 %v3290, %v3289
        %v3320 = vpack.c.b16 %v3292, %v3291
        %v3321 = vpack.c.b16 %v3294, %v3293
        %v3322 = vpack.c.b16 %v3296, %v3295
        %v3323 = vpack.c.b16 %v3298, %v3297
        %v3324 = vpack.c.b16 %v3300, %v3299
        %v3325 = vpack.c.b16 %v3302, %v3301
        %v3326 = vpack.c.b16 %v3304, %v3303
        %v3327 = vpack.c.b16 %v3306, %v3305
        %v3328 = vpack.c.b16 %v3308, %v3307
        %v3329 = vpack.c.b16 %v3310, %v3309
        %v3330 = vpack.c.b16 %v3312, %v3311
        %v3331 = vpack.c.b16 %v3314, %v3313
        %v3332 = vpack.c.b16 %v3316, %v3315
        %v3334 = vsel %vm710, %v3317, 0
        %v3337 = vsel %vm710, %v3318, 0
        %v3340 = vsel %vm710, %v3319, 0
        %v3343 = vsel %vm710, %v3320, 0
        %v3346 = vsel %vm710, %v3321, 0
        %v3349 = vsel %vm710, %v3322, 0
        %v3352 = vsel %vm710, %v3323, 0
        %v3355 = vsel %vm710, %v3324, 0
        %v3358 = vsel %vm710, %v3325, 0
        %v3361 = vsel %vm710, %v3326, 0
        %v3364 = vsel %vm710, %v3327, 0
        %v3367 = vsel %vm710, %v3328, 0
        %v3370 = vsel %vm710, %v3329, 0
        %v3373 = vsel %vm710, %v3330, 0
        %v3376 = vsel %vm710, %v3331, 0
        %v3379 = vsel %vm710, %v3332, 0
        %v3382 = vsel %vm759, %v224, 0
        %3384 = vmatprep.subr.bf16.mxu0 0
        %3385 = vmatpush1.bf16.msra.mxu0 %v3382
        %3386 = vmatprep.subr.bf16.mxu0 0
        %3387 = vmatpush1.bf16.msra.mxu0 0
        %3388 = vmatprep.subr.bf16.mxu0 0
        %3389 = vmatpush1.bf16.msra.mxu0 0
        %3390 = vmatprep.subr.bf16.mxu0 0
        %3391 = vmatpush1.bf16.msra.mxu0 0
        %3392 = vmatprep.subr.bf16.mxu0 0
        %3393 = vmatpush1.bf16.msra.mxu0 0
        %3394 = vmatprep.subr.bf16.mxu0 0
        %3395 = vmatpush1.bf16.msra.mxu0 0
        %3396 = vmatprep.subr.bf16.mxu0 0
        %3397 = vmatpush1.bf16.msra.mxu0 0
        %3398 = vmatprep.subr.bf16.mxu0 0
        %3399 = vmatpush1.bf16.msra.mxu0 0
        %3400 = vmatprep.subr.bf16.mxu0 0
        %3401 = vmatpush1.bf16.msra.mxu0 0
        %3402 = vmatprep.subr.bf16.mxu0 0
        %3403 = vmatpush1.bf16.msra.mxu0 0
        %3404 = vmatprep.subr.bf16.mxu0 0
        %3405 = vmatpush1.bf16.msra.mxu0 0
        %3406 = vmatprep.subr.bf16.mxu0 0
        %3407 = vmatpush1.bf16.msra.mxu0 0
        %3408 = vmatprep.subr.bf16.mxu0 0
        %3409 = vmatpush1.bf16.msra.mxu0 0
        %3410 = vmatprep.subr.bf16.mxu0 0
        %3411 = vmatpush1.bf16.msra.mxu0 0
        %3412 = vmatprep.subr.bf16.mxu0 0
        %3413 = vmatpush1.bf16.msra.mxu0 0
        %3414 = vmatprep.subr.bf16.mxu0 0
        %3415 = vmatpush1.bf16.msra.mxu0 0
        %3416 = vmatprep.mubr.bf16.mxu0 0
        %3417 = vmatmul.mubr.bf16.gmra.mrb[0].mxu0 %v3334
        %v3418 = vpop.f32.mrb[0].mxu0
        %v3419 = vadd.f32 0.0, %v3418
        %v3420 = vpop.f32.mrb[0].mxu0
        %v3421 = vpop.f32.mrb[0].mxu0
        %v3422 = vadd.f32 0.0, %v3421
        %v3423 = vpop.f32.mrb[0].mxu0
        %3424 = vmatprep.mubr.bf16.mxu0 0
        %3425 = vmatmul.mubr.bf16.gmra.mrb[0].mxu0 %v3337
        %v3426 = vpop.f32.mrb[0].mxu0
        %v3427 = vadd.f32 0.0, %v3426
        %v3428 = vpop.f32.mrb[0].mxu0
        %v3429 = vpop.f32.mrb[0].mxu0
        %v3430 = vadd.f32 0.0, %v3429
        %v3431 = vpop.f32.mrb[0].mxu0
        %3432 = vmatprep.mubr.bf16.mxu0 0
        %3433 = vmatmul.mubr.bf16.gmra.mrb[0].mxu0 %v3340
        %v3434 = vpop.f32.mrb[0].mxu0
        %v3435 = vadd.f32 0.0, %v3434
        %v3436 = vpop.f32.mrb[0].mxu0
        %v3437 = vpop.f32.mrb[0].mxu0
        %v3438 = vadd.f32 0.0, %v3437
        %v3439 = vpop.f32.mrb[0].mxu0
        %3440 = vmatprep.mubr.bf16.mxu0 0
        %3441 = vmatmul.mubr.bf16.gmra.mrb[0].mxu0 %v3343
        %v3442 = vpop.f32.mrb[0].mxu0
        %v3443 = vadd.f32 0.0, %v3442
        %v3444 = vpop.f32.mrb[0].mxu0
        %v3445 = vpop.f32.mrb[0].mxu0
        %v3446 = vadd.f32 0.0, %v3445
        %v3447 = vpop.f32.mrb[0].mxu0
        %3448 = vmatprep.mubr.bf16.mxu0 0
        %3449 = vmatmul.mubr.bf16.gmra.mrb[0].mxu0 %v3346
        %v3450 = vpop.f32.mrb[0].mxu0
        %v3451 = vadd.f32 0.0, %v3450
        %v3452 = vpop.f32.mrb[0].mxu0
        %v3453 = vpop.f32.mrb[0].mxu0
        %v3454 = vadd.f32 0.0, %v3453
        %v3455 = vpop.f32.mrb[0].mxu0
        %3456 = vmatprep.mubr.bf16.mxu0 0
        %3457 = vmatmul.mubr.bf16.gmra.mrb[0].mxu0 %v3349
        %v3458 = vpop.f32.mrb[0].mxu0
        %v3459 = vadd.f32 0.0, %v3458
        %v3460 = vpop.f32.mrb[0].mxu0
        %v3461 = vpop.f32.mrb[0].mxu0
        %v3462 = vadd.f32 0.0, %v3461
        %v3463 = vpop.f32.mrb[0].mxu0
        %3464 = vmatprep.mubr.bf16.mxu0 0
        %3465 = vmatmul.mubr.bf16.gmra.mrb[0].mxu0 %v3352
        %v3466 = vpop.f32.mrb[0].mxu0
        %v3467 = vadd.f32 0.0, %v3466
        %v3468 = vpop.f32.mrb[0].mxu0
        %v3469 = vpop.f32.mrb[0].mxu0
        %v3470 = vadd.f32 0.0, %v3469
        %v3471 = vpop.f32.mrb[0].mxu0
        %3472 = vmatprep.mubr.bf16.mxu0 0
        %3473 = vmatmul.mubr.bf16.gmra.mrb[0].mxu0 %v3355
        %v3474 = vpop.f32.mrb[0].mxu0
        %v3475 = vadd.f32 0.0, %v3474
        %v3476 = vpop.f32.mrb[0].mxu0
        %v3477 = vpop.f32.mrb[0].mxu0
        %v3478 = vadd.f32 0.0, %v3477
        %v3479 = vpop.f32.mrb[0].mxu0
        %3480 = vmatprep.mubr.bf16.mxu0 0
        %3481 = vmatmul.mubr.bf16.gmra.mrb[0].mxu0 %v3358
        %v3482 = vpop.f32.mrb[0].mxu0
        %v3483 = vadd.f32 0.0, %v3482
        %v3484 = vpop.f32.mrb[0].mxu0
        %v3485 = vpop.f32.mrb[0].mxu0
        %v3486 = vadd.f32 0.0, %v3485
        %v3487 = vpop.f32.mrb[0].mxu0
        %3488 = vmatprep.mubr.bf16.mxu0 0
        %3489 = vmatmul.mubr.bf16.gmra.mrb[0].mxu0 %v3361
        %v3490 = vpop.f32.mrb[0].mxu0
        %v3491 = vadd.f32 0.0, %v3490
        %v3492 = vpop.f32.mrb[0].mxu0
        %v3493 = vpop.f32.mrb[0].mxu0
        %v3494 = vadd.f32 0.0, %v3493
        %v3495 = vpop.f32.mrb[0].mxu0
        %3496 = vmatprep.mubr.bf16.mxu0 0
        %3497 = vmatmul.mubr.bf16.gmra.mrb[0].mxu0 %v3364
        %v3498 = vpop.f32.mrb[0].mxu0
        %v3499 = vadd.f32 0.0, %v3498
        %v3500 = vpop.f32.mrb[0].mxu0
        %v3501 = vpop.f32.mrb[0].mxu0
        %v3502 = vadd.f32 0.0, %v3501
        %v3503 = vpop.f32.mrb[0].mxu0
        %3504 = vmatprep.mubr.bf16.mxu0 0
        %3505 = vmatmul.mubr.bf16.gmra.mrb[0].mxu0 %v3367
        %v3506 = vpop.f32.mrb[0].mxu0
        %v3507 = vadd.f32 0.0, %v3506
        %v3508 = vpop.f32.mrb[0].mxu0
        %v3509 = vpop.f32.mrb[0].mxu0
        %v3510 = vadd.f32 0.0, %v3509
        %v3511 = vpop.f32.mrb[0].mxu0
        %3512 = vmatprep.mubr.bf16.mxu0 0
        %3513 = vmatmul.mubr.bf16.gmra.mrb[0].mxu0 %v3370
        %v3514 = vpop.f32.mrb[0].mxu0
        %v3515 = vadd.f32 0.0, %v3514
        %v3516 = vpop.f32.mrb[0].mxu0
        %v3517 = vpop.f32.mrb[0].mxu0
        %v3518 = vadd.f32 0.0, %v3517
        %v3519 = vpop.f32.mrb[0].mxu0
        %3520 = vmatprep.mubr.bf16.mxu0 0
        %3521 = vmatmul.mubr.bf16.gmra.mrb[0].mxu0 %v3373
        %v3522 = vpop.f32.mrb[0].mxu0
        %v3523 = vadd.f32 0.0, %v3522
        %v3524 = vpop.f32.mrb[0].mxu0
        %v3525 = vpop.f32.mrb[0].mxu0
        %v3526 = vadd.f32 0.0, %v3525
        %v3527 = vpop.f32.mrb[0].mxu0
        %3528 = vmatprep.mubr.bf16.mxu0 0
        %3529 = vmatmul.mubr.bf16.gmra.mrb[0].mxu0 %v3376
        %v3530 = vpop.f32.mrb[0].mxu0
        %v3531 = vadd.f32 0.0, %v3530
        %v3532 = vpop.f32.mrb[0].mxu0
        %v3533 = vpop.f32.mrb[0].mxu0
        %v3534 = vadd.f32 0.0, %v3533
        %v3535 = vpop.f32.mrb[0].mxu0
        %3536 = vmatprep.mubr.bf16.mxu0 0
        %3537 = vmatmul.mubr.bf16.gmra.mrb[0].mxu0 %v3379
        %v3538 = vpop.f32.mrb[0].mxu0
        %v3539 = vadd.f32 0.0, %v3538
        %v3540 = vpop.f32.mrb[0].mxu0
        %v3541 = vpop.f32.mrb[0].mxu0
        %v3542 = vadd.f32 0.0, %v3541
        %v3543 = vpop.f32.mrb[0].mxu0
        %3544 = vdwg.mxu0
        %v3545 = vadd.f32 %v3188, %v3419
        %v3546 = vadd.f32 %v3189, %v3422
        %v3547 = vadd.f32 %v3190, %v3427
        %v3548 = vadd.f32 %v3191, %v3430
        %v3549 = vadd.f32 %v3192, %v3435
        %v3550 = vadd.f32 %v3193, %v3438
        %v3551 = vadd.f32 %v3194, %v3443
        %v3552 = vadd.f32 %v3195, %v3446
        %v3553 = vadd.f32 %v3196, %v3451
        %v3554 = vadd.f32 %v3197, %v3454
        %v3555 = vadd.f32 %v3198, %v3459
        %v3556 = vadd.f32 %v3199, %v3462
        %v3557 = vadd.f32 %v3200, %v3467
        %v3558 = vadd.f32 %v3201, %v3470
        %v3559 = vadd.f32 %v3202, %v3475
        %v3560 = vadd.f32 %v3203, %v3478
        %v3561 = vadd.f32 %v3204, %v3483
        %v3562 = vadd.f32 %v3205, %v3486
        %v3563 = vadd.f32 %v3206, %v3491
        %v3564 = vadd.f32 %v3207, %v3494
        %v3565 = vadd.f32 %v3208, %v3499
        %v3566 = vadd.f32 %v3209, %v3502
        %v3567 = vadd.f32 %v3210, %v3507
        %v3568 = vadd.f32 %v3211, %v3510
        %v3569 = vadd.f32 %v3212, %v3515
        %v3570 = vadd.f32 %v3213, %v3518
        %v3571 = vadd.f32 %v3214, %v3523
        %v3572 = vadd.f32 %v3215, %v3526
        %v3573 = vadd.f32 %v3216, %v3531
        %v3574 = vadd.f32 %v3217, %v3534
        %v3575 = vadd.f32 %v3218, %v3539
        %v3576 = vadd.f32 %v3219, %v3542
        %v3577 = vld [vmem:[%s3220] sm:$0xf]
        %v3578 = vld [vmem:[%s3220 + $0x4] sm:$0xf]
        %v3579 = vld [vmem:[%s3220 + $0x8] sm:$0x1]
        %v3580 = vld [vmem:[%s3220 + $0xc] sm:$0xf]
        %v3581 = vld [vmem:[%s3220 + $0x10] sm:$0xf]
        %v3582 = vld [vmem:[%s3220 + $0x14] sm:$0x1]
        %v3583 = vld [vmem:[%s3220 + $0x18] sm:$0xf]
        %v3584 = vld [vmem:[%s3220 + $0x1c] sm:$0xf]
        %v3585 = vld [vmem:[%s3220 + $0x20] sm:$0x1]
        %v3586 = vld [vmem:[%s3220 + $0x24] sm:$0xf]
        %v3587 = vld [vmem:[%s3220 + $0x28] sm:$0xf]
        %v3588 = vld [vmem:[%s3220 + $0x2c] sm:$0x1]
        %v3589 = vld [vmem:[%s3220 + $0x30] sm:$0xf]
        %v3590 = vld [vmem:[%s3220 + $0x34] sm:$0xf]
        %v3591 = vld [vmem:[%s3220 + $0x38] sm:$0x1]
        %v3592 = vld [vmem:[%s3220 + $0x3c] sm:$0xf]
        %v3593 = vld [vmem:[%s3220 + $0x40] sm:$0xf]
        %v3594 = vld [vmem:[%s3220 + $0x44] sm:$0x1]
        %v3595 = vld [vmem:[%s3220 + $0x48] sm:$0xf]
        %v3596 = vld [vmem:[%s3220 + $0x4c] sm:$0xf]
        %v3597 = vld [vmem:[%s3220 + $0x50] sm:$0x1]
        %v3598 = vld [vmem:[%s3220 + $0x54] sm:$0xf]
        %v3599 = vld [vmem:[%s3220 + $0x58] sm:$0xf]
        %v3600 = vld [vmem:[%s3220 + $0x5c] sm:$0x1]
        %v3601 = vld [vmem:[%s3220 + $0x60] sm:$0xf]
        %v3602 = vld [vmem:[%s3220 + $0x64] sm:$0xf]
        %v3603 = vld [vmem:[%s3220 + $0x68] sm:$0x1]
        %v3604 = vld [vmem:[%s3220 + $0x6c] sm:$0xf]
        %v3605 = vld [vmem:[%s3220 + $0x70] sm:$0xf]
        %v3606 = vld [vmem:[%s3220 + $0x74] sm:$0x1]
        %v3607 = vld [vmem:[%s3220 + $0x78] sm:$0xf]
        %v3608 = vld [vmem:[%s3220 + $0x7c] sm:$0xf]
        %v3609 = vld [vmem:[%s3220 + $0x80] sm:$0x1]
        %v3610 = vld [vmem:[%s3220 + $0x84] sm:$0xf]
        %v3611 = vld [vmem:[%s3220 + $0x88] sm:$0xf]
        %v3612 = vld [vmem:[%s3220 + $0x8c] sm:$0x1]
        %v3613 = vld [vmem:[%s3220 + $0x90] sm:$0xf]
        %v3614 = vld [vmem:[%s3220 + $0x94] sm:$0xf]
        %v3615 = vld [vmem:[%s3220 + $0x98] sm:$0x1]
        %v3616 = vld [vmem:[%s3220 + $0x9c] sm:$0xf]
        %v3617 = vld [vmem:[%s3220 + $0xa0] sm:$0xf]
        %v3618 = vld [vmem:[%s3220 + $0xa4] sm:$0x1]
        %v3619 = vld [vmem:[%s3220 + $0xa8] sm:$0xf]
        %v3620 = vld [vmem:[%s3220 + $0xac] sm:$0xf]
        %v3621 = vld [vmem:[%s3220 + $0xb0] sm:$0x1]
        %v3622 = vld [vmem:[%s3220 + $0xb4] sm:$0xf]
        %v3623 = vld [vmem:[%s3220 + $0xb8] sm:$0xf]
        %v3624 = vld [vmem:[%s3220 + $0xbc] sm:$0x1]
        %v3626 = vshrl.u32 %v3577, 16
        %v3628 = vrot.slane %v3626, 4
        %v3629 = vshll.u32 %v3577, 16
        %v3631 = vrot.slane %v3629, 5
        %v3632 = vor.u32 %v3628, %v3631
        %v3633 = vrot.slane %v3632, 4
        %v3635 = vshll.u32 %v3578, 16
        %v3637 = vrot.slane %v3635, 5
        %v3638 = vsel %vm277, %v3633, %v3637
        %v3639 = vshrl.u32 %v3578, 16
        %v3641 = vrot.slane %v3639, 4
        %v3642 = vor.u32 %v3641, %v3637
        %v3643 = vrot.slane %v3642, 4
        %v3645 = vshll.u32 %v3579, 16
        %v3647 = vrot.slane %v3645, 5
        %v3648 = vsel %vm277, %v3643, %v3647
        %v3650 = vshrl.u32 %v3580, 16
        %v3652 = vrot.slane %v3650, 4
        %v3653 = vshll.u32 %v3580, 16
        %v3655 = vrot.slane %v3653, 5
        %v3656 = vor.u32 %v3652, %v3655
        %v3657 = vrot.slane %v3656, 4
        %v3659 = vshll.u32 %v3581, 16
        %v3661 = vrot.slane %v3659, 5
        %v3662 = vsel %vm277, %v3657, %v3661
        %v3663 = vshrl.u32 %v3581, 16
        %v3665 = vrot.slane %v3663, 4
        %v3666 = vor.u32 %v3665, %v3661
        %v3667 = vrot.slane %v3666, 4
        %v3669 = vshll.u32 %v3582, 16
        %v3671 = vrot.slane %v3669, 5
        %v3672 = vsel %vm277, %v3667, %v3671
        %v3674 = vshrl.u32 %v3583, 16
        %v3676 = vrot.slane %v3674, 4
        %v3677 = vshll.u32 %v3583, 16
        %v3679 = vrot.slane %v3677, 5
        %v3680 = vor.u32 %v3676, %v3679
        %v3681 = vrot.slane %v3680, 4
        %v3683 = vshll.u32 %v3584, 16
        %v3685 = vrot.slane %v3683, 5
        %v3686 = vsel %vm277, %v3681, %v3685
        %v3687 = vshrl.u32 %v3584, 16
        %v3689 = vrot.slane %v3687, 4
        %v3690 = vor.u32 %v3689, %v3685
        %v3691 = vrot.slane %v3690, 4
        %v3693 = vshll.u32 %v3585, 16
        %v3695 = vrot.slane %v3693, 5
        %v3696 = vsel %vm277, %v3691, %v3695
        %v3698 = vshrl.u32 %v3586, 16
        %v3700 = vrot.slane %v3698, 4
        %v3701 = vshll.u32 %v3586, 16
        %v3703 = vrot.slane %v3701, 5
        %v3704 = vor.u32 %v3700, %v3703
        %v3705 = vrot.slane %v3704, 4
        %v3707 = vshll.u32 %v3587, 16
        %v3709 = vrot.slane %v3707, 5
        %v3710 = vsel %vm277, %v3705, %v3709
        %v3711 = vshrl.u32 %v3587, 16
        %v3713 = vrot.slane %v3711, 4
        %v3714 = vor.u32 %v3713, %v3709
        %v3715 = vrot.slane %v3714, 4
        %v3717 = vshll.u32 %v3588, 16
        %v3719 = vrot.slane %v3717, 5
        %v3720 = vsel %vm277, %v3715, %v3719
        %v3722 = vshrl.u32 %v3589, 16
        %v3724 = vrot.slane %v3722, 4
        %v3725 = vshll.u32 %v3589, 16
        %v3727 = vrot.slane %v3725, 5
        %v3728 = vor.u32 %v3724, %v3727
        %v3729 = vrot.slane %v3728, 4
        %v3731 = vshll.u32 %v3590, 16
        %v3733 = vrot.slane %v3731, 5
        %v3734 = vsel %vm277, %v3729, %v3733
        %v3735 = vshrl.u32 %v3590, 16
        %v3737 = vrot.slane %v3735, 4
        %v3738 = vor.u32 %v3737, %v3733
        %v3739 = vrot.slane %v3738, 4
        %v3741 = vshll.u32 %v3591, 16
        %v3743 = vrot.slane %v3741, 5
        %v3744 = vsel %vm277, %v3739, %v3743
        %v3746 = vshrl.u32 %v3592, 16
        %v3748 = vrot.slane %v3746, 4
        %v3749 = vshll.u32 %v3592, 16
        %v3751 = vrot.slane %v3749, 5
        %v3752 = vor.u32 %v3748, %v3751
        %v3753 = vrot.slane %v3752, 4
        %v3755 = vshll.u32 %v3593, 16
        %v3757 = vrot.slane %v3755, 5
        %v3758 = vsel %vm277, %v3753, %v3757
        %v3759 = vshrl.u32 %v3593, 16
        %v3761 = vrot.slane %v3759, 4
        %v3762 = vor.u32 %v3761, %v3757
        %v3763 = vrot.slane %v3762, 4
        %v3765 = vshll.u32 %v3594, 16
        %v3767 = vrot.slane %v3765, 5
        %v3768 = vsel %vm277, %v3763, %v3767
        %v3770 = vshrl.u32 %v3595, 16
        %v3772 = vrot.slane %v3770, 4
        %v3773 = vshll.u32 %v3595, 16
        %v3775 = vrot.slane %v3773, 5
        %v3776 = vor.u32 %v3772, %v3775
        %v3777 = vrot.slane %v3776, 4
        %v3779 = vshll.u32 %v3596, 16
        %v3781 = vrot.slane %v3779, 5
        %v3782 = vsel %vm277, %v3777, %v3781
        %v3783 = vshrl.u32 %v3596, 16
        %v3785 = vrot.slane %v3783, 4
        %v3786 = vor.u32 %v3785, %v3781
        %v3787 = vrot.slane %v3786, 4
        %v3789 = vshll.u32 %v3597, 16
        %v3791 = vrot.slane %v3789, 5
        %v3792 = vsel %vm277, %v3787, %v3791
        %v3794 = vshrl.u32 %v3598, 16
        %v3796 = vrot.slane %v3794, 4
        %v3797 = vshll.u32 %v3598, 16
        %v3799 = vrot.slane %v3797, 5
        %v3800 = vor.u32 %v3796, %v3799
        %v3801 = vrot.slane %v3800, 4
        %v3803 = vshll.u32 %v3599, 16
        %v3805 = vrot.slane %v3803, 5
        %v3806 = vsel %vm277, %v3801, %v3805
        %v3807 = vshrl.u32 %v3599, 16
        %v3809 = vrot.slane %v3807, 4
        %v3810 = vor.u32 %v3809, %v3805
        %v3811 = vrot.slane %v3810, 4
        %v3813 = vshll.u32 %v3600, 16
        %v3815 = vrot.slane %v3813, 5
        %v3816 = vsel %vm277, %v3811, %v3815
        %v3818 = vshrl.u32 %v3601, 16
        %v3820 = vrot.slane %v3818, 4
        %v3821 = vshll.u32 %v3601, 16
        %v3823 = vrot.slane %v3821, 5
        %v3824 = vor.u32 %v3820, %v3823
        %v3825 = vrot.slane %v3824, 4
        %v3827 = vshll.u32 %v3602, 16
        %v3829 = vrot.slane %v3827, 5
        %v3830 = vsel %vm277, %v3825, %v3829
        %v3831 = vshrl.u32 %v3602, 16
        %v3833 = vrot.slane %v3831, 4
        %v3834 = vor.u32 %v3833, %v3829
        %v3835 = vrot.slane %v3834, 4
        %v3837 = vshll.u32 %v3603, 16
        %v3839 = vrot.slane %v3837, 5
        %v3840 = vsel %vm277, %v3835, %v3839
        %v3842 = vshrl.u32 %v3604, 16
        %v3844 = vrot.slane %v3842, 4
        %v3845 = vshll.u32 %v3604, 16
        %v3847 = vrot.slane %v3845, 5
        %v3848 = vor.u32 %v3844, %v3847
        %v3849 = vrot.slane %v3848, 4
        %v3851 = vshll.u32 %v3605, 16
        %v3853 = vrot.slane %v3851, 5
        %v3854 = vsel %vm277, %v3849, %v3853
        %v3855 = vshrl.u32 %v3605, 16
        %v3857 = vrot.slane %v3855, 4
        %v3858 = vor.u32 %v3857, %v3853
        %v3859 = vrot.slane %v3858, 4
        %v3861 = vshll.u32 %v3606, 16
        %v3863 = vrot.slane %v3861, 5
        %v3864 = vsel %vm277, %v3859, %v3863
        %v3866 = vshrl.u32 %v3607, 16
        %v3868 = vrot.slane %v3866, 4
        %v3869 = vshll.u32 %v3607, 16
        %v3871 = vrot.slane %v3869, 5
        %v3872 = vor.u32 %v3868, %v3871
        %v3873 = vrot.slane %v3872, 4
        %v3875 = vshll.u32 %v3608, 16
        %v3877 = vrot.slane %v3875, 5
        %v3878 = vsel %vm277, %v3873, %v3877
        %v3879 = vshrl.u32 %v3608, 16
        %v3881 = vrot.slane %v3879, 4
        %v3882 = vor.u32 %v3881, %v3877
        %v3883 = vrot.slane %v3882, 4
        %v3885 = vshll.u32 %v3609, 16
        %v3887 = vrot.slane %v3885, 5
        %v3888 = vsel %vm277, %v3883, %v3887
        %v3890 = vshrl.u32 %v3610, 16
        %v3892 = vrot.slane %v3890, 4
        %v3893 = vshll.u32 %v3610, 16
        %v3895 = vrot.slane %v3893, 5
        %v3896 = vor.u32 %v3892, %v3895
        %v3897 = vrot.slane %v3896, 4
        %v3899 = vshll.u32 %v3611, 16
        %v3901 = vrot.slane %v3899, 5
        %v3902 = vsel %vm277, %v3897, %v3901
        %v3903 = vshrl.u32 %v3611, 16
        %v3905 = vrot.slane %v3903, 4
        %v3906 = vor.u32 %v3905, %v3901
        %v3907 = vrot.slane %v3906, 4
        %v3909 = vshll.u32 %v3612, 16
        %v3911 = vrot.slane %v3909, 5
        %v3912 = vsel %vm277, %v3907, %v3911
        %v3914 = vshrl.u32 %v3613, 16
        %v3916 = vrot.slane %v3914, 4
        %v3917 = vshll.u32 %v3613, 16
        %v3919 = vrot.slane %v3917, 5
        %v3920 = vor.u32 %v3916, %v3919
        %v3921 = vrot.slane %v3920, 4
        %v3923 = vshll.u32 %v3614, 16
        %v3925 = vrot.slane %v3923, 5
        %v3926 = vsel %vm277, %v3921, %v3925
        %v3927 = vshrl.u32 %v3614, 16
        %v3929 = vrot.slane %v3927, 4
        %v3930 = vor.u32 %v3929, %v3925
        %v3931 = vrot.slane %v3930, 4
        %v3933 = vshll.u32 %v3615, 16
        %v3935 = vrot.slane %v3933, 5
        %v3936 = vsel %vm277, %v3931, %v3935
        %v3938 = vshrl.u32 %v3616, 16
        %v3940 = vrot.slane %v3938, 4
        %v3941 = vshll.u32 %v3616, 16
        %v3943 = vrot.slane %v3941, 5
        %v3944 = vor.u32 %v3940, %v3943
        %v3945 = vrot.slane %v3944, 4
        %v3947 = vshll.u32 %v3617, 16
        %v3949 = vrot.slane %v3947, 5
        %v3950 = vsel %vm277, %v3945, %v3949
        %v3951 = vshrl.u32 %v3617, 16
        %v3953 = vrot.slane %v3951, 4
        %v3954 = vor.u32 %v3953, %v3949
        %v3955 = vrot.slane %v3954, 4
        %v3957 = vshll.u32 %v3618, 16
        %v3959 = vrot.slane %v3957, 5
        %v3960 = vsel %vm277, %v3955, %v3959
        %v3962 = vshrl.u32 %v3619, 16
        %v3964 = vrot.slane %v3962, 4
        %v3965 = vshll.u32 %v3619, 16
        %v3967 = vrot.slane %v3965, 5
        %v3968 = vor.u32 %v3964, %v3967
        %v3969 = vrot.slane %v3968, 4
        %v3971 = vshll.u32 %v3620, 16
        %v3973 = vrot.slane %v3971, 5
        %v3974 = vsel %vm277, %v3969, %v3973
        %v3975 = vshrl.u32 %v3620, 16
        %v3977 = vrot.slane %v3975, 4
        %v3978 = vor.u32 %v3977, %v3973
        %v3979 = vrot.slane %v3978, 4
        %v3981 = vshll.u32 %v3621, 16
        %v3983 = vrot.slane %v3981, 5
        %v3984 = vsel %vm277, %v3979, %v3983
        %v3986 = vshrl.u32 %v3622, 16
        %v3988 = vrot.slane %v3986, 4
        %v3989 = vshll.u32 %v3622, 16
        %v3991 = vrot.slane %v3989, 5
        %v3992 = vor.u32 %v3988, %v3991
        %v3993 = vrot.slane %v3992, 4
        %v3995 = vshll.u32 %v3623, 16
        %v3997 = vrot.slane %v3995, 5
        %v3998 = vsel %vm277, %v3993, %v3997
        %v3999 = vshrl.u32 %v3623, 16
        %v4001 = vrot.slane %v3999, 4
        %v4002 = vor.u32 %v4001, %v3997
        %v4003 = vrot.slane %v4002, 4
        %v4005 = vshll.u32 %v3624, 16
        %v4007 = vrot.slane %v4005, 5
        %v4008 = vsel %vm277, %v4003, %v4007
        %v4009 = vunpack.c.l.b16 %v3638
        %v4010 = vunpack.c.l.b16 %v3648
        %v4011 = vunpack.c.l.b16 %v3662
        %v4012 = vunpack.c.l.b16 %v3672
        %v4013 = vunpack.c.l.b16 %v3686
        %v4014 = vunpack.c.l.b16 %v3696
        %v4015 = vunpack.c.l.b16 %v3710
        %v4016 = vunpack.c.l.b16 %v3720
        %v4017 = vunpack.c.l.b16 %v3734
        %v4018 = vunpack.c.l.b16 %v3744
        %v4019 = vunpack.c.l.b16 %v3758
        %v4020 = vunpack.c.l.b16 %v3768
        %v4021 = vunpack.c.l.b16 %v3782
        %v4022 = vunpack.c.l.b16 %v3792
        %v4023 = vunpack.c.l.b16 %v3806
        %v4024 = vunpack.c.l.b16 %v3816
        %v4025 = vunpack.c.l.b16 %v3830
        %v4026 = vunpack.c.l.b16 %v3840
        %v4027 = vunpack.c.l.b16 %v3854
        %v4028 = vunpack.c.l.b16 %v3864
        %v4029 = vunpack.c.l.b16 %v3878
        %v4030 = vunpack.c.l.b16 %v3888
        %v4031 = vunpack.c.l.b16 %v3902
        %v4032 = vunpack.c.l.b16 %v3912
        %v4033 = vunpack.c.l.b16 %v3926
        %v4034 = vunpack.c.l.b16 %v3936
        %v4035 = vunpack.c.l.b16 %v3950
        %v4036 = vunpack.c.l.b16 %v3960
        %v4037 = vunpack.c.l.b16 %v3974
        %v4038 = vunpack.c.l.b16 %v3984
        %v4039 = vunpack.c.l.b16 %v3998
        %v4040 = vunpack.c.l.b16 %v4008
        %v4041 = vpack.c.b16 %v4010, %v4009
        %v4042 = vpack.c.b16 %v4012, %v4011
        %v4043 = vpack.c.b16 %v4014, %v4013
        %v4044 = vpack.c.b16 %v4016, %v4015
        %v4045 = vpack.c.b16 %v4018, %v4017
        %v4046 = vpack.c.b16 %v4020, %v4019
        %v4047 = vpack.c.b16 %v4022, %v4021
        %v4048 = vpack.c.b16 %v4024, %v4023
        %v4049 = vpack.c.b16 %v4026, %v4025
        %v4050 = vpack.c.b16 %v4028, %v4027
        %v4051 = vpack.c.b16 %v4030, %v4029
        %v4052 = vpack.c.b16 %v4032, %v4031
        %v4053 = vpack.c.b16 %v4034, %v4033
        %v4054 = vpack.c.b16 %v4036, %v4035
        %v4055 = vpack.c.b16 %v4038, %v4037
        %v4056 = vpack.c.b16 %v4040, %v4039
        %v4058 = vsel %vm710, %v4041, 0
        %v4061 = vsel %vm710, %v4042, 0
        %v4064 = vsel %vm710, %v4043, 0
        %v4067 = vsel %vm710, %v4044, 0
        %v4070 = vsel %vm710, %v4045, 0
        %v4073 = vsel %vm710, %v4046, 0
        %v4076 = vsel %vm710, %v4047, 0
        %v4079 = vsel %vm710, %v4048, 0
        %v4082 = vsel %vm710, %v4049, 0
        %v4085 = vsel %vm710, %v4050, 0
        %v4088 = vsel %vm710, %v4051, 0
        %v4091 = vsel %vm710, %v4052, 0
        %v4094 = vsel %vm710, %v4053, 0
        %v4097 = vsel %vm710, %v4054, 0
        %v4100 = vsel %vm710, %v4055, 0
        %v4103 = vsel %vm710, %v4056, 0
        %v4106 = vsel %vm759, %v225, 0
        %4108 = vmatprep.subr.bf16.mxu0 0
        %4109 = vmatpush1.bf16.msra.mxu0 %v4106
        %4110 = vmatprep.subr.bf16.mxu0 0
        %4111 = vmatpush1.bf16.msra.mxu0 0
        %4112 = vmatprep.subr.bf16.mxu0 0
        %4113 = vmatpush1.bf16.msra.mxu0 0
        %4114 = vmatprep.subr.bf16.mxu0 0
        %4115 = vmatpush1.bf16.msra.mxu0 0
        %4116 = vmatprep.subr.bf16.mxu0 0
        %4117 = vmatpush1.bf16.msra.mxu0 0
        %4118 = vmatprep.subr.bf16.mxu0 0
        %4119 = vmatpush1.bf16.msra.mxu0 0
        %4120 = vmatprep.subr.bf16.mxu0 0
        %4121 = vmatpush1.bf16.msra.mxu0 0
        %4122 = vmatprep.subr.bf16.mxu0 0
        %4123 = vmatpush1.bf16.msra.mxu0 0
        %4124 = vmatprep.subr.bf16.mxu0 0
        %4125 = vmatpush1.bf16.msra.mxu0 0
        %4126 = vmatprep.subr.bf16.mxu0 0
        %4127 = vmatpush1.bf16.msra.mxu0 0
        %4128 = vmatprep.subr.bf16.mxu0 0
        %4129 = vmatpush1.bf16.msra.mxu0 0
        %4130 = vmatprep.subr.bf16.mxu0 0
        %4131 = vmatpush1.bf16.msra.mxu0 0
        %4132 = vmatprep.subr.bf16.mxu0 0
        %4133 = vmatpush1.bf16.msra.mxu0 0
        %4134 = vmatprep.subr.bf16.mxu0 0
        %4135 = vmatpush1.bf16.msra.mxu0 0
        %4136 = vmatprep.subr.bf16.mxu0 0
        %4137 = vmatpush1.bf16.msra.mxu0 0
        %4138 = vmatprep.subr.bf16.mxu0 0
        %4139 = vmatpush1.bf16.msra.mxu0 0
        %4140 = vmatprep.mubr.bf16.mxu0 0
        %4141 = vmatmul.mubr.bf16.gmra.mrb[0].mxu0 %v4058
        %v4142 = vpop.f32.mrb[0].mxu0
        %v4143 = vadd.f32 0.0, %v4142
        %v4144 = vpop.f32.mrb[0].mxu0
        %v4145 = vpop.f32.mrb[0].mxu0
        %v4146 = vadd.f32 0.0, %v4145
        %v4147 = vpop.f32.mrb[0].mxu0
        %4148 = vmatprep.mubr.bf16.mxu0 0
        %4149 = vmatmul.mubr.bf16.gmra.mrb[0].mxu0 %v4061
        %v4150 = vpop.f32.mrb[0].mxu0
        %v4151 = vadd.f32 0.0, %v4150
        %v4152 = vpop.f32.mrb[0].mxu0
        %v4153 = vpop.f32.mrb[0].mxu0
        %v4154 = vadd.f32 0.0, %v4153
        %v4155 = vpop.f32.mrb[0].mxu0
        %4156 = vmatprep.mubr.bf16.mxu0 0
        %4157 = vmatmul.mubr.bf16.gmra.mrb[0].mxu0 %v4064
        %v4158 = vpop.f32.mrb[0].mxu0
        %v4159 = vadd.f32 0.0, %v4158
        %v4160 = vpop.f32.mrb[0].mxu0
        %v4161 = vpop.f32.mrb[0].mxu0
        %v4162 = vadd.f32 0.0, %v4161
        %v4163 = vpop.f32.mrb[0].mxu0
        %4164 = vmatprep.mubr.bf16.mxu0 0
        %4165 = vmatmul.mubr.bf16.gmra.mrb[0].mxu0 %v4067
        %v4166 = vpop.f32.mrb[0].mxu0
        %v4167 = vadd.f32 0.0, %v4166
        %v4168 = vpop.f32.mrb[0].mxu0
        %v4169 = vpop.f32.mrb[0].mxu0
        %v4170 = vadd.f32 0.0, %v4169
        %v4171 = vpop.f32.mrb[0].mxu0
        %4172 = vmatprep.mubr.bf16.mxu0 0
        %4173 = vmatmul.mubr.bf16.gmra.mrb[0].mxu0 %v4070
        %v4174 = vpop.f32.mrb[0].mxu0
        %v4175 = vadd.f32 0.0, %v4174
        %v4176 = vpop.f32.mrb[0].mxu0
        %v4177 = vpop.f32.mrb[0].mxu0
        %v4178 = vadd.f32 0.0, %v4177
        %v4179 = vpop.f32.mrb[0].mxu0
        %4180 = vmatprep.mubr.bf16.mxu0 0
        %4181 = vmatmul.mubr.bf16.gmra.mrb[0].mxu0 %v4073
        %v4182 = vpop.f32.mrb[0].mxu0
        %v4183 = vadd.f32 0.0, %v4182
        %v4184 = vpop.f32.mrb[0].mxu0
        %v4185 = vpop.f32.mrb[0].mxu0
        %v4186 = vadd.f32 0.0, %v4185
        %v4187 = vpop.f32.mrb[0].mxu0
        %4188 = vmatprep.mubr.bf16.mxu0 0
        %4189 = vmatmul.mubr.bf16.gmra.mrb[0].mxu0 %v4076
        %v4190 = vpop.f32.mrb[0].mxu0
        %v4191 = vadd.f32 0.0, %v4190
        %v4192 = vpop.f32.mrb[0].mxu0
        %v4193 = vpop.f32.mrb[0].mxu0
        %v4194 = vadd.f32 0.0, %v4193
        %v4195 = vpop.f32.mrb[0].mxu0
        %4196 = vmatprep.mubr.bf16.mxu0 0
        %4197 = vmatmul.mubr.bf16.gmra.mrb[0].mxu0 %v4079
        %v4198 = vpop.f32.mrb[0].mxu0
        %v4199 = vadd.f32 0.0, %v4198
        %v4200 = vpop.f32.mrb[0].mxu0
        %v4201 = vpop.f32.mrb[0].mxu0
        %v4202 = vadd.f32 0.0, %v4201
        %v4203 = vpop.f32.mrb[0].mxu0
        %4204 = vmatprep.mubr.bf16.mxu0 0
        %4205 = vmatmul.mubr.bf16.gmra.mrb[0].mxu0 %v4082
        %v4206 = vpop.f32.mrb[0].mxu0
        %v4207 = vadd.f32 0.0, %v4206
        %v4208 = vpop.f32.mrb[0].mxu0
        %v4209 = vpop.f32.mrb[0].mxu0
        %v4210 = vadd.f32 0.0, %v4209
        %v4211 = vpop.f32.mrb[0].mxu0
        %4212 = vmatprep.mubr.bf16.mxu0 0
        %4213 = vmatmul.mubr.bf16.gmra.mrb[0].mxu0 %v4085
        %v4214 = vpop.f32.mrb[0].mxu0
        %v4215 = vadd.f32 0.0, %v4214
        %v4216 = vpop.f32.mrb[0].mxu0
        %v4217 = vpop.f32.mrb[0].mxu0
        %v4218 = vadd.f32 0.0, %v4217
        %v4219 = vpop.f32.mrb[0].mxu0
        %4220 = vmatprep.mubr.bf16.mxu0 0
        %4221 = vmatmul.mubr.bf16.gmra.mrb[0].mxu0 %v4088
        %v4222 = vpop.f32.mrb[0].mxu0
        %v4223 = vadd.f32 0.0, %v4222
        %v4224 = vpop.f32.mrb[0].mxu0
        %v4225 = vpop.f32.mrb[0].mxu0
        %v4226 = vadd.f32 0.0, %v4225
        %v4227 = vpop.f32.mrb[0].mxu0
        %4228 = vmatprep.mubr.bf16.mxu0 0
        %4229 = vmatmul.mubr.bf16.gmra.mrb[0].mxu0 %v4091
        %v4230 = vpop.f32.mrb[0].mxu0
        %v4231 = vadd.f32 0.0, %v4230
        %v4232 = vpop.f32.mrb[0].mxu0
        %v4233 = vpop.f32.mrb[0].mxu0
        %v4234 = vadd.f32 0.0, %v4233
        %v4235 = vpop.f32.mrb[0].mxu0
        %4236 = vmatprep.mubr.bf16.mxu0 0
        %4237 = vmatmul.mubr.bf16.gmra.mrb[0].mxu0 %v4094
        %v4238 = vpop.f32.mrb[0].mxu0
        %v4239 = vadd.f32 0.0, %v4238
        %v4240 = vpop.f32.mrb[0].mxu0
        %v4241 = vpop.f32.mrb[0].mxu0
        %v4242 = vadd.f32 0.0, %v4241
        %v4243 = vpop.f32.mrb[0].mxu0
        %4244 = vmatprep.mubr.bf16.mxu0 0
        %4245 = vmatmul.mubr.bf16.gmra.mrb[0].mxu0 %v4097
        %v4246 = vpop.f32.mrb[0].mxu0
        %v4247 = vadd.f32 0.0, %v4246
        %v4248 = vpop.f32.mrb[0].mxu0
        %v4249 = vpop.f32.mrb[0].mxu0
        %v4250 = vadd.f32 0.0, %v4249
        %v4251 = vpop.f32.mrb[0].mxu0
        %4252 = vmatprep.mubr.bf16.mxu0 0
        %4253 = vmatmul.mubr.bf16.gmra.mrb[0].mxu0 %v4100
        %v4254 = vpop.f32.mrb[0].mxu0
        %v4255 = vadd.f32 0.0, %v4254
        %v4256 = vpop.f32.mrb[0].mxu0
        %v4257 = vpop.f32.mrb[0].mxu0
        %v4258 = vadd.f32 0.0, %v4257
        %v4259 = vpop.f32.mrb[0].mxu0
        %4260 = vmatprep.mubr.bf16.mxu0 0
        %4261 = vmatmul.mubr.bf16.gmra.mrb[0].mxu0 %v4103
        %v4262 = vpop.f32.mrb[0].mxu0
        %v4263 = vadd.f32 0.0, %v4262
        %v4264 = vpop.f32.mrb[0].mxu0
        %v4265 = vpop.f32.mrb[0].mxu0
        %v4266 = vadd.f32 0.0, %v4265
        %v4267 = vpop.f32.mrb[0].mxu0
        %4268 = vdwg.mxu0
        %v4269 = vadd.f32 %v3545, %v4143
        %v4270 = vadd.f32 %v3546, %v4146
        %v4271 = vadd.f32 %v3547, %v4151
        %v4272 = vadd.f32 %v3548, %v4154
        %v4273 = vadd.f32 %v3549, %v4159
        %v4274 = vadd.f32 %v3550, %v4162
        %v4275 = vadd.f32 %v3551, %v4167
        %v4276 = vadd.f32 %v3552, %v4170
        %v4277 = vadd.f32 %v3553, %v4175
        %v4278 = vadd.f32 %v3554, %v4178
        %v4279 = vadd.f32 %v3555, %v4183
        %v4280 = vadd.f32 %v3556, %v4186
        %v4281 = vadd.f32 %v3557, %v4191
        %v4282 = vadd.f32 %v3558, %v4194
        %v4283 = vadd.f32 %v3559, %v4199
        %v4284 = vadd.f32 %v3560, %v4202
        %v4285 = vadd.f32 %v3561, %v4207
        %v4286 = vadd.f32 %v3562, %v4210
        %v4287 = vadd.f32 %v3563, %v4215
        %v4288 = vadd.f32 %v3564, %v4218
        %v4289 = vadd.f32 %v3565, %v4223
        %v4290 = vadd.f32 %v3566, %v4226
        %v4291 = vadd.f32 %v3567, %v4231
        %v4292 = vadd.f32 %v3568, %v4234
        %v4293 = vadd.f32 %v3569, %v4239
        %v4294 = vadd.f32 %v3570, %v4242
        %v4295 = vadd.f32 %v3571, %v4247
        %v4296 = vadd.f32 %v3572, %v4250
        %v4297 = vadd.f32 %v3573, %v4255
        %v4298 = vadd.f32 %v3574, %v4258
        %v4299 = vadd.f32 %v3575, %v4263
        %v4300 = vadd.f32 %v3576, %v4266
        %v4301 = vld [vmem:[%s3220] sm:$0xe]
        %v4302 = vld [vmem:[%s3220 + $0xc] sm:$0xe]
        %v4303 = vld [vmem:[%s3220 + $0x18] sm:$0xe]
        %v4304 = vld [vmem:[%s3220 + $0x24] sm:$0xe]
        %v4305 = vld [vmem:[%s3220 + $0x30] sm:$0xe]
        %v4306 = vld [vmem:[%s3220 + $0x3c] sm:$0xe]
        %v4307 = vld [vmem:[%s3220 + $0x48] sm:$0xe]
        %v4308 = vld [vmem:[%s3220 + $0x54] sm:$0xe]
        %v4309 = vld [vmem:[%s3220 + $0x60] sm:$0xe]
        %v4310 = vld [vmem:[%s3220 + $0x6c] sm:$0xe]
        %v4311 = vld [vmem:[%s3220 + $0x78] sm:$0xe]
        %v4312 = vld [vmem:[%s3220 + $0x84] sm:$0xe]
        %v4313 = vld [vmem:[%s3220 + $0x90] sm:$0xe]
        %v4314 = vld [vmem:[%s3220 + $0x9c] sm:$0xe]
        %v4315 = vld [vmem:[%s3220 + $0xa8] sm:$0xe]
        %v4316 = vld [vmem:[%s3220 + $0xb4] sm:$0xe]
        %v4365 = vrot.slane %v4301, 5
        %v4366 = vrot.slane %v4365, 4
        %v4367 = vrot.slane %v3578, 5
        %v4368 = vsel %vm1266, %v4366, %v4367
        %v4369 = vrot.slane %v4367, 4
        %v4370 = vrot.slane %v3579, 5
        %v4371 = vsel %vm1266, %v4369, %v4370
        %v4372 = vrot.slane %v4302, 5
        %v4373 = vrot.slane %v4372, 4
        %v4374 = vrot.slane %v3581, 5
        %v4375 = vsel %vm1266, %v4373, %v4374
        %v4376 = vrot.slane %v4374, 4
        %v4377 = vrot.slane %v3582, 5
        %v4378 = vsel %vm1266, %v4376, %v4377
        %v4379 = vrot.slane %v4303, 5
        %v4380 = vrot.slane %v4379, 4
        %v4381 = vrot.slane %v3584, 5
        %v4382 = vsel %vm1266, %v4380, %v4381
        %v4383 = vrot.slane %v4381, 4
        %v4384 = vrot.slane %v3585, 5
        %v4385 = vsel %vm1266, %v4383, %v4384
        %v4386 = vrot.slane %v4304, 5
        %v4387 = vrot.slane %v4386, 4
        %v4388 = vrot.slane %v3587, 5
        %v4389 = vsel %vm1266, %v4387, %v4388
        %v4390 = vrot.slane %v4388, 4
        %v4391 = vrot.slane %v3588, 5
        %v4392 = vsel %vm1266, %v4390, %v4391
        %v4393 = vrot.slane %v4305, 5
        %v4394 = vrot.slane %v4393, 4
        %v4395 = vrot.slane %v3590, 5
        %v4396 = vsel %vm1266, %v4394, %v4395
        %v4397 = vrot.slane %v4395, 4
        %v4398 = vrot.slane %v3591, 5
        %v4399 = vsel %vm1266, %v4397, %v4398
        %v4400 = vrot.slane %v4306, 5
        %v4401 = vrot.slane %v4400, 4
        %v4402 = vrot.slane %v3593, 5
        %v4403 = vsel %vm1266, %v4401, %v4402
        %v4404 = vrot.slane %v4402, 4
        %v4405 = vrot.slane %v3594, 5
        %v4406 = vsel %vm1266, %v4404, %v4405
        %v4407 = vrot.slane %v4307, 5
        %v4408 = vrot.slane %v4407, 4
        %v4409 = vrot.slane %v3596, 5
        %v4410 = vsel %vm1266, %v4408, %v4409
        %v4411 = vrot.slane %v4409, 4
        %v4412 = vrot.slane %v3597, 5
        %v4413 = vsel %vm1266, %v4411, %v4412
        %v4414 = vrot.slane %v4308, 5
        %v4415 = vrot.slane %v4414, 4
        %v4416 = vrot.slane %v3599, 5
        %v4417 = vsel %vm1266, %v4415, %v4416
        %v4418 = vrot.slane %v4416, 4
        %v4419 = vrot.slane %v3600, 5
        %v4420 = vsel %vm1266, %v4418, %v4419
        %v4421 = vrot.slane %v4309, 5
        %v4422 = vrot.slane %v4421, 4
        %v4423 = vrot.slane %v3602, 5
        %v4424 = vsel %vm1266, %v4422, %v4423
        %v4425 = vrot.slane %v4423, 4
        %v4426 = vrot.slane %v3603, 5
        %v4427 = vsel %vm1266, %v4425, %v4426
        %v4428 = vrot.slane %v4310, 5
        %v4429 = vrot.slane %v4428, 4
        %v4430 = vrot.slane %v3605, 5
        %v4431 = vsel %vm1266, %v4429, %v4430
        %v4432 = vrot.slane %v4430, 4
        %v4433 = vrot.slane %v3606, 5
        %v4434 = vsel %vm1266, %v4432, %v4433
        %v4435 = vrot.slane %v4311, 5
        %v4436 = vrot.slane %v4435, 4
        %v4437 = vrot.slane %v3608, 5
        %v4438 = vsel %vm1266, %v4436, %v4437
        %v4439 = vrot.slane %v4437, 4
        %v4440 = vrot.slane %v3609, 5
        %v4441 = vsel %vm1266, %v4439, %v4440
        %v4442 = vrot.slane %v4312, 5
        %v4443 = vrot.slane %v4442, 4
        %v4444 = vrot.slane %v3611, 5
        %v4445 = vsel %vm1266, %v4443, %v4444
        %v4446 = vrot.slane %v4444, 4
        %v4447 = vrot.slane %v3612, 5
        %v4448 = vsel %vm1266, %v4446, %v4447
        %v4449 = vrot.slane %v4313, 5
        %v4450 = vrot.slane %v4449, 4
        %v4451 = vrot.slane %v3614, 5
        %v4452 = vsel %vm1266, %v4450, %v4451
        %v4453 = vrot.slane %v4451, 4
        %v4454 = vrot.slane %v3615, 5
        %v4455 = vsel %vm1266, %v4453, %v4454
        %v4456 = vrot.slane %v4314, 5
        %v4457 = vrot.slane %v4456, 4
        %v4458 = vrot.slane %v3617, 5
        %v4459 = vsel %vm1266, %v4457, %v4458
        %v4460 = vrot.slane %v4458, 4
        %v4461 = vrot.slane %v3618, 5
        %v4462 = vsel %vm1266, %v4460, %v4461
        %v4463 = vrot.slane %v4315, 5
        %v4464 = vrot.slane %v4463, 4
        %v4465 = vrot.slane %v3620, 5
        %v4466 = vsel %vm1266, %v4464, %v4465
        %v4467 = vrot.slane %v4465, 4
        %v4468 = vrot.slane %v3621, 5
        %v4469 = vsel %vm1266, %v4467, %v4468
        %v4470 = vrot.slane %v4316, 5
        %v4471 = vrot.slane %v4470, 4
        %v4472 = vrot.slane %v3623, 5
        %v4473 = vsel %vm1266, %v4471, %v4472
        %v4474 = vrot.slane %v4472, 4
        %v4475 = vrot.slane %v3624, 5
        %v4476 = vsel %vm1266, %v4474, %v4475
        %v4477 = vunpack.c.l.b16 %v4368
        %v4478 = vunpack.c.l.b16 %v4371
        %v4479 = vunpack.c.l.b16 %v4375
        %v4480 = vunpack.c.l.b16 %v4378
        %v4481 = vunpack.c.l.b16 %v4382
        %v4482 = vunpack.c.l.b16 %v4385
        %v4483 = vunpack.c.l.b16 %v4389
        %v4484 = vunpack.c.l.b16 %v4392
        %v4485 = vunpack.c.l.b16 %v4396
        %v4486 = vunpack.c.l.b16 %v4399
        %v4487 = vunpack.c.l.b16 %v4403
        %v4488 = vunpack.c.l.b16 %v4406
        %v4489 = vunpack.c.l.b16 %v4410
        %v4490 = vunpack.c.l.b16 %v4413
        %v4491 = vunpack.c.l.b16 %v4417
        %v4492 = vunpack.c.l.b16 %v4420
        %v4493 = vunpack.c.l.b16 %v4424
        %v4494 = vunpack.c.l.b16 %v4427
        %v4495 = vunpack.c.l.b16 %v4431
        %v4496 = vunpack.c.l.b16 %v4434
        %v4497 = vunpack.c.l.b16 %v4438
        %v4498 = vunpack.c.l.b16 %v4441
        %v4499 = vunpack.c.l.b16 %v4445
        %v4500 = vunpack.c.l.b16 %v4448
        %v4501 = vunpack.c.l.b16 %v4452
        %v4502 = vunpack.c.l.b16 %v4455
        %v4503 = vunpack.c.l.b16 %v4459
        %v4504 = vunpack.c.l.b16 %v4462
        %v4505 = vunpack.c.l.b16 %v4466
        %v4506 = vunpack.c.l.b16 %v4469
        %v4507 = vunpack.c.l.b16 %v4473
        %v4508 = vunpack.c.l.b16 %v4476
        %v4509 = vpack.c.b16 %v4478, %v4477
        %v4510 = vpack.c.b16 %v4480, %v4479
        %v4511 = vpack.c.b16 %v4482, %v4481
        %v4512 = vpack.c.b16 %v4484, %v4483
        %v4513 = vpack.c.b16 %v4486, %v4485
        %v4514 = vpack.c.b16 %v4488, %v4487
        %v4515 = vpack.c.b16 %v4490, %v4489
        %v4516 = vpack.c.b16 %v4492, %v4491
        %v4517 = vpack.c.b16 %v4494, %v4493
        %v4518 = vpack.c.b16 %v4496, %v4495
        %v4519 = vpack.c.b16 %v4498, %v4497
        %v4520 = vpack.c.b16 %v4500, %v4499
        %v4521 = vpack.c.b16 %v4502, %v4501
        %v4522 = vpack.c.b16 %v4504, %v4503
        %v4523 = vpack.c.b16 %v4506, %v4505
        %v4524 = vpack.c.b16 %v4508, %v4507
        %v4526 = vsel %vm710, %v4509, 0
        %v4529 = vsel %vm710, %v4510, 0
        %v4532 = vsel %vm710, %v4511, 0
        %v4535 = vsel %vm710, %v4512, 0
        %v4538 = vsel %vm710, %v4513, 0
        %v4541 = vsel %vm710, %v4514, 0
        %v4544 = vsel %vm710, %v4515, 0
        %v4547 = vsel %vm710, %v4516, 0
        %v4550 = vsel %vm710, %v4517, 0
        %v4553 = vsel %vm710, %v4518, 0
        %v4556 = vsel %vm710, %v4519, 0
        %v4559 = vsel %vm710, %v4520, 0
        %v4562 = vsel %vm710, %v4521, 0
        %v4565 = vsel %vm710, %v4522, 0
        %v4568 = vsel %vm710, %v4523, 0
        %v4571 = vsel %vm710, %v4524, 0
        %v4574 = vsel %vm759, %v226, 0
        %4576 = vmatprep.subr.bf16.mxu0 0
        %4577 = vmatpush1.bf16.msra.mxu0 %v4574
        %4578 = vmatprep.subr.bf16.mxu0 0
        %4579 = vmatpush1.bf16.msra.mxu0 0
        %4580 = vmatprep.subr.bf16.mxu0 0
        %4581 = vmatpush1.bf16.msra.mxu0 0
        %4582 = vmatprep.subr.bf16.mxu0 0
        %4583 = vmatpush1.bf16.msra.mxu0 0
        %4584 = vmatprep.subr.bf16.mxu0 0
        %4585 = vmatpush1.bf16.msra.mxu0 0
        %4586 = vmatprep.subr.bf16.mxu0 0
        %4587 = vmatpush1.bf16.msra.mxu0 0
        %4588 = vmatprep.subr.bf16.mxu0 0
        %4589 = vmatpush1.bf16.msra.mxu0 0
        %4590 = vmatprep.subr.bf16.mxu0 0
        %4591 = vmatpush1.bf16.msra.mxu0 0
        %4592 = vmatprep.subr.bf16.mxu0 0
        %4593 = vmatpush1.bf16.msra.mxu0 0
        %4594 = vmatprep.subr.bf16.mxu0 0
        %4595 = vmatpush1.bf16.msra.mxu0 0
        %4596 = vmatprep.subr.bf16.mxu0 0
        %4597 = vmatpush1.bf16.msra.mxu0 0
        %4598 = vmatprep.subr.bf16.mxu0 0
        %4599 = vmatpush1.bf16.msra.mxu0 0
        %4600 = vmatprep.subr.bf16.mxu0 0
        %4601 = vmatpush1.bf16.msra.mxu0 0
        %4602 = vmatprep.subr.bf16.mxu0 0
        %4603 = vmatpush1.bf16.msra.mxu0 0
        %4604 = vmatprep.subr.bf16.mxu0 0
        %4605 = vmatpush1.bf16.msra.mxu0 0
        %4606 = vmatprep.subr.bf16.mxu0 0
        %4607 = vmatpush1.bf16.msra.mxu0 0
        %4608 = vmatprep.mubr.bf16.mxu0 0
        %4609 = vmatmul.mubr.bf16.gmra.mrb[0].mxu0 %v4526
        %v4610 = vpop.f32.mrb[0].mxu0
        %v4611 = vadd.f32 0.0, %v4610
        %v4612 = vpop.f32.mrb[0].mxu0
        %v4613 = vpop.f32.mrb[0].mxu0
        %v4614 = vadd.f32 0.0, %v4613
        %v4615 = vpop.f32.mrb[0].mxu0
        %4616 = vmatprep.mubr.bf16.mxu0 0
        %4617 = vmatmul.mubr.bf16.gmra.mrb[0].mxu0 %v4529
        %v4618 = vpop.f32.mrb[0].mxu0
        %v4619 = vadd.f32 0.0, %v4618
        %v4620 = vpop.f32.mrb[0].mxu0
        %v4621 = vpop.f32.mrb[0].mxu0
        %v4622 = vadd.f32 0.0, %v4621
        %v4623 = vpop.f32.mrb[0].mxu0
        %4624 = vmatprep.mubr.bf16.mxu0 0
        %4625 = vmatmul.mubr.bf16.gmra.mrb[0].mxu0 %v4532
        %v4626 = vpop.f32.mrb[0].mxu0
        %v4627 = vadd.f32 0.0, %v4626
        %v4628 = vpop.f32.mrb[0].mxu0
        %v4629 = vpop.f32.mrb[0].mxu0
        %v4630 = vadd.f32 0.0, %v4629
        %v4631 = vpop.f32.mrb[0].mxu0
        %4632 = vmatprep.mubr.bf16.mxu0 0
        %4633 = vmatmul.mubr.bf16.gmra.mrb[0].mxu0 %v4535
        %v4634 = vpop.f32.mrb[0].mxu0
        %v4635 = vadd.f32 0.0, %v4634
        %v4636 = vpop.f32.mrb[0].mxu0
        %v4637 = vpop.f32.mrb[0].mxu0
        %v4638 = vadd.f32 0.0, %v4637
        %v4639 = vpop.f32.mrb[0].mxu0
        %4640 = vmatprep.mubr.bf16.mxu0 0
        %4641 = vmatmul.mubr.bf16.gmra.mrb[0].mxu0 %v4538
        %v4642 = vpop.f32.mrb[0].mxu0
        %v4643 = vadd.f32 0.0, %v4642
        %v4644 = vpop.f32.mrb[0].mxu0
        %v4645 = vpop.f32.mrb[0].mxu0
        %v4646 = vadd.f32 0.0, %v4645
        %v4647 = vpop.f32.mrb[0].mxu0
        %4648 = vmatprep.mubr.bf16.mxu0 0
        %4649 = vmatmul.mubr.bf16.gmra.mrb[0].mxu0 %v4541
        %v4650 = vpop.f32.mrb[0].mxu0
        %v4651 = vadd.f32 0.0, %v4650
        %v4652 = vpop.f32.mrb[0].mxu0
        %v4653 = vpop.f32.mrb[0].mxu0
        %v4654 = vadd.f32 0.0, %v4653
        %v4655 = vpop.f32.mrb[0].mxu0
        %4656 = vmatprep.mubr.bf16.mxu0 0
        %4657 = vmatmul.mubr.bf16.gmra.mrb[0].mxu0 %v4544
        %v4658 = vpop.f32.mrb[0].mxu0
        %v4659 = vadd.f32 0.0, %v4658
        %v4660 = vpop.f32.mrb[0].mxu0
        %v4661 = vpop.f32.mrb[0].mxu0
        %v4662 = vadd.f32 0.0, %v4661
        %v4663 = vpop.f32.mrb[0].mxu0
        %4664 = vmatprep.mubr.bf16.mxu0 0
        %4665 = vmatmul.mubr.bf16.gmra.mrb[0].mxu0 %v4547
        %v4666 = vpop.f32.mrb[0].mxu0
        %v4667 = vadd.f32 0.0, %v4666
        %v4668 = vpop.f32.mrb[0].mxu0
        %v4669 = vpop.f32.mrb[0].mxu0
        %v4670 = vadd.f32 0.0, %v4669
        %v4671 = vpop.f32.mrb[0].mxu0
        %4672 = vmatprep.mubr.bf16.mxu0 0
        %4673 = vmatmul.mubr.bf16.gmra.mrb[0].mxu0 %v4550
        %v4674 = vpop.f32.mrb[0].mxu0
        %v4675 = vadd.f32 0.0, %v4674
        %v4676 = vpop.f32.mrb[0].mxu0
        %v4677 = vpop.f32.mrb[0].mxu0
        %v4678 = vadd.f32 0.0, %v4677
        %v4679 = vpop.f32.mrb[0].mxu0
        %4680 = vmatprep.mubr.bf16.mxu0 0
        %4681 = vmatmul.mubr.bf16.gmra.mrb[0].mxu0 %v4553
        %v4682 = vpop.f32.mrb[0].mxu0
        %v4683 = vadd.f32 0.0, %v4682
        %v4684 = vpop.f32.mrb[0].mxu0
        %v4685 = vpop.f32.mrb[0].mxu0
        %v4686 = vadd.f32 0.0, %v4685
        %v4687 = vpop.f32.mrb[0].mxu0
        %4688 = vmatprep.mubr.bf16.mxu0 0
        %4689 = vmatmul.mubr.bf16.gmra.mrb[0].mxu0 %v4556
        %v4690 = vpop.f32.mrb[0].mxu0
        %v4691 = vadd.f32 0.0, %v4690
        %v4692 = vpop.f32.mrb[0].mxu0
        %v4693 = vpop.f32.mrb[0].mxu0
        %v4694 = vadd.f32 0.0, %v4693
        %v4695 = vpop.f32.mrb[0].mxu0
        %4696 = vmatprep.mubr.bf16.mxu0 0
        %4697 = vmatmul.mubr.bf16.gmra.mrb[0].mxu0 %v4559
        %v4698 = vpop.f32.mrb[0].mxu0
        %v4699 = vadd.f32 0.0, %v4698
        %v4700 = vpop.f32.mrb[0].mxu0
        %v4701 = vpop.f32.mrb[0].mxu0
        %v4702 = vadd.f32 0.0, %v4701
        %v4703 = vpop.f32.mrb[0].mxu0
        %4704 = vmatprep.mubr.bf16.mxu0 0
        %4705 = vmatmul.mubr.bf16.gmra.mrb[0].mxu0 %v4562
        %v4706 = vpop.f32.mrb[0].mxu0
        %v4707 = vadd.f32 0.0, %v4706
        %v4708 = vpop.f32.mrb[0].mxu0
        %v4709 = vpop.f32.mrb[0].mxu0
        %v4710 = vadd.f32 0.0, %v4709
        %v4711 = vpop.f32.mrb[0].mxu0
        %4712 = vmatprep.mubr.bf16.mxu0 0
        %4713 = vmatmul.mubr.bf16.gmra.mrb[0].mxu0 %v4565
        %v4714 = vpop.f32.mrb[0].mxu0
        %v4715 = vadd.f32 0.0, %v4714
        %v4716 = vpop.f32.mrb[0].mxu0
        %v4717 = vpop.f32.mrb[0].mxu0
        %v4718 = vadd.f32 0.0, %v4717
        %v4719 = vpop.f32.mrb[0].mxu0
        %4720 = vmatprep.mubr.bf16.mxu0 0
        %4721 = vmatmul.mubr.bf16.gmra.mrb[0].mxu0 %v4568
        %v4722 = vpop.f32.mrb[0].mxu0
        %v4723 = vadd.f32 0.0, %v4722
        %v4724 = vpop.f32.mrb[0].mxu0
        %v4725 = vpop.f32.mrb[0].mxu0
        %v4726 = vadd.f32 0.0, %v4725
        %v4727 = vpop.f32.mrb[0].mxu0
        %4728 = vmatprep.mubr.bf16.mxu0 0
        %4729 = vmatmul.mubr.bf16.gmra.mrb[0].mxu0 %v4571
        %v4730 = vpop.f32.mrb[0].mxu0
        %v4731 = vadd.f32 0.0, %v4730
        %v4732 = vpop.f32.mrb[0].mxu0
        %v4733 = vpop.f32.mrb[0].mxu0
        %v4734 = vadd.f32 0.0, %v4733
        %v4735 = vpop.f32.mrb[0].mxu0
        %4736 = vdwg.mxu0
        %v4737 = vadd.f32 %v4269, %v4611
        %v4738 = vadd.f32 %v4270, %v4614
        %v4739 = vadd.f32 %v4271, %v4619
        %v4740 = vadd.f32 %v4272, %v4622
        %v4741 = vadd.f32 %v4273, %v4627
        %v4742 = vadd.f32 %v4274, %v4630
        %v4743 = vadd.f32 %v4275, %v4635
        %v4744 = vadd.f32 %v4276, %v4638
        %v4745 = vadd.f32 %v4277, %v4643
        %v4746 = vadd.f32 %v4278, %v4646
        %v4747 = vadd.f32 %v4279, %v4651
        %v4748 = vadd.f32 %v4280, %v4654
        %v4749 = vadd.f32 %v4281, %v4659
        %v4750 = vadd.f32 %v4282, %v4662
        %v4751 = vadd.f32 %v4283, %v4667
        %v4752 = vadd.f32 %v4284, %v4670
        %v4753 = vadd.f32 %v4285, %v4675
        %v4754 = vadd.f32 %v4286, %v4678
        %v4755 = vadd.f32 %v4287, %v4683
        %v4756 = vadd.f32 %v4288, %v4686
        %v4757 = vadd.f32 %v4289, %v4691
        %v4758 = vadd.f32 %v4290, %v4694
        %v4759 = vadd.f32 %v4291, %v4699
        %v4760 = vadd.f32 %v4292, %v4702
        %v4761 = vadd.f32 %v4293, %v4707
        %v4762 = vadd.f32 %v4294, %v4710
        %v4763 = vadd.f32 %v4295, %v4715
        %v4764 = vadd.f32 %v4296, %v4718
        %v4765 = vadd.f32 %v4297, %v4723
        %v4766 = vadd.f32 %v4298, %v4726
        %v4767 = vadd.f32 %v4299, %v4731
        %v4768 = vadd.f32 %v4300, %v4734
        %vm4769 = vcmask 64512
        %v4770 = vsel %vm4769, %v4737, 0.0
        %v4771 = vsel %vm4769, %v4738, 0.0
        %v4772 = vadd.f32 %v4770, %v4771
        %v4773 = vsel %vm4769, %v4739, 0.0
        %v4774 = vadd.f32 %v4772, %v4773
        %v4775 = vsel %vm4769, %v4740, 0.0
        %v4776 = vadd.f32 %v4774, %v4775
        %v4777 = vsel %vm4769, %v4741, 0.0
        %v4778 = vadd.f32 %v4776, %v4777
        %v4779 = vsel %vm4769, %v4742, 0.0
        %v4780 = vadd.f32 %v4778, %v4779
        %v4781 = vsel %vm4769, %v4743, 0.0
        %v4782 = vadd.f32 %v4780, %v4781
        %v4783 = vsel %vm4769, %v4744, 0.0
        %v4784 = vadd.f32 %v4782, %v4783
        %v4785 = vsel %vm4769, %v4745, 0.0
        %v4786 = vadd.f32 %v4784, %v4785
        %v4787 = vsel %vm4769, %v4746, 0.0
        %v4788 = vadd.f32 %v4786, %v4787
        %v4789 = vsel %vm4769, %v4747, 0.0
        %v4790 = vadd.f32 %v4788, %v4789
        %v4791 = vsel %vm4769, %v4748, 0.0
        %v4792 = vadd.f32 %v4790, %v4791
        %v4793 = vsel %vm4769, %v4749, 0.0
        %v4794 = vadd.f32 %v4792, %v4793
        %v4795 = vsel %vm4769, %v4750, 0.0
        %v4796 = vadd.f32 %v4794, %v4795
        %v4797 = vsel %vm4769, %v4751, 0.0
        %v4798 = vadd.f32 %v4796, %v4797
        %v4799 = vsel %vm4769, %v4752, 0.0
        %v4800 = vadd.f32 %v4798, %v4799
        %v4801 = vsel %vm4769, %v4753, 0.0
        %v4802 = vadd.f32 %v4800, %v4801
        %v4803 = vsel %vm4769, %v4754, 0.0
        %v4804 = vadd.f32 %v4802, %v4803
        %v4805 = vsel %vm4769, %v4755, 0.0
        %v4806 = vadd.f32 %v4804, %v4805
        %v4807 = vsel %vm4769, %v4756, 0.0
        %v4808 = vadd.f32 %v4806, %v4807
        %v4809 = vsel %vm4769, %v4757, 0.0
        %v4810 = vadd.f32 %v4808, %v4809
        %v4811 = vsel %vm4769, %v4758, 0.0
        %v4812 = vadd.f32 %v4810, %v4811
        %v4813 = vsel %vm4769, %v4759, 0.0
        %v4814 = vadd.f32 %v4812, %v4813
        %v4815 = vsel %vm4769, %v4760, 0.0
        %v4816 = vadd.f32 %v4814, %v4815
        %v4817 = vsel %vm4769, %v4761, 0.0
        %v4818 = vadd.f32 %v4816, %v4817
        %v4819 = vsel %vm4769, %v4762, 0.0
        %v4820 = vadd.f32 %v4818, %v4819
        %v4821 = vsel %vm4769, %v4763, 0.0
        %v4822 = vadd.f32 %v4820, %v4821
        %v4823 = vsel %vm4769, %v4764, 0.0
        %v4824 = vadd.f32 %v4822, %v4823
        %v4825 = vsel %vm4769, %v4765, 0.0
        %v4826 = vadd.f32 %v4824, %v4825
        %v4827 = vsel %vm4769, %v4766, 0.0
        %v4828 = vadd.f32 %v4826, %v4827
        %v4829 = vsel %vm4769, %v4767, 0.0
        %v4830 = vadd.f32 %v4828, %v4829
        %v4831 = vsel %vm4769, %v4768, 0.0
        %v4832 = vadd.f32 %v4830, %v4831
        %v4833 = vrot.slane %v4832, 4
        %v4834 = vadd.f32 %v4832, %v4833
        %v4835 = vrot.slane %v4834, 2
        %v4836 = vadd.f32 %v4834, %v4835
        %v4837 = vrot.slane %v4836, 1
        %v4838 = vadd.f32 %v4836, %v4837
        %vm4839 = vcmask 57344
        %4840 = vst.msk [vmem:[%s200] sm:$0x1] %vm4839, %v4838
        %v4841 = vmul.f32 %v4737, %v4737
        %v4842 = vmul.f32 %v4738, %v4738
        %v4843 = vmul.f32 %v4739, %v4739
        %v4844 = vmul.f32 %v4740, %v4740
        %v4845 = vmul.f32 %v4741, %v4741
        %v4846 = vmul.f32 %v4742, %v4742
        %v4847 = vmul.f32 %v4743, %v4743
        %v4848 = vmul.f32 %v4744, %v4744
        %v4849 = vmul.f32 %v4745, %v4745
        %v4850 = vmul.f32 %v4746, %v4746
        %v4851 = vmul.f32 %v4747, %v4747
        %v4852 = vmul.f32 %v4748, %v4748
        %v4853 = vmul.f32 %v4749, %v4749
        %v4854 = vmul.f32 %v4750, %v4750
        %v4855 = vmul.f32 %v4751, %v4751
        %v4856 = vmul.f32 %v4752, %v4752
        %v4857 = vmul.f32 %v4753, %v4753
        %v4858 = vmul.f32 %v4754, %v4754
        %v4859 = vmul.f32 %v4755, %v4755
        %v4860 = vmul.f32 %v4756, %v4756
        %v4861 = vmul.f32 %v4757, %v4757
        %v4862 = vmul.f32 %v4758, %v4758
        %v4863 = vmul.f32 %v4759, %v4759
        %v4864 = vmul.f32 %v4760, %v4760
        %v4865 = vmul.f32 %v4761, %v4761
        %v4866 = vmul.f32 %v4762, %v4762
        %v4867 = vmul.f32 %v4763, %v4763
        %v4868 = vmul.f32 %v4764, %v4764
        %v4869 = vmul.f32 %v4765, %v4765
        %v4870 = vmul.f32 %v4766, %v4766
        %v4871 = vmul.f32 %v4767, %v4767
        %v4872 = vmul.f32 %v4768, %v4768
        %v4873 = vsel %vm4769, %v4841, 0.0
        %v4874 = vsel %vm4769, %v4842, 0.0
        %v4875 = vadd.f32 %v4873, %v4874
        %v4876 = vsel %vm4769, %v4843, 0.0
        %v4877 = vadd.f32 %v4875, %v4876
        %v4878 = vsel %vm4769, %v4844, 0.0
        %v4879 = vadd.f32 %v4877, %v4878
        %v4880 = vsel %vm4769, %v4845, 0.0
        %v4881 = vadd.f32 %v4879, %v4880
        %v4882 = vsel %vm4769, %v4846, 0.0
        %v4883 = vadd.f32 %v4881, %v4882
        %v4884 = vsel %vm4769, %v4847, 0.0
        %v4885 = vadd.f32 %v4883, %v4884
        %v4886 = vsel %vm4769, %v4848, 0.0
        %v4887 = vadd.f32 %v4885, %v4886
        %v4888 = vsel %vm4769, %v4849, 0.0
        %v4889 = vadd.f32 %v4887, %v4888
        %v4890 = vsel %vm4769, %v4850, 0.0
        %v4891 = vadd.f32 %v4889, %v4890
        %v4892 = vsel %vm4769, %v4851, 0.0
        %v4893 = vadd.f32 %v4891, %v4892
        %v4894 = vsel %vm4769, %v4852, 0.0
        %v4895 = vadd.f32 %v4893, %v4894
        %v4896 = vsel %vm4769, %v4853, 0.0
        %v4897 = vadd.f32 %v4895, %v4896
        %v4898 = vsel %vm4769, %v4854, 0.0
        %v4899 = vadd.f32 %v4897, %v4898
        %v4900 = vsel %vm4769, %v4855, 0.0
        %v4901 = vadd.f32 %v4899, %v4900
        %v4902 = vsel %vm4769, %v4856, 0.0
        %v4903 = vadd.f32 %v4901, %v4902
        %v4904 = vsel %vm4769, %v4857, 0.0
        %v4905 = vadd.f32 %v4903, %v4904
        %v4906 = vsel %vm4769, %v4858, 0.0
        %v4907 = vadd.f32 %v4905, %v4906
        %v4908 = vsel %vm4769, %v4859, 0.0
        %v4909 = vadd.f32 %v4907, %v4908
        %v4910 = vsel %vm4769, %v4860, 0.0
        %v4911 = vadd.f32 %v4909, %v4910
        %v4912 = vsel %vm4769, %v4861, 0.0
        %v4913 = vadd.f32 %v4911, %v4912
        %v4914 = vsel %vm4769, %v4862, 0.0
        %v4915 = vadd.f32 %v4913, %v4914
        %v4916 = vsel %vm4769, %v4863, 0.0
        %v4917 = vadd.f32 %v4915, %v4916
        %v4918 = vsel %vm4769, %v4864, 0.0
        %v4919 = vadd.f32 %v4917, %v4918
        %v4920 = vsel %vm4769, %v4865, 0.0
        %v4921 = vadd.f32 %v4919, %v4920
        %v4922 = vsel %vm4769, %v4866, 0.0
        %v4923 = vadd.f32 %v4921, %v4922
        %v4924 = vsel %vm4769, %v4867, 0.0
        %v4925 = vadd.f32 %v4923, %v4924
        %v4926 = vsel %vm4769, %v4868, 0.0
        %v4927 = vadd.f32 %v4925, %v4926
        %v4928 = vsel %vm4769, %v4869, 0.0
        %v4929 = vadd.f32 %v4927, %v4928
        %v4930 = vsel %vm4769, %v4870, 0.0
        %v4931 = vadd.f32 %v4929, %v4930
        %v4932 = vsel %vm4769, %v4871, 0.0
        %v4933 = vadd.f32 %v4931, %v4932
        %v4934 = vsel %vm4769, %v4872, 0.0
        %v4935 = vadd.f32 %v4933, %v4934
        %v4936 = vrot.slane %v4935, 4
        %v4937 = vadd.f32 %v4935, %v4936
        %v4938 = vrot.slane %v4937, 2
        %v4939 = vadd.f32 %v4937, %v4938
        %v4940 = vrot.slane %v4939, 1
        %v4941 = vadd.f32 %v4939, %v4940
        %4942 = vst.msk [vmem:[%s206] sm:$0x1] %vm4839, %v4941
        %v4943 = vpack.c.bf16 %v4738, %v4737
        %v4944 = vpack.c.bf16 %v4740, %v4739
        %v4945 = vpack.c.bf16 %v4742, %v4741
        %v4946 = vpack.c.bf16 %v4744, %v4743
        %v4947 = vpack.c.bf16 %v4746, %v4745
        %v4948 = vpack.c.bf16 %v4748, %v4747
        %v4949 = vpack.c.bf16 %v4750, %v4749
        %v4950 = vpack.c.bf16 %v4752, %v4751
        %v4951 = vpack.c.bf16 %v4754, %v4753
        %v4952 = vpack.c.bf16 %v4756, %v4755
        %v4953 = vpack.c.bf16 %v4758, %v4757
        %v4954 = vpack.c.bf16 %v4760, %v4759
        %v4955 = vpack.c.bf16 %v4762, %v4761
        %v4956 = vpack.c.bf16 %v4764, %v4763
        %v4957 = vpack.c.bf16 %v4766, %v4765
        %v4958 = vpack.c.bf16 %v4768, %v4767
        %v4975 = vunpack.c.l.b16 %v4943
        %v4976 = vunpack.c.h.b16 %v4943
        %v4977 = vunpack.c.l.b16 %v4944
        %v4978 = vunpack.c.h.b16 %v4944
        %v4979 = vunpack.c.l.b16 %v4945
        %v4980 = vunpack.c.h.b16 %v4945
        %v4981 = vunpack.c.l.b16 %v4946
        %v4982 = vunpack.c.h.b16 %v4946
        %v4983 = vunpack.c.l.b16 %v4947
        %v4984 = vunpack.c.h.b16 %v4947
        %v4985 = vunpack.c.l.b16 %v4948
        %v4986 = vunpack.c.h.b16 %v4948
        %v4987 = vunpack.c.l.b16 %v4949
        %v4988 = vunpack.c.h.b16 %v4949
        %v4989 = vunpack.c.l.b16 %v4950
        %v4990 = vunpack.c.h.b16 %v4950
        %v4991 = vunpack.c.l.b16 %v4951
        %v4992 = vunpack.c.h.b16 %v4951
        %v4993 = vunpack.c.l.b16 %v4952
        %v4994 = vunpack.c.h.b16 %v4952
        %v4995 = vunpack.c.l.b16 %v4953
        %v4996 = vunpack.c.h.b16 %v4953
        %v4997 = vunpack.c.l.b16 %v4954
        %v4998 = vunpack.c.h.b16 %v4954
        %v4999 = vunpack.c.l.b16 %v4955
        %v5000 = vunpack.c.h.b16 %v4955
        %v5001 = vunpack.c.l.b16 %v4956
        %v5002 = vunpack.c.h.b16 %v4956
        %v5003 = vunpack.c.l.b16 %v4957
        %v5004 = vunpack.c.h.b16 %v4957
        %v5005 = vunpack.c.l.b16 %v4958
        %v5006 = vunpack.c.h.b16 %v4958
        %v5007 = vpack.c.b16 %v4975, %v4975
        %v5008 = vpack.c.b16 %v4976, %v4976
        %v5009 = vpack.c.b16 %v4977, %v4977
        %v5010 = vpack.c.b16 %v4978, %v4978
        %v5011 = vpack.c.b16 %v4979, %v4979
        %v5012 = vpack.c.b16 %v4980, %v4980
        %v5013 = vpack.c.b16 %v4981, %v4981
        %v5014 = vpack.c.b16 %v4982, %v4982
        %v5015 = vpack.c.b16 %v4983, %v4983
        %v5016 = vpack.c.b16 %v4984, %v4984
        %v5017 = vpack.c.b16 %v4985, %v4985
        %v5018 = vpack.c.b16 %v4986, %v4986
        %v5019 = vpack.c.b16 %v4987, %v4987
        %v5020 = vpack.c.b16 %v4988, %v4988
        %v5021 = vpack.c.b16 %v4989, %v4989
        %v5022 = vpack.c.b16 %v4990, %v4990
        %v5023 = vpack.c.b16 %v4991, %v4991
        %v5024 = vpack.c.b16 %v4992, %v4992
        %v5025 = vpack.c.b16 %v4993, %v4993
        %v5026 = vpack.c.b16 %v4994, %v4994
        %v5027 = vpack.c.b16 %v4995, %v4995
        %v5028 = vpack.c.b16 %v4996, %v4996
        %v5029 = vpack.c.b16 %v4997, %v4997
        %v5030 = vpack.c.b16 %v4998, %v4998
        %v5031 = vpack.c.b16 %v4999, %v4999
        %v5032 = vpack.c.b16 %v5000, %v5000
        %v5033 = vpack.c.b16 %v5001, %v5001
        %v5034 = vpack.c.b16 %v5002, %v5002
        %v5035 = vpack.c.b16 %v5003, %v5003
        %v5036 = vpack.c.b16 %v5004, %v5004
        %v5037 = vpack.c.b16 %v5005, %v5005
        %v5038 = vpack.c.b16 %v5006, %v5006
        %vm5071 = vcmask 60416
        %5072 = vst.msk [vmem:[%s216] sm:$0xf] %vm5071, %v5007
        %5073 = vst.msk [vmem:[%s216 + $0x4] sm:$0xf] %vm5071, %v5008
        %5074 = vst.msk [vmem:[%s216 + $0x8] sm:$0xf] %vm5071, %v5009
        %5075 = vst.msk [vmem:[%s216 + $0xc] sm:$0xf] %vm5071, %v5010
        %5076 = vst.msk [vmem:[%s216 + $0x10] sm:$0xf] %vm5071, %v5011
        %5077 = vst.msk [vmem:[%s216 + $0x14] sm:$0xf] %vm5071, %v5012
        %5078 = vst.msk [vmem:[%s216 + $0x18] sm:$0xf] %vm5071, %v5013
        %5079 = vst.msk [vmem:[%s216 + $0x1c] sm:$0xf] %vm5071, %v5014
        %5080 = vst.msk [vmem:[%s216 + $0x20] sm:$0xf] %vm5071, %v5015
        %5081 = vst.msk [vmem:[%s216 + $0x24] sm:$0xf] %vm5071, %v5016
        %5082 = vst.msk [vmem:[%s216 + $0x28] sm:$0xf] %vm5071, %v5017
        %5083 = vst.msk [vmem:[%s216 + $0x2c] sm:$0xf] %vm5071, %v5018
        %5084 = vst.msk [vmem:[%s216 + $0x30] sm:$0xf] %vm5071, %v5019
        %5085 = vst.msk [vmem:[%s216 + $0x34] sm:$0xf] %vm5071, %v5020
        %5086 = vst.msk [vmem:[%s216 + $0x38] sm:$0xf] %vm5071, %v5021
        %5087 = vst.msk [vmem:[%s216 + $0x3c] sm:$0xf] %vm5071, %v5022
        %5088 = vst.msk [vmem:[%s216 + $0x40] sm:$0xf] %vm5071, %v5023
        %5089 = vst.msk [vmem:[%s216 + $0x44] sm:$0xf] %vm5071, %v5024
        %5090 = vst.msk [vmem:[%s216 + $0x48] sm:$0xf] %vm5071, %v5025
        %5091 = vst.msk [vmem:[%s216 + $0x4c] sm:$0xf] %vm5071, %v5026
        %5092 = vst.msk [vmem:[%s216 + $0x50] sm:$0xf] %vm5071, %v5027
        %5093 = vst.msk [vmem:[%s216 + $0x54] sm:$0xf] %vm5071, %v5028
        %5094 = vst.msk [vmem:[%s216 + $0x58] sm:$0xf] %vm5071, %v5029
        %5095 = vst.msk [vmem:[%s216 + $0x5c] sm:$0xf] %vm5071, %v5030
        %5096 = vst.msk [vmem:[%s216 + $0x60] sm:$0xf] %vm5071, %v5031
        %5097 = vst.msk [vmem:[%s216 + $0x64] sm:$0xf] %vm5071, %v5032
        %5098 = vst.msk [vmem:[%s216 + $0x68] sm:$0xf] %vm5071, %v5033
        %5099 = vst.msk [vmem:[%s216 + $0x6c] sm:$0xf] %vm5071, %v5034
        %5100 = vst.msk [vmem:[%s216 + $0x70] sm:$0xf] %vm5071, %v5035
        %5101 = vst.msk [vmem:[%s216 + $0x74] sm:$0xf] %vm5071, %v5036
        %5102 = vst.msk [vmem:[%s216 + $0x78] sm:$0xf] %vm5071, %v5037
        %5103 = vst.msk [vmem:[%s216 + $0x7c] sm:$0xf] %vm5071, %v5038
        %p5104 = scmp.lt.s32.totalorder %s22, 1
        %s5105 = scalar_select %p5104, %s22, 1
        %s5106 = smul.addr %s5105, 32
        %s5107 = smul.addr %s5106, 4
        %s5108 = scalar_lea.vmem %s2, %s5107
        %s5109 = sand.u32 %s103, 1
        %s5110 = scalar_lea.sflag [#allocation3], %s5109
        %s5111 = sand.u32 %s103, 1
        %s5112 = scalar_lea.vmem [#allocation2], %s5111
        %s5113 = sand.u32 %s129, 1
        %s5114 = scalar_lea.sflag [#allocation5], %s5113
        %s5115 = sand.u32 %s129, 1
        %s5116 = scalar_lea.vmem [#allocation4], %s5115
        // Predicated region
        $region29: #{tpu_custom_call.1} parent=27 // pred_check
          %p5117 = pneg %p87
        $region30: #{tpu_custom_call.1} parent=27 // pred_check_branch
          %5119 = sbr.rel (%p5117) target = $region32
        $region31: #{tpu_custom_call.1} parent=27 // pred_region
          _
        $region32: #{tpu_custom_call.1} parent=27 // pred_fallthru
          _
        // Predicated region
        $region33: #{tpu_custom_call.1} parent=27 // pred_check
          %p5120 = pneg %p113
        $region34: #{tpu_custom_call.1} parent=27 // pred_check_branch
          %5122 = sbr.rel (%p5120) target = $region36
        $region35: #{tpu_custom_call.1} parent=27 // pred_region
          %s5124 = ssub.s32 16, 16
          %5125 = vsyncadd %s5110, %s5124
          %s5126 = smul.addr %s22, 16
          %s5127 = scalar_lea.hbm %s3, %s5126
          %s5129 = sshll.u32 %s5112, 4
          %s5130 = int_to_ptr.vmem [resolvable:$true] %s5129
          %5132 = dma.vmem_to_hbm [thread:$0]  %s5130, 16, %s5127, %s5110
        $region36: #{tpu_custom_call.1} parent=27 // pred_fallthru
          _
        // Predicated region
        $region37: #{tpu_custom_call.1} parent=27 // pred_check
          %p5133 = pneg %p139
        $region38: #{tpu_custom_call.1} parent=27 // pred_check_branch
          %5135 = sbr.rel (%p5133) target = $region40
        $region39: #{tpu_custom_call.1} parent=27 // pred_region
          %s5137 = ssub.s32 16, 16
          %5138 = vsyncadd %s5114, %s5137
          %s5139 = smul.addr %s22, 16
          %s5140 = scalar_lea.hbm %s4, %s5139
          %s5142 = sshll.u32 %s5116, 4
          %s5143 = int_to_ptr.vmem [resolvable:$true] %s5142
          %5145 = dma.vmem_to_hbm [thread:$0]  %s5143, 16, %s5140, %s5114
        $region40: #{tpu_custom_call.1} parent=27 // pred_fallthru
          _
      $region28: #{tpu_custom_call.1} parent=5 // pred_fallthru
        _
      %p5146 = scmp.le.s32.totalorder 2, %s17
      // Predicated region
      $region41: #{tpu_custom_call.1} parent=5 // pred_check
        %p5147 = pneg %p5146
      $region42: #{tpu_custom_call.1} parent=5 // pred_check_branch
        %5149 = sbr.rel (%p5147) target = $region44
      $region43: #{tpu_custom_call.1} parent=5 // pred_region
        %s5150 = ssub.s32 %s17, 2
        // Predicated region
        $region45: #{tpu_custom_call.1} parent=43 // pred_check
          %p5151 = pneg %p93
        $region46: #{tpu_custom_call.1} parent=43 // pred_check_branch
          %5153 = sbr.rel (%p5151) target = $region48
        $region47: #{tpu_custom_call.1} parent=43 // pred_region
          %p5154 = scmp.lt.s32.totalorder %s23, 1
          %s5155 = scalar_select %p5154, %s23, 1
          %s5156 = smul.addr %s5155, 32
          %s5157 = smul.addr %s5156, 4
          %s5158 = scalar_lea.vmem %s2, %s5157
        $region48: #{tpu_custom_call.1} parent=43 // pred_fallthru
          _
        // Predicated region
        $region49: #{tpu_custom_call.1} parent=43 // pred_check
          %p5159 = pneg %p119
        $region50: #{tpu_custom_call.1} parent=43 // pred_check_branch
          %5161 = sbr.rel (%p5159) target = $region52
        $region51: #{tpu_custom_call.1} parent=43 // pred_region
          %s5162 = sand.u32 %s104, 1
          %s5163 = scalar_lea.sflag [#allocation3], %s5162
          %s5164 = sand.u32 %s104, 1
          %s5165 = scalar_lea.vmem [#allocation2], %s5164
          %5166 = dma.done %s5163, 16
        $region52: #{tpu_custom_call.1} parent=43 // pred_fallthru
          _
        // Predicated region
        $region53: #{tpu_custom_call.1} parent=43 // pred_check
          %p5167 = pneg %p145
        $region54: #{tpu_custom_call.1} parent=43 // pred_check_branch
          %5169 = sbr.rel (%p5167) target = $region56
        $region55: #{tpu_custom_call.1} parent=43 // pred_region
          %s5170 = sand.u32 %s130, 1
          %s5171 = scalar_lea.sflag [#allocation5], %s5170
          %s5172 = sand.u32 %s130, 1
          %s5173 = scalar_lea.vmem [#allocation4], %s5172
          %5174 = dma.done %s5171, 16
        $region56: #{tpu_custom_call.1} parent=43 // pred_fallthru
          _
      $region44: #{tpu_custom_call.1} parent=5 // pred_fallthru
        _
    $region6: #{tpu_custom_call.1} parent=1 // loop_footer
      %s21 = sadd.s32 1, %s17
    $region7: #{tpu_custom_call.1} parent=1 // loop_footer_branch
      %16 = sbr.rel target = $region3
    $region8: #{tpu_custom_call.1} parent=1 // loop_exit
      _
    %5175 = vsyncpa [#allocation3], 1
    %s5176 = scalar_lea.sflag [#allocation3], 1
    %5177 = vsyncpa %s5176, 1
    %5178 = vsyncpa [#allocation5], 1
    %s5179 = scalar_lea.sflag [#allocation5], 1
    %5180 = vsyncpa %s5179, 1

</llo_original>
